<compile_context>
chip_gen: v7x
topology: tpu7x:2x2x1
jax: 0.10.0
libtpu: 0.0.40
codegen_flags: <defaults>
</compile_context>

<pallas_src>
import numpy as np
import jax
import jax.numpy as jnp
from jax.experimental import pallas as pl
from jax.experimental.pallas import tpu as pltpu

_VMEM = pl.BlockSpec(memory_space=pltpu.MemorySpace.VMEM)
_SMEM = pl.BlockSpec(memory_space=pltpu.MemorySpace.SMEM)


# ----------------------------- fused Pallas kernel -----------------------------

def _fused_forward_kernel(xs_ref, x2rows_ref, ws_ref, bs_ref, sprev_ref, snext_ref,
                          w1_ref, b1_ref, wexp1_ref, bsf_ref,
                          w2_ref, b2_ref, wexp2_ref, bcf_ref,
                          wcat_ref, bcat_ref, o_ref):
    f32 = jnp.float32
    nb = xs_ref.shape[0]                      # batch
    n_c1 = w1_ref.shape[0]                    # conv1d out channels
    n_c2 = w2_ref.shape[0]                    # conv2d out channels
    n_prow = wexp2_ref.shape[0] // n_c2       # pooled rows of the 2d conv (=3)
    wp = wexp2_ref.shape[1]                   # 2 * pooled width of the 2d conv (=34)
    d_common = wcat_ref.shape[0] - wexp1_ref.shape[2]   # Wcat rows for the common branch

    # ---- simple layer: relu(x @ W + b), all 3 branches stacked along lanes ----
    xs = xs_ref[...]                                                   # (B, 3*32)
    ds = jnp.dot(xs, ws_ref[...], preferred_element_type=f32) + bs_ref[...]
    ds = jnp.maximum(ds, 0.0)                                          # (B, 96)

    # ---- Cnn1dUnit(k=2,p=1) + MaxPool1d(2) + Flatten + seq FC (weight-folded) ----
    # sprev/snext are block-diagonal one-lane shift matrices => block-local zero padding.
    prv = jnp.dot(ds, sprev_ref[...], preferred_element_type=f32)      # ds[t-1] (0 at block start)
    nxt = jnp.dot(ds, snext_ref[...], preferred_element_type=f32)      # ds[t+1] (0 at block end)
    seq = jnp.zeros((nb, wexp1_ref.shape[2]), f32) + bsf_ref[...]      # (B, 48)
    for c in range(n_c1):
        k0 = w1_ref[c, 0]
        k1 = w1_ref[c, 1]
        bc = b1_ref[c]
        conv_even = jnp.maximum(k0 * prv + k1 * ds + bc, 0.0)   # relu(conv[2p])  at lane 2p
        conv_odd = jnp.maximum(k0 * ds + k1 * nxt + bc, 0.0)    # relu(conv[2p+1]) at lane 2p
        pooled = jnp.maximum(conv_even, conv_odd)               # even lanes = MaxPool output
        # wexp1[c] has the seq-FC rows only at even lanes (odd lanes weighted zero)
        seq = seq + jnp.dot(pooled, wexp1_ref[c], preferred_element_type=f32)
    seq = jnp.maximum(seq, 0.0)                                        # (B, 3*16)

    # ---- Cnn2dUnit(k=2,p=2) + MaxPool2d(2) + Flatten + common FC (weight-folded) ----
    # x2rows holds the zero-padded (7, B, 36) image, padded-row major.
    common = jnp.zeros((nb, bcf_ref.shape[1]), f32) + bcf_ref[...]     # (B, 16)
    for pi in range(n_prow):
        ra = x2rows_ref[2 * pi]          # padded row 2*pi      (B, 36)
        rb = x2rows_ref[2 * pi + 1]      # padded row 2*pi + 1
        rc = x2rows_ref[2 * pi + 2]      # padded row 2*pi + 2
        a0, a1, a2 = ra[:, 0:wp], ra[:, 1:wp + 1], ra[:, 2:wp + 2]
        b0, b1, b2 = rb[:, 0:wp], rb[:, 1:wp + 1], rb[:, 2:wp + 2]
        c0, c1, c2 = rc[:, 0:wp], rc[:, 1:wp + 1], rc[:, 2:wp + 2]
        for ch in range(n_c2):
            t00 = w2_ref[ch, 0]
            t01 = w2_ref[ch, 1]
            t10 = w2_ref[ch, 2]
            t11 = w2_ref[ch, 3]
            bch = b2_ref[ch]
            # the four relu(conv) values of each 2x2 pooling window, lane-aligned at j = 2*pj
            q00 = jnp.maximum(t00 * a0 + t01 * a1 + t10 * b0 + t11 * b1 + bch, 0.0)
            q01 = jnp.maximum(t00 * a1 + t01 * a2 + t10 * b1 + t11 * b2 + bch, 0.0)
            q10 = jnp.maximum(t00 * b0 + t01 * b1 + t10 * c0 + t11 * c1 + bch, 0.0)
            q11 = jnp.maximum(t00 * b1 + t01 * b2 + t10 * c1 + t11 * c2 + bch, 0.0)
            pooled2 = jnp.maximum(jnp.maximum(q00, q01), jnp.maximum(q10, q11))   # (B, 34)
            # wexp2[ch*3+pi] has the common-FC rows only at even lanes
            common = common + jnp.dot(pooled2, wexp2_ref[ch * n_prow + pi],
                                      preferred_element_type=f32)
    common = jnp.maximum(common, 0.0)                                  # (B, 16)

    # ---- concat([common, com, text, act]) + final FC as partial dots on Wcat blocks ----
    wcat = wcat_ref[...]
    out = jnp.dot(common, wcat[0:d_common, :], preferred_element_type=f32)
    out = out + jnp.dot(seq, wcat[d_common:, :], preferred_element_type=f32)
    o_ref[...] = jnp.maximum(out + bcat_ref[...], 0.0)


# ----------------------------- model forward (wrapper) -----------------------------

def model_forward(params, eles, text_embeds, com_embeds, com_tsne_embeds,
                  action_embeds, labels):
    del eles, com_tsne_embeds, labels   # unused by the reference forward
    f32 = jnp.float32
    com = com_embeds.astype(f32)
    text = text_embeds.astype(f32)
    act = action_embeds.astype(f32)
    B, D = com.shape
    G = 3   # three shared-weight branches: com, text, action

    Ws, bs = params['Ws'].astype(f32), params['bs'].astype(f32)        # (32,32), (32,)
    Wc1, bc1 = params['Wc1'].astype(f32), params['bc1'].astype(f32)    # (4,2), (4,)
    Wsf, bsf = params['Wsf'].astype(f32), params['bsf'].astype(f32)    # (64,16), (16,)
    Wc2, bc2 = params['Wc2'].astype(f32), params['bc2'].astype(f32)    # (4,2,2), (4,)
    Wcf, bcf = params['Wcf'].astype(f32), params['bcf'].astype(f32)    # (204,16), (16,)
    Wcat, bcat = params['Wcat'].astype(f32), params['bcat'].astype(f32)  # (64,8), (8,)

    Lc = Ws.shape[1]            # conv1d sequence length (= simple layer width = 32)
    Lp = Lc // 2                # MaxPool1d output length
    c1, c2 = Wc1.shape[0], Wc2.shape[0]
    seq_fc, common_fc = Wsf.shape[1], Wcf.shape[1]
    concat_dim = Wcat.shape[1]
    Hp = (G + 4 - 1) // 2       # pooled rows of the 2d conv (=3)
    Wp = (D + 4 - 1) // 2       # pooled cols of the 2d conv (=17)

    # ---- activations: one lane-stacked FC input + one padded conv2d image (one DMA each) ----
    xs2 = jnp.concatenate([com, text, act], axis=1)                    # (B, 3*D)
    x2 = jnp.stack([com, text, act], axis=1)                           # (B, 3, D) = inputs_addition
    x2rows = jnp.transpose(jnp.pad(x2, ((0, 0), (2, 2), (2, 2))), (1, 0, 2))   # (7, B, D+4)

    # ---- fold branch stacking / pool selection / flatten into FC weights (exact, no dots) ----
    # block-diagonal simple-layer weights (same Ws for every branch block)
    ws_bd = jnp.zeros((G * Lc, G * Lc), f32)
    for g in range(G):
        ws_bd = ws_bd.at[g * Lc:(g + 1) * Lc, g * Lc:(g + 1) * Lc].set(Ws)
    bs3 = jnp.tile(bs, G).reshape(1, G * Lc)

    # block-diagonal one-lane shift matrices (exact 0/1 constants)
    sprev = jnp.asarray(np.kron(np.eye(G, dtype=np.float32),
                                np.eye(Lc, k=1, dtype=np.float32)))    # x[t] -> x[t-1]
    snext = jnp.asarray(np.kron(np.eye(G, dtype=np.float32),
                                np.eye(Lc, k=-1, dtype=np.float32)))   # x[t] -> x[t+1]

    # seq FC weights: rows of Wsf placed at even lanes (pool selection) per channel,
    # then block-diagonal over the three branches.
    wsf_r = Wsf.reshape(c1, Lp, seq_fc)                                # (c, p, f)
    blk = jnp.zeros((c1, Lc, seq_fc), f32).at[:, 0::2, :].set(wsf_r)   # (c, 2p rows filled)
    wexp1 = jnp.zeros((c1, G * Lc, G * seq_fc), f32)
    for g in range(G):
        wexp1 = wexp1.at[:, g * Lc:(g + 1) * Lc, g * seq_fc:(g + 1) * seq_fc].set(blk)
    bsf3 = jnp.tile(bsf, G).reshape(1, G * seq_fc)

    # common FC weights: rows of Wcf placed at even lanes per (channel, pooled-row)
    wcf_r = Wcf.reshape(c2, Hp, Wp, common_fc)
    wexp2 = jnp.zeros((c2, Hp, 2 * Wp, common_fc), f32).at[:, :, 0::2, :].set(wcf_r)
    wexp2 = wexp2.reshape(c2 * Hp, 2 * Wp, common_fc)                  # (12, 34, 16)

    # small conv weights / biases as SMEM scalars
    w1s = Wc1                                                          # (4, 2)
    b1s = bc1                                                          # (4,)
    w2s = Wc2.reshape(c2, 4)                                           # (4, 4): [w00,w01,w10,w11]
    b2s = bc2                                                          # (4,)
    bcf2 = bcf.reshape(1, common_fc)
    bcat2 = bcat.reshape(1, concat_dim)

    return pl.pallas_call(
        _fused_forward_kernel,
        out_shape=jax.ShapeDtypeStruct((B, concat_dim), f32),
        in_specs=[_VMEM, _VMEM, _VMEM, _VMEM, _VMEM, _VMEM,
                  _SMEM, _SMEM, _VMEM, _VMEM,
                  _SMEM, _SMEM, _VMEM, _VMEM,
                  _VMEM, _VMEM],
        out_specs=_VMEM,
    )(xs2, x2rows, ws_bd, bs3, sprev, snext,
      w1s, b1s, wexp1, bsf3,
      w2s, b2s, wexp2, bcf2,
      Wcat, bcat2)


# ----------------------------- pure-JAX reference -----------------------------

def _ref_fc_relu(x, w, b):
    return jnp.maximum(x @ w + b, 0.0)


def _ref_conv1d_unit(x, w, b):
    xp = jnp.pad(x, ((0, 0), (1, 1)))
    conv = (w[None, :, 0:1] * xp[:, None, :-1] + w[None, :, 1:2] * xp[:, None, 1:]
            + b[None, :, None])
    conv = jnp.maximum(conv, 0.0)
    Lp = (conv.shape[-1] - 2) // 2 + 1
    return jnp.maximum(conv[:, :, 0:2 * Lp:2], conv[:, :, 1:2 * Lp:2])


def _ref_conv2d_unit(x, w, b):
    xp = jnp.pad(x, ((0, 0), (2, 2), (2, 2)))
    Ho, Wo = xp.shape[1] - 1, xp.shape[2] - 1
    conv = b[None, :, None, None]
    for di in range(2):
        for dj in range(2):
            conv = conv + w[None, :, di, dj, None, None] * xp[:, None, di:di + Ho, dj:dj + Wo]
    conv = jnp.maximum(conv, 0.0)
    Hp, Wp = Ho // 2, Wo // 2
    c = conv[:, :, :2 * Hp, :2 * Wp]
    return jnp.max(c.reshape(c.shape[0], c.shape[1], Hp, 2, Wp, 2), axis=(3, 5))


def ref_forward(params, eles, text_embeds, com_embeds, com_tsne_embeds,
                action_embeds, labels):
    inputs_addition = jnp.stack([com_embeds, text_embeds, action_embeds], axis=1)

    def simple(x):
        return _ref_fc_relu(x, params['Ws'], params['bs'])

    def seq(x):
        p = _ref_conv1d_unit(x, params['Wc1'], params['bc1'])
        return _ref_fc_relu(p.reshape(p.shape[0], -1), params['Wsf'], params['bsf'])

    com_d, text_d, act_d = simple(com_embeds), simple(text_embeds), simple(action_embeds)
    com_e, text_e, act_e = seq(com_d), seq(text_d), seq(act_d)
    p2 = _ref_conv2d_unit(inputs_addition, params['Wc2'], params['bc2'])
    common_e = _ref_fc_relu(p2.reshape(p2.shape[0], -1), params['Wcf'], params['bcf'])
    out = jnp.concatenate([common_e, com_e, text_e, act_e], axis=1)
    return _ref_fc_relu(out, params['Wcat'], params['bcat'])


# ----------------------------- params & main -----------------------------

def init_params(key, embed_dim, simple_dim, c1_out, seq_fc, c2_out, common_fc, concat_dim):
    ks = jax.random.split(key, 12)
    s = 0.1
    p = {}
    p['Ws'] = s * jax.random.normal(ks[0], (embed_dim, simple_dim), jnp.float32)
    p['bs'] = s * jax.random.normal(ks[1], (simple_dim,), jnp.float32)
    p['Wc1'] = s * jax.random.normal(ks[2], (c1_out, 2), jnp.float32)
    p['bc1'] = s * jax.random.normal(ks[3], (c1_out,), jnp.float32)
    seq_in = c1_out * (simple_dim // 2)
    p['Wsf'] = s * jax.random.normal(ks[4], (seq_in, seq_fc), jnp.float32)
    p['bsf'] = s * jax.random.normal(ks[5], (seq_fc,), jnp.float32)
    p['Wc2'] = s * jax.random.normal(ks[6], (c2_out, 2, 2), jnp.float32)
    p['bc2'] = s * jax.random.normal(ks[7], (c2_out,), jnp.float32)
    common_in = c2_out * ((3 + 3) // 2) * ((embed_dim + 3) // 2)
    p['Wcf'] = s * jax.random.normal(ks[8], (common_in, common_fc), jnp.float32)
    p['bcf'] = s * jax.random.normal(ks[9], (common_fc,), jnp.float32)
    concat_in = common_fc + 3 * seq_fc
    p['Wcat'] = s * jax.random.normal(ks[10], (concat_in, concat_dim), jnp.float32)
    p['bcat'] = s * jax.random.normal(ks[11], (concat_dim,), jnp.float32)
    return p


if __name__ == "__main__":
    B, D = 2, 32
    key = jax.random.PRNGKey(0)
    kparams, kinputs = jax.random.split(key)
    params = init_params(kparams, embed_dim=D, simple_dim=32, c1_out=4, seq_fc=16,
                         c2_out=4, common_fc=16, concat_dim=8)

    kin = jax.random.split(kinputs, 6)
    text_embeds = jax.random.normal(kin[0], (B, D), jnp.float32)
    com_embeds = jax.random.normal(kin[1], (B, D), jnp.float32)
    action_embeds = jax.random.normal(kin[2], (B, D), jnp.float32)
    eles = jax.random.normal(kin[3], (B, D), jnp.float32)             # unused by forward
    com_tsne_embeds = jax.random.normal(kin[4], (B, D), jnp.float32)  # unused by forward
    labels = jax.random.normal(kin[5], (B, 1), jnp.float32)           # unused by forward

    fwd = jax.jit(model_forward)
    out = fwd(params, eles, text_embeds, com_embeds, com_tsne_embeds,
              action_embeds, labels)
    out = jax.block_until_ready(out)

    ref = ref_forward(params, eles, text_embeds, com_embeds, com_tsne_embeds,
                      action_embeds, labels)
    # tolerance accounts for f32 MXU multi-pass / reassociation differences between the
    # fused (weight-folded) contraction order and the layer-by-layer reference.
    np.testing.assert_allclose(np.asarray(out), np.asarray(ref), rtol=1e-3, atol=1e-3)
    assert out.shape == (B, 8)
    print("KERNEL_OK")
</pallas_src>

<mosaic_0001>
module attributes {stable_mosaic.version = 11 : i64} {
  func.func @_fused_forward_kernel(%arg0: memref<2x96xf32, #tpu.memory_space<vmem>>, %arg1: memref<7x2x36xf32, #tpu.memory_space<vmem>>, %arg2: memref<96x96xf32, #tpu.memory_space<vmem>>, %arg3: memref<1x96xf32, #tpu.memory_space<vmem>>, %arg4: memref<96x96xf32, #tpu.memory_space<vmem>>, %arg5: memref<96x96xf32, #tpu.memory_space<vmem>>, %arg6: memref<4x2xf32, #tpu.memory_space<smem>>, %arg7: memref<4xf32, #tpu.memory_space<smem>>, %arg8: memref<4x96x48xf32, #tpu.memory_space<vmem>>, %arg9: memref<1x48xf32, #tpu.memory_space<vmem>>, %arg10: memref<4x4xf32, #tpu.memory_space<smem>>, %arg11: memref<4xf32, #tpu.memory_space<smem>>, %arg12: memref<12x34x16xf32, #tpu.memory_space<vmem>>, %arg13: memref<1x16xf32, #tpu.memory_space<vmem>>, %arg14: memref<64x8xf32, #tpu.memory_space<vmem>>, %arg15: memref<1x8xf32, #tpu.memory_space<vmem>>, %arg16: memref<2x8xf32, #tpu.memory_space<vmem>>) attributes {dimension_semantics = [], scalar_prefetch = 0 : i64, scratch_operands = 0 : i64, tpu.core_type = #tpu.core_type<tc>} {
    %c0 = arith.constant 0 : index
    %c0_0 = arith.constant 0 : index
    %0 = vector.load %arg0[%c0, %c0_0] : memref<2x96xf32, #tpu.memory_space<vmem>>, vector<2x96xf32>
    %c0_1 = arith.constant 0 : index
    %c0_2 = arith.constant 0 : index
    %1 = vector.load %arg2[%c0_1, %c0_2] : memref<96x96xf32, #tpu.memory_space<vmem>>, vector<96x96xf32>
    %cst = arith.constant dense<0.000000e+00> : vector<2x96xf32>
    %2 = tpu.matmul %0, %1, %cst {dimension_numbers = #tpu.dot_dimension_numbers<[1], [0], [0], [1], [0, 0, 1, 1], [], []>} : vector<2x96xf32>, vector<96x96xf32>, vector<2x96xf32> -> vector<2x96xf32>
    %c0_3 = arith.constant 0 : index
    %c0_4 = arith.constant 0 : index
    %3 = vector.load %arg3[%c0_3, %c0_4] : memref<1x96xf32, #tpu.memory_space<vmem>>, vector<1x96xf32>
    %4 = vector.broadcast %3 : vector<1x96xf32> to vector<2x96xf32>
    %5 = arith.addf %2, %4 : vector<2x96xf32>
    %cst_5 = arith.constant 0.000000e+00 : f32
    %6 = vector.broadcast %cst_5 : f32 to vector<2x96xf32>
    %7 = arith.maximumf %5, %6 : vector<2x96xf32>
    %c0_6 = arith.constant 0 : index
    %c0_7 = arith.constant 0 : index
    %8 = vector.load %arg4[%c0_6, %c0_7] : memref<96x96xf32, #tpu.memory_space<vmem>>, vector<96x96xf32>
    %cst_8 = arith.constant dense<0.000000e+00> : vector<2x96xf32>
    %9 = tpu.matmul %7, %8, %cst_8 {dimension_numbers = #tpu.dot_dimension_numbers<[1], [0], [0], [1], [0, 0, 1, 1], [], []>} : vector<2x96xf32>, vector<96x96xf32>, vector<2x96xf32> -> vector<2x96xf32>
    %c0_9 = arith.constant 0 : index
    %c0_10 = arith.constant 0 : index
    %10 = vector.load %arg5[%c0_9, %c0_10] : memref<96x96xf32, #tpu.memory_space<vmem>>, vector<96x96xf32>
    %cst_11 = arith.constant dense<0.000000e+00> : vector<2x96xf32>
    %11 = tpu.matmul %7, %10, %cst_11 {dimension_numbers = #tpu.dot_dimension_numbers<[1], [0], [0], [1], [0, 0, 1, 1], [], []>} : vector<2x96xf32>, vector<96x96xf32>, vector<2x96xf32> -> vector<2x96xf32>
    %cst_12 = arith.constant 0.000000e+00 : f32
    %12 = vector.broadcast %cst_12 : f32 to vector<2x48xf32>
    %c0_13 = arith.constant 0 : index
    %c0_14 = arith.constant 0 : index
    %13 = vector.load %arg9[%c0_13, %c0_14] : memref<1x48xf32, #tpu.memory_space<vmem>>, vector<1x48xf32>
    %14 = vector.broadcast %13 : vector<1x48xf32> to vector<2x48xf32>
    %15 = arith.addf %12, %14 : vector<2x48xf32>
    %c0_15 = arith.constant 0 : index
    %c0_16 = arith.constant 0 : index
    %16 = memref.load %arg6[%c0_15, %c0_16] : memref<4x2xf32, #tpu.memory_space<smem>>
    %c0_17 = arith.constant 0 : index
    %c1 = arith.constant 1 : index
    %17 = memref.load %arg6[%c0_17, %c1] : memref<4x2xf32, #tpu.memory_space<smem>>
    %c0_18 = arith.constant 0 : index
    %18 = memref.load %arg7[%c0_18] : memref<4xf32, #tpu.memory_space<smem>>
    %19 = vector.broadcast %16 : f32 to vector<2x96xf32>
    %20 = arith.mulf %19, %9 : vector<2x96xf32>
    %21 = vector.broadcast %17 : f32 to vector<2x96xf32>
    %22 = arith.mulf %21, %7 : vector<2x96xf32>
    %23 = arith.addf %20, %22 : vector<2x96xf32>
    %24 = vector.broadcast %18 : f32 to vector<2x96xf32>
    %25 = arith.addf %23, %24 : vector<2x96xf32>
    %cst_19 = arith.constant 0.000000e+00 : f32
    %26 = vector.broadcast %cst_19 : f32 to vector<2x96xf32>
    %27 = arith.maximumf %25, %26 : vector<2x96xf32>
    %28 = vector.broadcast %16 : f32 to vector<2x96xf32>
    %29 = arith.mulf %28, %7 : vector<2x96xf32>
    %30 = vector.broadcast %17 : f32 to vector<2x96xf32>
    %31 = arith.mulf %30, %11 : vector<2x96xf32>
    %32 = arith.addf %29, %31 : vector<2x96xf32>
    %33 = vector.broadcast %18 : f32 to vector<2x96xf32>
    %34 = arith.addf %32, %33 : vector<2x96xf32>
    %cst_20 = arith.constant 0.000000e+00 : f32
    %35 = vector.broadcast %cst_20 : f32 to vector<2x96xf32>
    %36 = arith.maximumf %34, %35 : vector<2x96xf32>
    %37 = arith.maximumf %27, %36 : vector<2x96xf32>
    %c0_21 = arith.constant 0 : index
    %c0_22 = arith.constant 0 : index
    %c0_23 = arith.constant 0 : index
    %38 = vector.load %arg8[%c0_21, %c0_22, %c0_23] : memref<4x96x48xf32, #tpu.memory_space<vmem>>, vector<1x96x48xf32>
    %39 = vector.shape_cast %38 : vector<1x96x48xf32> to vector<96x48xf32>
    %cst_24 = arith.constant dense<0.000000e+00> : vector<2x48xf32>
    %40 = tpu.matmul %37, %39, %cst_24 {dimension_numbers = #tpu.dot_dimension_numbers<[1], [0], [0], [1], [0, 0, 1, 1], [], []>} : vector<2x96xf32>, vector<96x48xf32>, vector<2x48xf32> -> vector<2x48xf32>
    %41 = arith.addf %15, %40 : vector<2x48xf32>
    %c1_25 = arith.constant 1 : index
    %c0_26 = arith.constant 0 : index
    %42 = memref.load %arg6[%c1_25, %c0_26] : memref<4x2xf32, #tpu.memory_space<smem>>
    %c1_27 = arith.constant 1 : index
    %c1_28 = arith.constant 1 : index
    %43 = memref.load %arg6[%c1_27, %c1_28] : memref<4x2xf32, #tpu.memory_space<smem>>
    %c1_29 = arith.constant 1 : index
    %44 = memref.load %arg7[%c1_29] : memref<4xf32, #tpu.memory_space<smem>>
    %45 = vector.broadcast %42 : f32 to vector<2x96xf32>
    %46 = arith.mulf %45, %9 : vector<2x96xf32>
    %47 = vector.broadcast %43 : f32 to vector<2x96xf32>
    %48 = arith.mulf %47, %7 : vector<2x96xf32>
    %49 = arith.addf %46, %48 : vector<2x96xf32>
    %50 = vector.broadcast %44 : f32 to vector<2x96xf32>
    %51 = arith.addf %49, %50 : vector<2x96xf32>
    %cst_30 = arith.constant 0.000000e+00 : f32
    %52 = vector.broadcast %cst_30 : f32 to vector<2x96xf32>
    %53 = arith.maximumf %51, %52 : vector<2x96xf32>
    %54 = vector.broadcast %42 : f32 to vector<2x96xf32>
    %55 = arith.mulf %54, %7 : vector<2x96xf32>
    %56 = vector.broadcast %43 : f32 to vector<2x96xf32>
    %57 = arith.mulf %56, %11 : vector<2x96xf32>
    %58 = arith.addf %55, %57 : vector<2x96xf32>
    %59 = vector.broadcast %44 : f32 to vector<2x96xf32>
    %60 = arith.addf %58, %59 : vector<2x96xf32>
    %cst_31 = arith.constant 0.000000e+00 : f32
    %61 = vector.broadcast %cst_31 : f32 to vector<2x96xf32>
    %62 = arith.maximumf %60, %61 : vector<2x96xf32>
    %63 = arith.maximumf %53, %62 : vector<2x96xf32>
    %c1_32 = arith.constant 1 : index
    %c0_33 = arith.constant 0 : index
    %c0_34 = arith.constant 0 : index
    %64 = vector.load %arg8[%c1_32, %c0_33, %c0_34] : memref<4x96x48xf32, #tpu.memory_space<vmem>>, vector<1x96x48xf32>
    %65 = vector.shape_cast %64 : vector<1x96x48xf32> to vector<96x48xf32>
    %cst_35 = arith.constant dense<0.000000e+00> : vector<2x48xf32>
    %66 = tpu.matmul %63, %65, %cst_35 {dimension_numbers = #tpu.dot_dimension_numbers<[1], [0], [0], [1], [0, 0, 1, 1], [], []>} : vector<2x96xf32>, vector<96x48xf32>, vector<2x48xf32> -> vector<2x48xf32>
    %67 = arith.addf %41, %66 : vector<2x48xf32>
    %c2 = arith.constant 2 : index
    %c0_36 = arith.constant 0 : index
    %68 = memref.load %arg6[%c2, %c0_36] : memref<4x2xf32, #tpu.memory_space<smem>>
    %c2_37 = arith.constant 2 : index
    %c1_38 = arith.constant 1 : index
    %69 = memref.load %arg6[%c2_37, %c1_38] : memref<4x2xf32, #tpu.memory_space<smem>>
    %c2_39 = arith.constant 2 : index
    %70 = memref.load %arg7[%c2_39] : memref<4xf32, #tpu.memory_space<smem>>
    %71 = vector.broadcast %68 : f32 to vector<2x96xf32>
    %72 = arith.mulf %71, %9 : vector<2x96xf32>
    %73 = vector.broadcast %69 : f32 to vector<2x96xf32>
    %74 = arith.mulf %73, %7 : vector<2x96xf32>
    %75 = arith.addf %72, %74 : vector<2x96xf32>
    %76 = vector.broadcast %70 : f32 to vector<2x96xf32>
    %77 = arith.addf %75, %76 : vector<2x96xf32>
    %cst_40 = arith.constant 0.000000e+00 : f32
    %78 = vector.broadcast %cst_40 : f32 to vector<2x96xf32>
    %79 = arith.maximumf %77, %78 : vector<2x96xf32>
    %80 = vector.broadcast %68 : f32 to vector<2x96xf32>
    %81 = arith.mulf %80, %7 : vector<2x96xf32>
    %82 = vector.broadcast %69 : f32 to vector<2x96xf32>
    %83 = arith.mulf %82, %11 : vector<2x96xf32>
    %84 = arith.addf %81, %83 : vector<2x96xf32>
    %85 = vector.broadcast %70 : f32 to vector<2x96xf32>
    %86 = arith.addf %84, %85 : vector<2x96xf32>
    %cst_41 = arith.constant 0.000000e+00 : f32
    %87 = vector.broadcast %cst_41 : f32 to vector<2x96xf32>
    %88 = arith.maximumf %86, %87 : vector<2x96xf32>
    %89 = arith.maximumf %79, %88 : vector<2x96xf32>
    %c2_42 = arith.constant 2 : index
    %c0_43 = arith.constant 0 : index
    %c0_44 = arith.constant 0 : index
    %90 = vector.load %arg8[%c2_42, %c0_43, %c0_44] : memref<4x96x48xf32, #tpu.memory_space<vmem>>, vector<1x96x48xf32>
    %91 = vector.shape_cast %90 : vector<1x96x48xf32> to vector<96x48xf32>
    %cst_45 = arith.constant dense<0.000000e+00> : vector<2x48xf32>
    %92 = tpu.matmul %89, %91, %cst_45 {dimension_numbers = #tpu.dot_dimension_numbers<[1], [0], [0], [1], [0, 0, 1, 1], [], []>} : vector<2x96xf32>, vector<96x48xf32>, vector<2x48xf32> -> vector<2x48xf32>
    %93 = arith.addf %67, %92 : vector<2x48xf32>
    %c3 = arith.constant 3 : index
    %c0_46 = arith.constant 0 : index
    %94 = memref.load %arg6[%c3, %c0_46] : memref<4x2xf32, #tpu.memory_space<smem>>
    %c3_47 = arith.constant 3 : index
    %c1_48 = arith.constant 1 : index
    %95 = memref.load %arg6[%c3_47, %c1_48] : memref<4x2xf32, #tpu.memory_space<smem>>
    %c3_49 = arith.constant 3 : index
    %96 = memref.load %arg7[%c3_49] : memref<4xf32, #tpu.memory_space<smem>>
    %97 = vector.broadcast %94 : f32 to vector<2x96xf32>
    %98 = arith.mulf %97, %9 : vector<2x96xf32>
    %99 = vector.broadcast %95 : f32 to vector<2x96xf32>
    %100 = arith.mulf %99, %7 : vector<2x96xf32>
    %101 = arith.addf %98, %100 : vector<2x96xf32>
    %102 = vector.broadcast %96 : f32 to vector<2x96xf32>
    %103 = arith.addf %101, %102 : vector<2x96xf32>
    %cst_50 = arith.constant 0.000000e+00 : f32
    %104 = vector.broadcast %cst_50 : f32 to vector<2x96xf32>
    %105 = arith.maximumf %103, %104 : vector<2x96xf32>
    %106 = vector.broadcast %94 : f32 to vector<2x96xf32>
    %107 = arith.mulf %106, %7 : vector<2x96xf32>
    %108 = vector.broadcast %95 : f32 to vector<2x96xf32>
    %109 = arith.mulf %108, %11 : vector<2x96xf32>
    %110 = arith.addf %107, %109 : vector<2x96xf32>
    %111 = vector.broadcast %96 : f32 to vector<2x96xf32>
    %112 = arith.addf %110, %111 : vector<2x96xf32>
    %cst_51 = arith.constant 0.000000e+00 : f32
    %113 = vector.broadcast %cst_51 : f32 to vector<2x96xf32>
    %114 = arith.maximumf %112, %113 : vector<2x96xf32>
    %115 = arith.maximumf %105, %114 : vector<2x96xf32>
    %c3_52 = arith.constant 3 : index
    %c0_53 = arith.constant 0 : index
    %c0_54 = arith.constant 0 : index
    %116 = vector.load %arg8[%c3_52, %c0_53, %c0_54] : memref<4x96x48xf32, #tpu.memory_space<vmem>>, vector<1x96x48xf32>
    %117 = vector.shape_cast %116 : vector<1x96x48xf32> to vector<96x48xf32>
    %cst_55 = arith.constant dense<0.000000e+00> : vector<2x48xf32>
    %118 = tpu.matmul %115, %117, %cst_55 {dimension_numbers = #tpu.dot_dimension_numbers<[1], [0], [0], [1], [0, 0, 1, 1], [], []>} : vector<2x96xf32>, vector<96x48xf32>, vector<2x48xf32> -> vector<2x48xf32>
    %119 = arith.addf %93, %118 : vector<2x48xf32>
    %cst_56 = arith.constant 0.000000e+00 : f32
    %120 = vector.broadcast %cst_56 : f32 to vector<2x48xf32>
    %121 = arith.maximumf %119, %120 : vector<2x48xf32>
    %cst_57 = arith.constant 0.000000e+00 : f32
    %122 = vector.broadcast %cst_57 : f32 to vector<2x16xf32>
    %c0_58 = arith.constant 0 : index
    %c0_59 = arith.constant 0 : index
    %123 = vector.load %arg13[%c0_58, %c0_59] : memref<1x16xf32, #tpu.memory_space<vmem>>, vector<1x16xf32>
    %124 = vector.broadcast %123 : vector<1x16xf32> to vector<2x16xf32>
    %125 = arith.addf %122, %124 : vector<2x16xf32>
    %c0_60 = arith.constant 0 : index
    %c0_61 = arith.constant 0 : index
    %c0_62 = arith.constant 0 : index
    %126 = vector.load %arg1[%c0_60, %c0_61, %c0_62] : memref<7x2x36xf32, #tpu.memory_space<vmem>>, vector<1x2x36xf32>
    %127 = vector.shape_cast %126 : vector<1x2x36xf32> to vector<2x36xf32>
    %c1_63 = arith.constant 1 : index
    %c0_64 = arith.constant 0 : index
    %c0_65 = arith.constant 0 : index
    %128 = vector.load %arg1[%c1_63, %c0_64, %c0_65] : memref<7x2x36xf32, #tpu.memory_space<vmem>>, vector<1x2x36xf32>
    %129 = vector.shape_cast %128 : vector<1x2x36xf32> to vector<2x36xf32>
    %c2_66 = arith.constant 2 : index
    %c0_67 = arith.constant 0 : index
    %c0_68 = arith.constant 0 : index
    %130 = vector.load %arg1[%c2_66, %c0_67, %c0_68] : memref<7x2x36xf32, #tpu.memory_space<vmem>>, vector<1x2x36xf32>
    %131 = vector.shape_cast %130 : vector<1x2x36xf32> to vector<2x36xf32>
    %132 = vector.extract_strided_slice %127 {offsets = [0, 0], sizes = [2, 34], strides = [1, 1]} : vector<2x36xf32> to vector<2x34xf32>
    %133 = vector.extract_strided_slice %127 {offsets = [0, 1], sizes = [2, 34], strides = [1, 1]} : vector<2x36xf32> to vector<2x34xf32>
    %134 = vector.extract_strided_slice %127 {offsets = [0, 2], sizes = [2, 34], strides = [1, 1]} : vector<2x36xf32> to vector<2x34xf32>
    %135 = vector.extract_strided_slice %129 {offsets = [0, 0], sizes = [2, 34], strides = [1, 1]} : vector<2x36xf32> to vector<2x34xf32>
    %136 = vector.extract_strided_slice %129 {offsets = [0, 1], sizes = [2, 34], strides = [1, 1]} : vector<2x36xf32> to vector<2x34xf32>
    %137 = vector.extract_strided_slice %129 {offsets = [0, 2], sizes = [2, 34], strides = [1, 1]} : vector<2x36xf32> to vector<2x34xf32>
    %138 = vector.extract_strided_slice %131 {offsets = [0, 0], sizes = [2, 34], strides = [1, 1]} : vector<2x36xf32> to vector<2x34xf32>
    %139 = vector.extract_strided_slice %131 {offsets = [0, 1], sizes = [2, 34], strides = [1, 1]} : vector<2x36xf32> to vector<2x34xf32>
    %140 = vector.extract_strided_slice %131 {offsets = [0, 2], sizes = [2, 34], strides = [1, 1]} : vector<2x36xf32> to vector<2x34xf32>
    %c0_69 = arith.constant 0 : index
    %c0_70 = arith.constant 0 : index
    %141 = memref.load %arg10[%c0_69, %c0_70] : memref<4x4xf32, #tpu.memory_space<smem>>
    %c0_71 = arith.constant 0 : index
    %c1_72 = arith.constant 1 : index
    %142 = memref.load %arg10[%c0_71, %c1_72] : memref<4x4xf32, #tpu.memory_space<smem>>
    %c0_73 = arith.constant 0 : index
    %c2_74 = arith.constant 2 : index
    %143 = memref.load %arg10[%c0_73, %c2_74] : memref<4x4xf32, #tpu.memory_space<smem>>
    %c0_75 = arith.constant 0 : index
    %c3_76 = arith.constant 3 : index
    %144 = memref.load %arg10[%c0_75, %c3_76] : memref<4x4xf32, #tpu.memory_space<smem>>
    %c0_77 = arith.constant 0 : index
    %145 = memref.load %arg11[%c0_77] : memref<4xf32, #tpu.memory_space<smem>>
    %146 = vector.broadcast %141 : f32 to vector<2x34xf32>
    %147 = arith.mulf %146, %132 : vector<2x34xf32>
    %148 = vector.broadcast %142 : f32 to vector<2x34xf32>
    %149 = arith.mulf %148, %133 : vector<2x34xf32>
    %150 = arith.addf %147, %149 : vector<2x34xf32>
    %151 = vector.broadcast %143 : f32 to vector<2x34xf32>
    %152 = arith.mulf %151, %135 : vector<2x34xf32>
    %153 = arith.addf %150, %152 : vector<2x34xf32>
    %154 = vector.broadcast %144 : f32 to vector<2x34xf32>
    %155 = arith.mulf %154, %136 : vector<2x34xf32>
    %156 = arith.addf %153, %155 : vector<2x34xf32>
    %157 = vector.broadcast %145 : f32 to vector<2x34xf32>
    %158 = arith.addf %156, %157 : vector<2x34xf32>
    %cst_78 = arith.constant 0.000000e+00 : f32
    %159 = vector.broadcast %cst_78 : f32 to vector<2x34xf32>
    %160 = arith.maximumf %158, %159 : vector<2x34xf32>
    %161 = vector.broadcast %141 : f32 to vector<2x34xf32>
    %162 = arith.mulf %161, %133 : vector<2x34xf32>
    %163 = vector.broadcast %142 : f32 to vector<2x34xf32>
    %164 = arith.mulf %163, %134 : vector<2x34xf32>
    %165 = arith.addf %162, %164 : vector<2x34xf32>
    %166 = vector.broadcast %143 : f32 to vector<2x34xf32>
    %167 = arith.mulf %166, %136 : vector<2x34xf32>
    %168 = arith.addf %165, %167 : vector<2x34xf32>
    %169 = vector.broadcast %144 : f32 to vector<2x34xf32>
    %170 = arith.mulf %169, %137 : vector<2x34xf32>
    %171 = arith.addf %168, %170 : vector<2x34xf32>
    %172 = vector.broadcast %145 : f32 to vector<2x34xf32>
    %173 = arith.addf %171, %172 : vector<2x34xf32>
    %cst_79 = arith.constant 0.000000e+00 : f32
    %174 = vector.broadcast %cst_79 : f32 to vector<2x34xf32>
    %175 = arith.maximumf %173, %174 : vector<2x34xf32>
    %176 = vector.broadcast %141 : f32 to vector<2x34xf32>
    %177 = arith.mulf %176, %135 : vector<2x34xf32>
    %178 = vector.broadcast %142 : f32 to vector<2x34xf32>
    %179 = arith.mulf %178, %136 : vector<2x34xf32>
    %180 = arith.addf %177, %179 : vector<2x34xf32>
    %181 = vector.broadcast %143 : f32 to vector<2x34xf32>
    %182 = arith.mulf %181, %138 : vector<2x34xf32>
    %183 = arith.addf %180, %182 : vector<2x34xf32>
    %184 = vector.broadcast %144 : f32 to vector<2x34xf32>
    %185 = arith.mulf %184, %139 : vector<2x34xf32>
    %186 = arith.addf %183, %185 : vector<2x34xf32>
    %187 = vector.broadcast %145 : f32 to vector<2x34xf32>
    %188 = arith.addf %186, %187 : vector<2x34xf32>
    %cst_80 = arith.constant 0.000000e+00 : f32
    %189 = vector.broadcast %cst_80 : f32 to vector<2x34xf32>
    %190 = arith.maximumf %188, %189 : vector<2x34xf32>
    %191 = vector.broadcast %141 : f32 to vector<2x34xf32>
    %192 = arith.mulf %191, %136 : vector<2x34xf32>
    %193 = vector.broadcast %142 : f32 to vector<2x34xf32>
    %194 = arith.mulf %193, %137 : vector<2x34xf32>
    %195 = arith.addf %192, %194 : vector<2x34xf32>
    %196 = vector.broadcast %143 : f32 to vector<2x34xf32>
    %197 = arith.mulf %196, %139 : vector<2x34xf32>
    %198 = arith.addf %195, %197 : vector<2x34xf32>
    %199 = vector.broadcast %144 : f32 to vector<2x34xf32>
    %200 = arith.mulf %199, %140 : vector<2x34xf32>
    %201 = arith.addf %198, %200 : vector<2x34xf32>
    %202 = vector.broadcast %145 : f32 to vector<2x34xf32>
    %203 = arith.addf %201, %202 : vector<2x34xf32>
    %cst_81 = arith.constant 0.000000e+00 : f32
    %204 = vector.broadcast %cst_81 : f32 to vector<2x34xf32>
    %205 = arith.maximumf %203, %204 : vector<2x34xf32>
    %206 = arith.maximumf %160, %175 : vector<2x34xf32>
    %207 = arith.maximumf %190, %205 : vector<2x34xf32>
    %208 = arith.maximumf %206, %207 : vector<2x34xf32>
    %c0_82 = arith.constant 0 : index
    %c0_83 = arith.constant 0 : index
    %c0_84 = arith.constant 0 : index
    %209 = vector.load %arg12[%c0_82, %c0_83, %c0_84] : memref<12x34x16xf32, #tpu.memory_space<vmem>>, vector<1x34x16xf32>
    %210 = vector.shape_cast %209 : vector<1x34x16xf32> to vector<34x16xf32>
    %cst_85 = arith.constant dense<0.000000e+00> : vector<2x16xf32>
    %211 = tpu.matmul %208, %210, %cst_85 {dimension_numbers = #tpu.dot_dimension_numbers<[1], [0], [0], [1], [0, 0, 1, 1], [], []>} : vector<2x34xf32>, vector<34x16xf32>, vector<2x16xf32> -> vector<2x16xf32>
    %212 = arith.addf %125, %211 : vector<2x16xf32>
    %c1_86 = arith.constant 1 : index
    %c0_87 = arith.constant 0 : index
    %213 = memref.load %arg10[%c1_86, %c0_87] : memref<4x4xf32, #tpu.memory_space<smem>>
    %c1_88 = arith.constant 1 : index
    %c1_89 = arith.constant 1 : index
    %214 = memref.load %arg10[%c1_88, %c1_89] : memref<4x4xf32, #tpu.memory_space<smem>>
    %c1_90 = arith.constant 1 : index
    %c2_91 = arith.constant 2 : index
    %215 = memref.load %arg10[%c1_90, %c2_91] : memref<4x4xf32, #tpu.memory_space<smem>>
    %c1_92 = arith.constant 1 : index
    %c3_93 = arith.constant 3 : index
    %216 = memref.load %arg10[%c1_92, %c3_93] : memref<4x4xf32, #tpu.memory_space<smem>>
    %c1_94 = arith.constant 1 : index
    %217 = memref.load %arg11[%c1_94] : memref<4xf32, #tpu.memory_space<smem>>
    %218 = vector.broadcast %213 : f32 to vector<2x34xf32>
    %219 = arith.mulf %218, %132 : vector<2x34xf32>
    %220 = vector.broadcast %214 : f32 to vector<2x34xf32>
    %221 = arith.mulf %220, %133 : vector<2x34xf32>
    %222 = arith.addf %219, %221 : vector<2x34xf32>
    %223 = vector.broadcast %215 : f32 to vector<2x34xf32>
    %224 = arith.mulf %223, %135 : vector<2x34xf32>
    %225 = arith.addf %222, %224 : vector<2x34xf32>
    %226 = vector.broadcast %216 : f32 to vector<2x34xf32>
    %227 = arith.mulf %226, %136 : vector<2x34xf32>
    %228 = arith.addf %225, %227 : vector<2x34xf32>
    %229 = vector.broadcast %217 : f32 to vector<2x34xf32>
    %230 = arith.addf %228, %229 : vector<2x34xf32>
    %cst_95 = arith.constant 0.000000e+00 : f32
    %231 = vector.broadcast %cst_95 : f32 to vector<2x34xf32>
    %232 = arith.maximumf %230, %231 : vector<2x34xf32>
    %233 = vector.broadcast %213 : f32 to vector<2x34xf32>
    %234 = arith.mulf %233, %133 : vector<2x34xf32>
    %235 = vector.broadcast %214 : f32 to vector<2x34xf32>
    %236 = arith.mulf %235, %134 : vector<2x34xf32>
    %237 = arith.addf %234, %236 : vector<2x34xf32>
    %238 = vector.broadcast %215 : f32 to vector<2x34xf32>
    %239 = arith.mulf %238, %136 : vector<2x34xf32>
    %240 = arith.addf %237, %239 : vector<2x34xf32>
    %241 = vector.broadcast %216 : f32 to vector<2x34xf32>
    %242 = arith.mulf %241, %137 : vector<2x34xf32>
    %243 = arith.addf %240, %242 : vector<2x34xf32>
    %244 = vector.broadcast %217 : f32 to vector<2x34xf32>
    %245 = arith.addf %243, %244 : vector<2x34xf32>
    %cst_96 = arith.constant 0.000000e+00 : f32
    %246 = vector.broadcast %cst_96 : f32 to vector<2x34xf32>
    %247 = arith.maximumf %245, %246 : vector<2x34xf32>
    %248 = vector.broadcast %213 : f32 to vector<2x34xf32>
    %249 = arith.mulf %248, %135 : vector<2x34xf32>
    %250 = vector.broadcast %214 : f32 to vector<2x34xf32>
    %251 = arith.mulf %250, %136 : vector<2x34xf32>
    %252 = arith.addf %249, %251 : vector<2x34xf32>
    %253 = vector.broadcast %215 : f32 to vector<2x34xf32>
    %254 = arith.mulf %253, %138 : vector<2x34xf32>
    %255 = arith.addf %252, %254 : vector<2x34xf32>
    %256 = vector.broadcast %216 : f32 to vector<2x34xf32>
    %257 = arith.mulf %256, %139 : vector<2x34xf32>
    %258 = arith.addf %255, %257 : vector<2x34xf32>
    %259 = vector.broadcast %217 : f32 to vector<2x34xf32>
    %260 = arith.addf %258, %259 : vector<2x34xf32>
    %cst_97 = arith.constant 0.000000e+00 : f32
    %261 = vector.broadcast %cst_97 : f32 to vector<2x34xf32>
    %262 = arith.maximumf %260, %261 : vector<2x34xf32>
    %263 = vector.broadcast %213 : f32 to vector<2x34xf32>
    %264 = arith.mulf %263, %136 : vector<2x34xf32>
    %265 = vector.broadcast %214 : f32 to vector<2x34xf32>
    %266 = arith.mulf %265, %137 : vector<2x34xf32>
    %267 = arith.addf %264, %266 : vector<2x34xf32>
    %268 = vector.broadcast %215 : f32 to vector<2x34xf32>
    %269 = arith.mulf %268, %139 : vector<2x34xf32>
    %270 = arith.addf %267, %269 : vector<2x34xf32>
    %271 = vector.broadcast %216 : f32 to vector<2x34xf32>
    %272 = arith.mulf %271, %140 : vector<2x34xf32>
    %273 = arith.addf %270, %272 : vector<2x34xf32>
    %274 = vector.broadcast %217 : f32 to vector<2x34xf32>
    %275 = arith.addf %273, %274 : vector<2x34xf32>
    %cst_98 = arith.constant 0.000000e+00 : f32
    %276 = vector.broadcast %cst_98 : f32 to vector<2x34xf32>
    %277 = arith.maximumf %275, %276 : vector<2x34xf32>
    %278 = arith.maximumf %232, %247 : vector<2x34xf32>
    %279 = arith.maximumf %262, %277 : vector<2x34xf32>
    %280 = arith.maximumf %278, %279 : vector<2x34xf32>
    %c3_99 = arith.constant 3 : index
    %c0_100 = arith.constant 0 : index
    %c0_101 = arith.constant 0 : index
    %281 = vector.load %arg12[%c3_99, %c0_100, %c0_101] : memref<12x34x16xf32, #tpu.memory_space<vmem>>, vector<1x34x16xf32>
    %282 = vector.shape_cast %281 : vector<1x34x16xf32> to vector<34x16xf32>
    %cst_102 = arith.constant dense<0.000000e+00> : vector<2x16xf32>
    %283 = tpu.matmul %280, %282, %cst_102 {dimension_numbers = #tpu.dot_dimension_numbers<[1], [0], [0], [1], [0, 0, 1, 1], [], []>} : vector<2x34xf32>, vector<34x16xf32>, vector<2x16xf32> -> vector<2x16xf32>
    %284 = arith.addf %212, %283 : vector<2x16xf32>
    %c2_103 = arith.constant 2 : index
    %c0_104 = arith.constant 0 : index
    %285 = memref.load %arg10[%c2_103, %c0_104] : memref<4x4xf32, #tpu.memory_space<smem>>
    %c2_105 = arith.constant 2 : index
    %c1_106 = arith.constant 1 : index
    %286 = memref.load %arg10[%c2_105, %c1_106] : memref<4x4xf32, #tpu.memory_space<smem>>
    %c2_107 = arith.constant 2 : index
    %c2_108 = arith.constant 2 : index
    %287 = memref.load %arg10[%c2_107, %c2_108] : memref<4x4xf32, #tpu.memory_space<smem>>
    %c2_109 = arith.constant 2 : index
    %c3_110 = arith.constant 3 : index
    %288 = memref.load %arg10[%c2_109, %c3_110] : memref<4x4xf32, #tpu.memory_space<smem>>
    %c2_111 = arith.constant 2 : index
    %289 = memref.load %arg11[%c2_111] : memref<4xf32, #tpu.memory_space<smem>>
    %290 = vector.broadcast %285 : f32 to vector<2x34xf32>
    %291 = arith.mulf %290, %132 : vector<2x34xf32>
    %292 = vector.broadcast %286 : f32 to vector<2x34xf32>
    %293 = arith.mulf %292, %133 : vector<2x34xf32>
    %294 = arith.addf %291, %293 : vector<2x34xf32>
    %295 = vector.broadcast %287 : f32 to vector<2x34xf32>
    %296 = arith.mulf %295, %135 : vector<2x34xf32>
    %297 = arith.addf %294, %296 : vector<2x34xf32>
    %298 = vector.broadcast %288 : f32 to vector<2x34xf32>
    %299 = arith.mulf %298, %136 : vector<2x34xf32>
    %300 = arith.addf %297, %299 : vector<2x34xf32>
    %301 = vector.broadcast %289 : f32 to vector<2x34xf32>
    %302 = arith.addf %300, %301 : vector<2x34xf32>
    %cst_112 = arith.constant 0.000000e+00 : f32
    %303 = vector.broadcast %cst_112 : f32 to vector<2x34xf32>
    %304 = arith.maximumf %302, %303 : vector<2x34xf32>
    %305 = vector.broadcast %285 : f32 to vector<2x34xf32>
    %306 = arith.mulf %305, %133 : vector<2x34xf32>
    %307 = vector.broadcast %286 : f32 to vector<2x34xf32>
    %308 = arith.mulf %307, %134 : vector<2x34xf32>
    %309 = arith.addf %306, %308 : vector<2x34xf32>
    %310 = vector.broadcast %287 : f32 to vector<2x34xf32>
    %311 = arith.mulf %310, %136 : vector<2x34xf32>
    %312 = arith.addf %309, %311 : vector<2x34xf32>
    %313 = vector.broadcast %288 : f32 to vector<2x34xf32>
    %314 = arith.mulf %313, %137 : vector<2x34xf32>
    %315 = arith.addf %312, %314 : vector<2x34xf32>
    %316 = vector.broadcast %289 : f32 to vector<2x34xf32>
    %317 = arith.addf %315, %316 : vector<2x34xf32>
    %cst_113 = arith.constant 0.000000e+00 : f32
    %318 = vector.broadcast %cst_113 : f32 to vector<2x34xf32>
    %319 = arith.maximumf %317, %318 : vector<2x34xf32>
    %320 = vector.broadcast %285 : f32 to vector<2x34xf32>
    %321 = arith.mulf %320, %135 : vector<2x34xf32>
    %322 = vector.broadcast %286 : f32 to vector<2x34xf32>
    %323 = arith.mulf %322, %136 : vector<2x34xf32>
    %324 = arith.addf %321, %323 : vector<2x34xf32>
    %325 = vector.broadcast %287 : f32 to vector<2x34xf32>
    %326 = arith.mulf %325, %138 : vector<2x34xf32>
    %327 = arith.addf %324, %326 : vector<2x34xf32>
    %328 = vector.broadcast %288 : f32 to vector<2x34xf32>
    %329 = arith.mulf %328, %139 : vector<2x34xf32>
    %330 = arith.addf %327, %329 : vector<2x34xf32>
    %331 = vector.broadcast %289 : f32 to vector<2x34xf32>
    %332 = arith.addf %330, %331 : vector<2x34xf32>
    %cst_114 = arith.constant 0.000000e+00 : f32
    %333 = vector.broadcast %cst_114 : f32 to vector<2x34xf32>
    %334 = arith.maximumf %332, %333 : vector<2x34xf32>
    %335 = vector.broadcast %285 : f32 to vector<2x34xf32>
    %336 = arith.mulf %335, %136 : vector<2x34xf32>
    %337 = vector.broadcast %286 : f32 to vector<2x34xf32>
    %338 = arith.mulf %337, %137 : vector<2x34xf32>
    %339 = arith.addf %336, %338 : vector<2x34xf32>
    %340 = vector.broadcast %287 : f32 to vector<2x34xf32>
    %341 = arith.mulf %340, %139 : vector<2x34xf32>
    %342 = arith.addf %339, %341 : vector<2x34xf32>
    %343 = vector.broadcast %288 : f32 to vector<2x34xf32>
    %344 = arith.mulf %343, %140 : vector<2x34xf32>
    %345 = arith.addf %342, %344 : vector<2x34xf32>
    %346 = vector.broadcast %289 : f32 to vector<2x34xf32>
    %347 = arith.addf %345, %346 : vector<2x34xf32>
    %cst_115 = arith.constant 0.000000e+00 : f32
    %348 = vector.broadcast %cst_115 : f32 to vector<2x34xf32>
    %349 = arith.maximumf %347, %348 : vector<2x34xf32>
    %350 = arith.maximumf %304, %319 : vector<2x34xf32>
    %351 = arith.maximumf %334, %349 : vector<2x34xf32>
    %352 = arith.maximumf %350, %351 : vector<2x34xf32>
    %c6 = arith.constant 6 : index
    %c0_116 = arith.constant 0 : index
    %c0_117 = arith.constant 0 : index
    %353 = vector.load %arg12[%c6, %c0_116, %c0_117] : memref<12x34x16xf32, #tpu.memory_space<vmem>>, vector<1x34x16xf32>
    %354 = vector.shape_cast %353 : vector<1x34x16xf32> to vector<34x16xf32>
    %cst_118 = arith.constant dense<0.000000e+00> : vector<2x16xf32>
    %355 = tpu.matmul %352, %354, %cst_118 {dimension_numbers = #tpu.dot_dimension_numbers<[1], [0], [0], [1], [0, 0, 1, 1], [], []>} : vector<2x34xf32>, vector<34x16xf32>, vector<2x16xf32> -> vector<2x16xf32>
    %356 = arith.addf %284, %355 : vector<2x16xf32>
    %c3_119 = arith.constant 3 : index
    %c0_120 = arith.constant 0 : index
    %357 = memref.load %arg10[%c3_119, %c0_120] : memref<4x4xf32, #tpu.memory_space<smem>>
    %c3_121 = arith.constant 3 : index
    %c1_122 = arith.constant 1 : index
    %358 = memref.load %arg10[%c3_121, %c1_122] : memref<4x4xf32, #tpu.memory_space<smem>>
    %c3_123 = arith.constant 3 : index
    %c2_124 = arith.constant 2 : index
    %359 = memref.load %arg10[%c3_123, %c2_124] : memref<4x4xf32, #tpu.memory_space<smem>>
    %c3_125 = arith.constant 3 : index
    %c3_126 = arith.constant 3 : index
    %360 = memref.load %arg10[%c3_125, %c3_126] : memref<4x4xf32, #tpu.memory_space<smem>>
    %c3_127 = arith.constant 3 : index
    %361 = memref.load %arg11[%c3_127] : memref<4xf32, #tpu.memory_space<smem>>
    %362 = vector.broadcast %357 : f32 to vector<2x34xf32>
    %363 = arith.mulf %362, %132 : vector<2x34xf32>
    %364 = vector.broadcast %358 : f32 to vector<2x34xf32>
    %365 = arith.mulf %364, %133 : vector<2x34xf32>
    %366 = arith.addf %363, %365 : vector<2x34xf32>
    %367 = vector.broadcast %359 : f32 to vector<2x34xf32>
    %368 = arith.mulf %367, %135 : vector<2x34xf32>
    %369 = arith.addf %366, %368 : vector<2x34xf32>
    %370 = vector.broadcast %360 : f32 to vector<2x34xf32>
    %371 = arith.mulf %370, %136 : vector<2x34xf32>
    %372 = arith.addf %369, %371 : vector<2x34xf32>
    %373 = vector.broadcast %361 : f32 to vector<2x34xf32>
    %374 = arith.addf %372, %373 : vector<2x34xf32>
    %cst_128 = arith.constant 0.000000e+00 : f32
    %375 = vector.broadcast %cst_128 : f32 to vector<2x34xf32>
    %376 = arith.maximumf %374, %375 : vector<2x34xf32>
    %377 = vector.broadcast %357 : f32 to vector<2x34xf32>
    %378 = arith.mulf %377, %133 : vector<2x34xf32>
    %379 = vector.broadcast %358 : f32 to vector<2x34xf32>
    %380 = arith.mulf %379, %134 : vector<2x34xf32>
    %381 = arith.addf %378, %380 : vector<2x34xf32>
    %382 = vector.broadcast %359 : f32 to vector<2x34xf32>
    %383 = arith.mulf %382, %136 : vector<2x34xf32>
    %384 = arith.addf %381, %383 : vector<2x34xf32>
    %385 = vector.broadcast %360 : f32 to vector<2x34xf32>
    %386 = arith.mulf %385, %137 : vector<2x34xf32>
    %387 = arith.addf %384, %386 : vector<2x34xf32>
    %388 = vector.broadcast %361 : f32 to vector<2x34xf32>
    %389 = arith.addf %387, %388 : vector<2x34xf32>
    %cst_129 = arith.constant 0.000000e+00 : f32
    %390 = vector.broadcast %cst_129 : f32 to vector<2x34xf32>
    %391 = arith.maximumf %389, %390 : vector<2x34xf32>
    %392 = vector.broadcast %357 : f32 to vector<2x34xf32>
    %393 = arith.mulf %392, %135 : vector<2x34xf32>
    %394 = vector.broadcast %358 : f32 to vector<2x34xf32>
    %395 = arith.mulf %394, %136 : vector<2x34xf32>
    %396 = arith.addf %393, %395 : vector<2x34xf32>
    %397 = vector.broadcast %359 : f32 to vector<2x34xf32>
    %398 = arith.mulf %397, %138 : vector<2x34xf32>
    %399 = arith.addf %396, %398 : vector<2x34xf32>
    %400 = vector.broadcast %360 : f32 to vector<2x34xf32>
    %401 = arith.mulf %400, %139 : vector<2x34xf32>
    %402 = arith.addf %399, %401 : vector<2x34xf32>
    %403 = vector.broadcast %361 : f32 to vector<2x34xf32>
    %404 = arith.addf %402, %403 : vector<2x34xf32>
    %cst_130 = arith.constant 0.000000e+00 : f32
    %405 = vector.broadcast %cst_130 : f32 to vector<2x34xf32>
    %406 = arith.maximumf %404, %405 : vector<2x34xf32>
    %407 = vector.broadcast %357 : f32 to vector<2x34xf32>
    %408 = arith.mulf %407, %136 : vector<2x34xf32>
    %409 = vector.broadcast %358 : f32 to vector<2x34xf32>
    %410 = arith.mulf %409, %137 : vector<2x34xf32>
    %411 = arith.addf %408, %410 : vector<2x34xf32>
    %412 = vector.broadcast %359 : f32 to vector<2x34xf32>
    %413 = arith.mulf %412, %139 : vector<2x34xf32>
    %414 = arith.addf %411, %413 : vector<2x34xf32>
    %415 = vector.broadcast %360 : f32 to vector<2x34xf32>
    %416 = arith.mulf %415, %140 : vector<2x34xf32>
    %417 = arith.addf %414, %416 : vector<2x34xf32>
    %418 = vector.broadcast %361 : f32 to vector<2x34xf32>
    %419 = arith.addf %417, %418 : vector<2x34xf32>
    %cst_131 = arith.constant 0.000000e+00 : f32
    %420 = vector.broadcast %cst_131 : f32 to vector<2x34xf32>
    %421 = arith.maximumf %419, %420 : vector<2x34xf32>
    %422 = arith.maximumf %376, %391 : vector<2x34xf32>
    %423 = arith.maximumf %406, %421 : vector<2x34xf32>
    %424 = arith.maximumf %422, %423 : vector<2x34xf32>
    %c9 = arith.constant 9 : index
    %c0_132 = arith.constant 0 : index
    %c0_133 = arith.constant 0 : index
    %425 = vector.load %arg12[%c9, %c0_132, %c0_133] : memref<12x34x16xf32, #tpu.memory_space<vmem>>, vector<1x34x16xf32>
    %426 = vector.shape_cast %425 : vector<1x34x16xf32> to vector<34x16xf32>
    %cst_134 = arith.constant dense<0.000000e+00> : vector<2x16xf32>
    %427 = tpu.matmul %424, %426, %cst_134 {dimension_numbers = #tpu.dot_dimension_numbers<[1], [0], [0], [1], [0, 0, 1, 1], [], []>} : vector<2x34xf32>, vector<34x16xf32>, vector<2x16xf32> -> vector<2x16xf32>
    %428 = arith.addf %356, %427 : vector<2x16xf32>
    %c2_135 = arith.constant 2 : index
    %c0_136 = arith.constant 0 : index
    %c0_137 = arith.constant 0 : index
    %429 = vector.load %arg1[%c2_135, %c0_136, %c0_137] : memref<7x2x36xf32, #tpu.memory_space<vmem>>, vector<1x2x36xf32>
    %430 = vector.shape_cast %429 : vector<1x2x36xf32> to vector<2x36xf32>
    %c3_138 = arith.constant 3 : index
    %c0_139 = arith.constant 0 : index
    %c0_140 = arith.constant 0 : index
    %431 = vector.load %arg1[%c3_138, %c0_139, %c0_140] : memref<7x2x36xf32, #tpu.memory_space<vmem>>, vector<1x2x36xf32>
    %432 = vector.shape_cast %431 : vector<1x2x36xf32> to vector<2x36xf32>
    %c4 = arith.constant 4 : index
    %c0_141 = arith.constant 0 : index
    %c0_142 = arith.constant 0 : index
    %433 = vector.load %arg1[%c4, %c0_141, %c0_142] : memref<7x2x36xf32, #tpu.memory_space<vmem>>, vector<1x2x36xf32>
    %434 = vector.shape_cast %433 : vector<1x2x36xf32> to vector<2x36xf32>
    %435 = vector.extract_strided_slice %430 {offsets = [0, 0], sizes = [2, 34], strides = [1, 1]} : vector<2x36xf32> to vector<2x34xf32>
    %436 = vector.extract_strided_slice %430 {offsets = [0, 1], sizes = [2, 34], strides = [1, 1]} : vector<2x36xf32> to vector<2x34xf32>
    %437 = vector.extract_strided_slice %430 {offsets = [0, 2], sizes = [2, 34], strides = [1, 1]} : vector<2x36xf32> to vector<2x34xf32>
    %438 = vector.extract_strided_slice %432 {offsets = [0, 0], sizes = [2, 34], strides = [1, 1]} : vector<2x36xf32> to vector<2x34xf32>
    %439 = vector.extract_strided_slice %432 {offsets = [0, 1], sizes = [2, 34], strides = [1, 1]} : vector<2x36xf32> to vector<2x34xf32>
    %440 = vector.extract_strided_slice %432 {offsets = [0, 2], sizes = [2, 34], strides = [1, 1]} : vector<2x36xf32> to vector<2x34xf32>
    %441 = vector.extract_strided_slice %434 {offsets = [0, 0], sizes = [2, 34], strides = [1, 1]} : vector<2x36xf32> to vector<2x34xf32>
    %442 = vector.extract_strided_slice %434 {offsets = [0, 1], sizes = [2, 34], strides = [1, 1]} : vector<2x36xf32> to vector<2x34xf32>
    %443 = vector.extract_strided_slice %434 {offsets = [0, 2], sizes = [2, 34], strides = [1, 1]} : vector<2x36xf32> to vector<2x34xf32>
    %c0_143 = arith.constant 0 : index
    %c0_144 = arith.constant 0 : index
    %444 = memref.load %arg10[%c0_143, %c0_144] : memref<4x4xf32, #tpu.memory_space<smem>>
    %c0_145 = arith.constant 0 : index
    %c1_146 = arith.constant 1 : index
    %445 = memref.load %arg10[%c0_145, %c1_146] : memref<4x4xf32, #tpu.memory_space<smem>>
    %c0_147 = arith.constant 0 : index
    %c2_148 = arith.constant 2 : index
    %446 = memref.load %arg10[%c0_147, %c2_148] : memref<4x4xf32, #tpu.memory_space<smem>>
    %c0_149 = arith.constant 0 : index
    %c3_150 = arith.constant 3 : index
    %447 = memref.load %arg10[%c0_149, %c3_150] : memref<4x4xf32, #tpu.memory_space<smem>>
    %c0_151 = arith.constant 0 : index
    %448 = memref.load %arg11[%c0_151] : memref<4xf32, #tpu.memory_space<smem>>
    %449 = vector.broadcast %444 : f32 to vector<2x34xf32>
    %450 = arith.mulf %449, %435 : vector<2x34xf32>
    %451 = vector.broadcast %445 : f32 to vector<2x34xf32>
    %452 = arith.mulf %451, %436 : vector<2x34xf32>
    %453 = arith.addf %450, %452 : vector<2x34xf32>
    %454 = vector.broadcast %446 : f32 to vector<2x34xf32>
    %455 = arith.mulf %454, %438 : vector<2x34xf32>
    %456 = arith.addf %453, %455 : vector<2x34xf32>
    %457 = vector.broadcast %447 : f32 to vector<2x34xf32>
    %458 = arith.mulf %457, %439 : vector<2x34xf32>
    %459 = arith.addf %456, %458 : vector<2x34xf32>
    %460 = vector.broadcast %448 : f32 to vector<2x34xf32>
    %461 = arith.addf %459, %460 : vector<2x34xf32>
    %cst_152 = arith.constant 0.000000e+00 : f32
    %462 = vector.broadcast %cst_152 : f32 to vector<2x34xf32>
    %463 = arith.maximumf %461, %462 : vector<2x34xf32>
    %464 = vector.broadcast %444 : f32 to vector<2x34xf32>
    %465 = arith.mulf %464, %436 : vector<2x34xf32>
    %466 = vector.broadcast %445 : f32 to vector<2x34xf32>
    %467 = arith.mulf %466, %437 : vector<2x34xf32>
    %468 = arith.addf %465, %467 : vector<2x34xf32>
    %469 = vector.broadcast %446 : f32 to vector<2x34xf32>
    %470 = arith.mulf %469, %439 : vector<2x34xf32>
    %471 = arith.addf %468, %470 : vector<2x34xf32>
    %472 = vector.broadcast %447 : f32 to vector<2x34xf32>
    %473 = arith.mulf %472, %440 : vector<2x34xf32>
    %474 = arith.addf %471, %473 : vector<2x34xf32>
    %475 = vector.broadcast %448 : f32 to vector<2x34xf32>
    %476 = arith.addf %474, %475 : vector<2x34xf32>
    %cst_153 = arith.constant 0.000000e+00 : f32
    %477 = vector.broadcast %cst_153 : f32 to vector<2x34xf32>
    %478 = arith.maximumf %476, %477 : vector<2x34xf32>
    %479 = vector.broadcast %444 : f32 to vector<2x34xf32>
    %480 = arith.mulf %479, %438 : vector<2x34xf32>
    %481 = vector.broadcast %445 : f32 to vector<2x34xf32>
    %482 = arith.mulf %481, %439 : vector<2x34xf32>
    %483 = arith.addf %480, %482 : vector<2x34xf32>
    %484 = vector.broadcast %446 : f32 to vector<2x34xf32>
    %485 = arith.mulf %484, %441 : vector<2x34xf32>
    %486 = arith.addf %483, %485 : vector<2x34xf32>
    %487 = vector.broadcast %447 : f32 to vector<2x34xf32>
    %488 = arith.mulf %487, %442 : vector<2x34xf32>
    %489 = arith.addf %486, %488 : vector<2x34xf32>
    %490 = vector.broadcast %448 : f32 to vector<2x34xf32>
    %491 = arith.addf %489, %490 : vector<2x34xf32>
    %cst_154 = arith.constant 0.000000e+00 : f32
    %492 = vector.broadcast %cst_154 : f32 to vector<2x34xf32>
    %493 = arith.maximumf %491, %492 : vector<2x34xf32>
    %494 = vector.broadcast %444 : f32 to vector<2x34xf32>
    %495 = arith.mulf %494, %439 : vector<2x34xf32>
    %496 = vector.broadcast %445 : f32 to vector<2x34xf32>
    %497 = arith.mulf %496, %440 : vector<2x34xf32>
    %498 = arith.addf %495, %497 : vector<2x34xf32>
    %499 = vector.broadcast %446 : f32 to vector<2x34xf32>
    %500 = arith.mulf %499, %442 : vector<2x34xf32>
    %501 = arith.addf %498, %500 : vector<2x34xf32>
    %502 = vector.broadcast %447 : f32 to vector<2x34xf32>
    %503 = arith.mulf %502, %443 : vector<2x34xf32>
    %504 = arith.addf %501, %503 : vector<2x34xf32>
    %505 = vector.broadcast %448 : f32 to vector<2x34xf32>
    %506 = arith.addf %504, %505 : vector<2x34xf32>
    %cst_155 = arith.constant 0.000000e+00 : f32
    %507 = vector.broadcast %cst_155 : f32 to vector<2x34xf32>
    %508 = arith.maximumf %506, %507 : vector<2x34xf32>
    %509 = arith.maximumf %463, %478 : vector<2x34xf32>
    %510 = arith.maximumf %493, %508 : vector<2x34xf32>
    %511 = arith.maximumf %509, %510 : vector<2x34xf32>
    %c1_156 = arith.constant 1 : index
    %c0_157 = arith.constant 0 : index
    %c0_158 = arith.constant 0 : index
    %512 = vector.load %arg12[%c1_156, %c0_157, %c0_158] : memref<12x34x16xf32, #tpu.memory_space<vmem>>, vector<1x34x16xf32>
    %513 = vector.shape_cast %512 : vector<1x34x16xf32> to vector<34x16xf32>
    %cst_159 = arith.constant dense<0.000000e+00> : vector<2x16xf32>
    %514 = tpu.matmul %511, %513, %cst_159 {dimension_numbers = #tpu.dot_dimension_numbers<[1], [0], [0], [1], [0, 0, 1, 1], [], []>} : vector<2x34xf32>, vector<34x16xf32>, vector<2x16xf32> -> vector<2x16xf32>
    %515 = arith.addf %428, %514 : vector<2x16xf32>
    %c1_160 = arith.constant 1 : index
    %c0_161 = arith.constant 0 : index
    %516 = memref.load %arg10[%c1_160, %c0_161] : memref<4x4xf32, #tpu.memory_space<smem>>
    %c1_162 = arith.constant 1 : index
    %c1_163 = arith.constant 1 : index
    %517 = memref.load %arg10[%c1_162, %c1_163] : memref<4x4xf32, #tpu.memory_space<smem>>
    %c1_164 = arith.constant 1 : index
    %c2_165 = arith.constant 2 : index
    %518 = memref.load %arg10[%c1_164, %c2_165] : memref<4x4xf32, #tpu.memory_space<smem>>
    %c1_166 = arith.constant 1 : index
    %c3_167 = arith.constant 3 : index
    %519 = memref.load %arg10[%c1_166, %c3_167] : memref<4x4xf32, #tpu.memory_space<smem>>
    %c1_168 = arith.constant 1 : index
    %520 = memref.load %arg11[%c1_168] : memref<4xf32, #tpu.memory_space<smem>>
    %521 = vector.broadcast %516 : f32 to vector<2x34xf32>
    %522 = arith.mulf %521, %435 : vector<2x34xf32>
    %523 = vector.broadcast %517 : f32 to vector<2x34xf32>
    %524 = arith.mulf %523, %436 : vector<2x34xf32>
    %525 = arith.addf %522, %524 : vector<2x34xf32>
    %526 = vector.broadcast %518 : f32 to vector<2x34xf32>
    %527 = arith.mulf %526, %438 : vector<2x34xf32>
    %528 = arith.addf %525, %527 : vector<2x34xf32>
    %529 = vector.broadcast %519 : f32 to vector<2x34xf32>
    %530 = arith.mulf %529, %439 : vector<2x34xf32>
    %531 = arith.addf %528, %530 : vector<2x34xf32>
    %532 = vector.broadcast %520 : f32 to vector<2x34xf32>
    %533 = arith.addf %531, %532 : vector<2x34xf32>
    %cst_169 = arith.constant 0.000000e+00 : f32
    %534 = vector.broadcast %cst_169 : f32 to vector<2x34xf32>
    %535 = arith.maximumf %533, %534 : vector<2x34xf32>
    %536 = vector.broadcast %516 : f32 to vector<2x34xf32>
    %537 = arith.mulf %536, %436 : vector<2x34xf32>
    %538 = vector.broadcast %517 : f32 to vector<2x34xf32>
    %539 = arith.mulf %538, %437 : vector<2x34xf32>
    %540 = arith.addf %537, %539 : vector<2x34xf32>
    %541 = vector.broadcast %518 : f32 to vector<2x34xf32>
    %542 = arith.mulf %541, %439 : vector<2x34xf32>
    %543 = arith.addf %540, %542 : vector<2x34xf32>
    %544 = vector.broadcast %519 : f32 to vector<2x34xf32>
    %545 = arith.mulf %544, %440 : vector<2x34xf32>
    %546 = arith.addf %543, %545 : vector<2x34xf32>
    %547 = vector.broadcast %520 : f32 to vector<2x34xf32>
    %548 = arith.addf %546, %547 : vector<2x34xf32>
    %cst_170 = arith.constant 0.000000e+00 : f32
    %549 = vector.broadcast %cst_170 : f32 to vector<2x34xf32>
    %550 = arith.maximumf %548, %549 : vector<2x34xf32>
    %551 = vector.broadcast %516 : f32 to vector<2x34xf32>
    %552 = arith.mulf %551, %438 : vector<2x34xf32>
    %553 = vector.broadcast %517 : f32 to vector<2x34xf32>
    %554 = arith.mulf %553, %439 : vector<2x34xf32>
    %555 = arith.addf %552, %554 : vector<2x34xf32>
    %556 = vector.broadcast %518 : f32 to vector<2x34xf32>
    %557 = arith.mulf %556, %441 : vector<2x34xf32>
    %558 = arith.addf %555, %557 : vector<2x34xf32>
    %559 = vector.broadcast %519 : f32 to vector<2x34xf32>
    %560 = arith.mulf %559, %442 : vector<2x34xf32>
    %561 = arith.addf %558, %560 : vector<2x34xf32>
    %562 = vector.broadcast %520 : f32 to vector<2x34xf32>
    %563 = arith.addf %561, %562 : vector<2x34xf32>
    %cst_171 = arith.constant 0.000000e+00 : f32
    %564 = vector.broadcast %cst_171 : f32 to vector<2x34xf32>
    %565 = arith.maximumf %563, %564 : vector<2x34xf32>
    %566 = vector.broadcast %516 : f32 to vector<2x34xf32>
    %567 = arith.mulf %566, %439 : vector<2x34xf32>
    %568 = vector.broadcast %517 : f32 to vector<2x34xf32>
    %569 = arith.mulf %568, %440 : vector<2x34xf32>
    %570 = arith.addf %567, %569 : vector<2x34xf32>
    %571 = vector.broadcast %518 : f32 to vector<2x34xf32>
    %572 = arith.mulf %571, %442 : vector<2x34xf32>
    %573 = arith.addf %570, %572 : vector<2x34xf32>
    %574 = vector.broadcast %519 : f32 to vector<2x34xf32>
    %575 = arith.mulf %574, %443 : vector<2x34xf32>
    %576 = arith.addf %573, %575 : vector<2x34xf32>
    %577 = vector.broadcast %520 : f32 to vector<2x34xf32>
    %578 = arith.addf %576, %577 : vector<2x34xf32>
    %cst_172 = arith.constant 0.000000e+00 : f32
    %579 = vector.broadcast %cst_172 : f32 to vector<2x34xf32>
    %580 = arith.maximumf %578, %579 : vector<2x34xf32>
    %581 = arith.maximumf %535, %550 : vector<2x34xf32>
    %582 = arith.maximumf %565, %580 : vector<2x34xf32>
    %583 = arith.maximumf %581, %582 : vector<2x34xf32>
    %c4_173 = arith.constant 4 : index
    %c0_174 = arith.constant 0 : index
    %c0_175 = arith.constant 0 : index
    %584 = vector.load %arg12[%c4_173, %c0_174, %c0_175] : memref<12x34x16xf32, #tpu.memory_space<vmem>>, vector<1x34x16xf32>
    %585 = vector.shape_cast %584 : vector<1x34x16xf32> to vector<34x16xf32>
    %cst_176 = arith.constant dense<0.000000e+00> : vector<2x16xf32>
    %586 = tpu.matmul %583, %585, %cst_176 {dimension_numbers = #tpu.dot_dimension_numbers<[1], [0], [0], [1], [0, 0, 1, 1], [], []>} : vector<2x34xf32>, vector<34x16xf32>, vector<2x16xf32> -> vector<2x16xf32>
    %587 = arith.addf %515, %586 : vector<2x16xf32>
    %c2_177 = arith.constant 2 : index
    %c0_178 = arith.constant 0 : index
    %588 = memref.load %arg10[%c2_177, %c0_178] : memref<4x4xf32, #tpu.memory_space<smem>>
    %c2_179 = arith.constant 2 : index
    %c1_180 = arith.constant 1 : index
    %589 = memref.load %arg10[%c2_179, %c1_180] : memref<4x4xf32, #tpu.memory_space<smem>>
    %c2_181 = arith.constant 2 : index
    %c2_182 = arith.constant 2 : index
    %590 = memref.load %arg10[%c2_181, %c2_182] : memref<4x4xf32, #tpu.memory_space<smem>>
    %c2_183 = arith.constant 2 : index
    %c3_184 = arith.constant 3 : index
    %591 = memref.load %arg10[%c2_183, %c3_184] : memref<4x4xf32, #tpu.memory_space<smem>>
    %c2_185 = arith.constant 2 : index
    %592 = memref.load %arg11[%c2_185] : memref<4xf32, #tpu.memory_space<smem>>
    %593 = vector.broadcast %588 : f32 to vector<2x34xf32>
    %594 = arith.mulf %593, %435 : vector<2x34xf32>
    %595 = vector.broadcast %589 : f32 to vector<2x34xf32>
    %596 = arith.mulf %595, %436 : vector<2x34xf32>
    %597 = arith.addf %594, %596 : vector<2x34xf32>
    %598 = vector.broadcast %590 : f32 to vector<2x34xf32>
    %599 = arith.mulf %598, %438 : vector<2x34xf32>
    %600 = arith.addf %597, %599 : vector<2x34xf32>
    %601 = vector.broadcast %591 : f32 to vector<2x34xf32>
    %602 = arith.mulf %601, %439 : vector<2x34xf32>
    %603 = arith.addf %600, %602 : vector<2x34xf32>
    %604 = vector.broadcast %592 : f32 to vector<2x34xf32>
    %605 = arith.addf %603, %604 : vector<2x34xf32>
    %cst_186 = arith.constant 0.000000e+00 : f32
    %606 = vector.broadcast %cst_186 : f32 to vector<2x34xf32>
    %607 = arith.maximumf %605, %606 : vector<2x34xf32>
    %608 = vector.broadcast %588 : f32 to vector<2x34xf32>
    %609 = arith.mulf %608, %436 : vector<2x34xf32>
    %610 = vector.broadcast %589 : f32 to vector<2x34xf32>
    %611 = arith.mulf %610, %437 : vector<2x34xf32>
    %612 = arith.addf %609, %611 : vector<2x34xf32>
    %613 = vector.broadcast %590 : f32 to vector<2x34xf32>
    %614 = arith.mulf %613, %439 : vector<2x34xf32>
    %615 = arith.addf %612, %614 : vector<2x34xf32>
    %616 = vector.broadcast %591 : f32 to vector<2x34xf32>
    %617 = arith.mulf %616, %440 : vector<2x34xf32>
    %618 = arith.addf %615, %617 : vector<2x34xf32>
    %619 = vector.broadcast %592 : f32 to vector<2x34xf32>
    %620 = arith.addf %618, %619 : vector<2x34xf32>
    %cst_187 = arith.constant 0.000000e+00 : f32
    %621 = vector.broadcast %cst_187 : f32 to vector<2x34xf32>
    %622 = arith.maximumf %620, %621 : vector<2x34xf32>
    %623 = vector.broadcast %588 : f32 to vector<2x34xf32>
    %624 = arith.mulf %623, %438 : vector<2x34xf32>
    %625 = vector.broadcast %589 : f32 to vector<2x34xf32>
    %626 = arith.mulf %625, %439 : vector<2x34xf32>
    %627 = arith.addf %624, %626 : vector<2x34xf32>
    %628 = vector.broadcast %590 : f32 to vector<2x34xf32>
    %629 = arith.mulf %628, %441 : vector<2x34xf32>
    %630 = arith.addf %627, %629 : vector<2x34xf32>
    %631 = vector.broadcast %591 : f32 to vector<2x34xf32>
    %632 = arith.mulf %631, %442 : vector<2x34xf32>
    %633 = arith.addf %630, %632 : vector<2x34xf32>
    %634 = vector.broadcast %592 : f32 to vector<2x34xf32>
    %635 = arith.addf %633, %634 : vector<2x34xf32>
    %cst_188 = arith.constant 0.000000e+00 : f32
    %636 = vector.broadcast %cst_188 : f32 to vector<2x34xf32>
    %637 = arith.maximumf %635, %636 : vector<2x34xf32>
    %638 = vector.broadcast %588 : f32 to vector<2x34xf32>
    %639 = arith.mulf %638, %439 : vector<2x34xf32>
    %640 = vector.broadcast %589 : f32 to vector<2x34xf32>
    %641 = arith.mulf %640, %440 : vector<2x34xf32>
    %642 = arith.addf %639, %641 : vector<2x34xf32>
    %643 = vector.broadcast %590 : f32 to vector<2x34xf32>
    %644 = arith.mulf %643, %442 : vector<2x34xf32>
    %645 = arith.addf %642, %644 : vector<2x34xf32>
    %646 = vector.broadcast %591 : f32 to vector<2x34xf32>
    %647 = arith.mulf %646, %443 : vector<2x34xf32>
    %648 = arith.addf %645, %647 : vector<2x34xf32>
    %649 = vector.broadcast %592 : f32 to vector<2x34xf32>
    %650 = arith.addf %648, %649 : vector<2x34xf32>
    %cst_189 = arith.constant 0.000000e+00 : f32
    %651 = vector.broadcast %cst_189 : f32 to vector<2x34xf32>
    %652 = arith.maximumf %650, %651 : vector<2x34xf32>
    %653 = arith.maximumf %607, %622 : vector<2x34xf32>
    %654 = arith.maximumf %637, %652 : vector<2x34xf32>
    %655 = arith.maximumf %653, %654 : vector<2x34xf32>
    %c7 = arith.constant 7 : index
    %c0_190 = arith.constant 0 : index
    %c0_191 = arith.constant 0 : index
    %656 = vector.load %arg12[%c7, %c0_190, %c0_191] : memref<12x34x16xf32, #tpu.memory_space<vmem>>, vector<1x34x16xf32>
    %657 = vector.shape_cast %656 : vector<1x34x16xf32> to vector<34x16xf32>
    %cst_192 = arith.constant dense<0.000000e+00> : vector<2x16xf32>
    %658 = tpu.matmul %655, %657, %cst_192 {dimension_numbers = #tpu.dot_dimension_numbers<[1], [0], [0], [1], [0, 0, 1, 1], [], []>} : vector<2x34xf32>, vector<34x16xf32>, vector<2x16xf32> -> vector<2x16xf32>
    %659 = arith.addf %587, %658 : vector<2x16xf32>
    %c3_193 = arith.constant 3 : index
    %c0_194 = arith.constant 0 : index
    %660 = memref.load %arg10[%c3_193, %c0_194] : memref<4x4xf32, #tpu.memory_space<smem>>
    %c3_195 = arith.constant 3 : index
    %c1_196 = arith.constant 1 : index
    %661 = memref.load %arg10[%c3_195, %c1_196] : memref<4x4xf32, #tpu.memory_space<smem>>
    %c3_197 = arith.constant 3 : index
    %c2_198 = arith.constant 2 : index
    %662 = memref.load %arg10[%c3_197, %c2_198] : memref<4x4xf32, #tpu.memory_space<smem>>
    %c3_199 = arith.constant 3 : index
    %c3_200 = arith.constant 3 : index
    %663 = memref.load %arg10[%c3_199, %c3_200] : memref<4x4xf32, #tpu.memory_space<smem>>
    %c3_201 = arith.constant 3 : index
    %664 = memref.load %arg11[%c3_201] : memref<4xf32, #tpu.memory_space<smem>>
    %665 = vector.broadcast %660 : f32 to vector<2x34xf32>
    %666 = arith.mulf %665, %435 : vector<2x34xf32>
    %667 = vector.broadcast %661 : f32 to vector<2x34xf32>
    %668 = arith.mulf %667, %436 : vector<2x34xf32>
    %669 = arith.addf %666, %668 : vector<2x34xf32>
    %670 = vector.broadcast %662 : f32 to vector<2x34xf32>
    %671 = arith.mulf %670, %438 : vector<2x34xf32>
    %672 = arith.addf %669, %671 : vector<2x34xf32>
    %673 = vector.broadcast %663 : f32 to vector<2x34xf32>
    %674 = arith.mulf %673, %439 : vector<2x34xf32>
    %675 = arith.addf %672, %674 : vector<2x34xf32>
    %676 = vector.broadcast %664 : f32 to vector<2x34xf32>
    %677 = arith.addf %675, %676 : vector<2x34xf32>
    %cst_202 = arith.constant 0.000000e+00 : f32
    %678 = vector.broadcast %cst_202 : f32 to vector<2x34xf32>
    %679 = arith.maximumf %677, %678 : vector<2x34xf32>
    %680 = vector.broadcast %660 : f32 to vector<2x34xf32>
    %681 = arith.mulf %680, %436 : vector<2x34xf32>
    %682 = vector.broadcast %661 : f32 to vector<2x34xf32>
    %683 = arith.mulf %682, %437 : vector<2x34xf32>
    %684 = arith.addf %681, %683 : vector<2x34xf32>
    %685 = vector.broadcast %662 : f32 to vector<2x34xf32>
    %686 = arith.mulf %685, %439 : vector<2x34xf32>
    %687 = arith.addf %684, %686 : vector<2x34xf32>
    %688 = vector.broadcast %663 : f32 to vector<2x34xf32>
    %689 = arith.mulf %688, %440 : vector<2x34xf32>
    %690 = arith.addf %687, %689 : vector<2x34xf32>
    %691 = vector.broadcast %664 : f32 to vector<2x34xf32>
    %692 = arith.addf %690, %691 : vector<2x34xf32>
    %cst_203 = arith.constant 0.000000e+00 : f32
    %693 = vector.broadcast %cst_203 : f32 to vector<2x34xf32>
    %694 = arith.maximumf %692, %693 : vector<2x34xf32>
    %695 = vector.broadcast %660 : f32 to vector<2x34xf32>
    %696 = arith.mulf %695, %438 : vector<2x34xf32>
    %697 = vector.broadcast %661 : f32 to vector<2x34xf32>
    %698 = arith.mulf %697, %439 : vector<2x34xf32>
    %699 = arith.addf %696, %698 : vector<2x34xf32>
    %700 = vector.broadcast %662 : f32 to vector<2x34xf32>
    %701 = arith.mulf %700, %441 : vector<2x34xf32>
    %702 = arith.addf %699, %701 : vector<2x34xf32>
    %703 = vector.broadcast %663 : f32 to vector<2x34xf32>
    %704 = arith.mulf %703, %442 : vector<2x34xf32>
    %705 = arith.addf %702, %704 : vector<2x34xf32>
    %706 = vector.broadcast %664 : f32 to vector<2x34xf32>
    %707 = arith.addf %705, %706 : vector<2x34xf32>
    %cst_204 = arith.constant 0.000000e+00 : f32
    %708 = vector.broadcast %cst_204 : f32 to vector<2x34xf32>
    %709 = arith.maximumf %707, %708 : vector<2x34xf32>
    %710 = vector.broadcast %660 : f32 to vector<2x34xf32>
    %711 = arith.mulf %710, %439 : vector<2x34xf32>
    %712 = vector.broadcast %661 : f32 to vector<2x34xf32>
    %713 = arith.mulf %712, %440 : vector<2x34xf32>
    %714 = arith.addf %711, %713 : vector<2x34xf32>
    %715 = vector.broadcast %662 : f32 to vector<2x34xf32>
    %716 = arith.mulf %715, %442 : vector<2x34xf32>
    %717 = arith.addf %714, %716 : vector<2x34xf32>
    %718 = vector.broadcast %663 : f32 to vector<2x34xf32>
    %719 = arith.mulf %718, %443 : vector<2x34xf32>
    %720 = arith.addf %717, %719 : vector<2x34xf32>
    %721 = vector.broadcast %664 : f32 to vector<2x34xf32>
    %722 = arith.addf %720, %721 : vector<2x34xf32>
    %cst_205 = arith.constant 0.000000e+00 : f32
    %723 = vector.broadcast %cst_205 : f32 to vector<2x34xf32>
    %724 = arith.maximumf %722, %723 : vector<2x34xf32>
    %725 = arith.maximumf %679, %694 : vector<2x34xf32>
    %726 = arith.maximumf %709, %724 : vector<2x34xf32>
    %727 = arith.maximumf %725, %726 : vector<2x34xf32>
    %c10 = arith.constant 10 : index
    %c0_206 = arith.constant 0 : index
    %c0_207 = arith.constant 0 : index
    %728 = vector.load %arg12[%c10, %c0_206, %c0_207] : memref<12x34x16xf32, #tpu.memory_space<vmem>>, vector<1x34x16xf32>
    %729 = vector.shape_cast %728 : vector<1x34x16xf32> to vector<34x16xf32>
    %cst_208 = arith.constant dense<0.000000e+00> : vector<2x16xf32>
    %730 = tpu.matmul %727, %729, %cst_208 {dimension_numbers = #tpu.dot_dimension_numbers<[1], [0], [0], [1], [0, 0, 1, 1], [], []>} : vector<2x34xf32>, vector<34x16xf32>, vector<2x16xf32> -> vector<2x16xf32>
    %731 = arith.addf %659, %730 : vector<2x16xf32>
    %c4_209 = arith.constant 4 : index
    %c0_210 = arith.constant 0 : index
    %c0_211 = arith.constant 0 : index
    %732 = vector.load %arg1[%c4_209, %c0_210, %c0_211] : memref<7x2x36xf32, #tpu.memory_space<vmem>>, vector<1x2x36xf32>
    %733 = vector.shape_cast %732 : vector<1x2x36xf32> to vector<2x36xf32>
    %c5 = arith.constant 5 : index
    %c0_212 = arith.constant 0 : index
    %c0_213 = arith.constant 0 : index
    %734 = vector.load %arg1[%c5, %c0_212, %c0_213] : memref<7x2x36xf32, #tpu.memory_space<vmem>>, vector<1x2x36xf32>
    %735 = vector.shape_cast %734 : vector<1x2x36xf32> to vector<2x36xf32>
    %c6_214 = arith.constant 6 : index
    %c0_215 = arith.constant 0 : index
    %c0_216 = arith.constant 0 : index
    %736 = vector.load %arg1[%c6_214, %c0_215, %c0_216] : memref<7x2x36xf32, #tpu.memory_space<vmem>>, vector<1x2x36xf32>
    %737 = vector.shape_cast %736 : vector<1x2x36xf32> to vector<2x36xf32>
    %738 = vector.extract_strided_slice %733 {offsets = [0, 0], sizes = [2, 34], strides = [1, 1]} : vector<2x36xf32> to vector<2x34xf32>
    %739 = vector.extract_strided_slice %733 {offsets = [0, 1], sizes = [2, 34], strides = [1, 1]} : vector<2x36xf32> to vector<2x34xf32>
    %740 = vector.extract_strided_slice %733 {offsets = [0, 2], sizes = [2, 34], strides = [1, 1]} : vector<2x36xf32> to vector<2x34xf32>
    %741 = vector.extract_strided_slice %735 {offsets = [0, 0], sizes = [2, 34], strides = [1, 1]} : vector<2x36xf32> to vector<2x34xf32>
    %742 = vector.extract_strided_slice %735 {offsets = [0, 1], sizes = [2, 34], strides = [1, 1]} : vector<2x36xf32> to vector<2x34xf32>
    %743 = vector.extract_strided_slice %735 {offsets = [0, 2], sizes = [2, 34], strides = [1, 1]} : vector<2x36xf32> to vector<2x34xf32>
    %744 = vector.extract_strided_slice %737 {offsets = [0, 0], sizes = [2, 34], strides = [1, 1]} : vector<2x36xf32> to vector<2x34xf32>
    %745 = vector.extract_strided_slice %737 {offsets = [0, 1], sizes = [2, 34], strides = [1, 1]} : vector<2x36xf32> to vector<2x34xf32>
    %746 = vector.extract_strided_slice %737 {offsets = [0, 2], sizes = [2, 34], strides = [1, 1]} : vector<2x36xf32> to vector<2x34xf32>
    %c0_217 = arith.constant 0 : index
    %c0_218 = arith.constant 0 : index
    %747 = memref.load %arg10[%c0_217, %c0_218] : memref<4x4xf32, #tpu.memory_space<smem>>
    %c0_219 = arith.constant 0 : index
    %c1_220 = arith.constant 1 : index
    %748 = memref.load %arg10[%c0_219, %c1_220] : memref<4x4xf32, #tpu.memory_space<smem>>
    %c0_221 = arith.constant 0 : index
    %c2_222 = arith.constant 2 : index
    %749 = memref.load %arg10[%c0_221, %c2_222] : memref<4x4xf32, #tpu.memory_space<smem>>
    %c0_223 = arith.constant 0 : index
    %c3_224 = arith.constant 3 : index
    %750 = memref.load %arg10[%c0_223, %c3_224] : memref<4x4xf32, #tpu.memory_space<smem>>
    %c0_225 = arith.constant 0 : index
    %751 = memref.load %arg11[%c0_225] : memref<4xf32, #tpu.memory_space<smem>>
    %752 = vector.broadcast %747 : f32 to vector<2x34xf32>
    %753 = arith.mulf %752, %738 : vector<2x34xf32>
    %754 = vector.broadcast %748 : f32 to vector<2x34xf32>
    %755 = arith.mulf %754, %739 : vector<2x34xf32>
    %756 = arith.addf %753, %755 : vector<2x34xf32>
    %757 = vector.broadcast %749 : f32 to vector<2x34xf32>
    %758 = arith.mulf %757, %741 : vector<2x34xf32>
    %759 = arith.addf %756, %758 : vector<2x34xf32>
    %760 = vector.broadcast %750 : f32 to vector<2x34xf32>
    %761 = arith.mulf %760, %742 : vector<2x34xf32>
    %762 = arith.addf %759, %761 : vector<2x34xf32>
    %763 = vector.broadcast %751 : f32 to vector<2x34xf32>
    %764 = arith.addf %762, %763 : vector<2x34xf32>
    %cst_226 = arith.constant 0.000000e+00 : f32
    %765 = vector.broadcast %cst_226 : f32 to vector<2x34xf32>
    %766 = arith.maximumf %764, %765 : vector<2x34xf32>
    %767 = vector.broadcast %747 : f32 to vector<2x34xf32>
    %768 = arith.mulf %767, %739 : vector<2x34xf32>
    %769 = vector.broadcast %748 : f32 to vector<2x34xf32>
    %770 = arith.mulf %769, %740 : vector<2x34xf32>
    %771 = arith.addf %768, %770 : vector<2x34xf32>
    %772 = vector.broadcast %749 : f32 to vector<2x34xf32>
    %773 = arith.mulf %772, %742 : vector<2x34xf32>
    %774 = arith.addf %771, %773 : vector<2x34xf32>
    %775 = vector.broadcast %750 : f32 to vector<2x34xf32>
    %776 = arith.mulf %775, %743 : vector<2x34xf32>
    %777 = arith.addf %774, %776 : vector<2x34xf32>
    %778 = vector.broadcast %751 : f32 to vector<2x34xf32>
    %779 = arith.addf %777, %778 : vector<2x34xf32>
    %cst_227 = arith.constant 0.000000e+00 : f32
    %780 = vector.broadcast %cst_227 : f32 to vector<2x34xf32>
    %781 = arith.maximumf %779, %780 : vector<2x34xf32>
    %782 = vector.broadcast %747 : f32 to vector<2x34xf32>
    %783 = arith.mulf %782, %741 : vector<2x34xf32>
    %784 = vector.broadcast %748 : f32 to vector<2x34xf32>
    %785 = arith.mulf %784, %742 : vector<2x34xf32>
    %786 = arith.addf %783, %785 : vector<2x34xf32>
    %787 = vector.broadcast %749 : f32 to vector<2x34xf32>
    %788 = arith.mulf %787, %744 : vector<2x34xf32>
    %789 = arith.addf %786, %788 : vector<2x34xf32>
    %790 = vector.broadcast %750 : f32 to vector<2x34xf32>
    %791 = arith.mulf %790, %745 : vector<2x34xf32>
    %792 = arith.addf %789, %791 : vector<2x34xf32>
    %793 = vector.broadcast %751 : f32 to vector<2x34xf32>
    %794 = arith.addf %792, %793 : vector<2x34xf32>
    %cst_228 = arith.constant 0.000000e+00 : f32
    %795 = vector.broadcast %cst_228 : f32 to vector<2x34xf32>
    %796 = arith.maximumf %794, %795 : vector<2x34xf32>
    %797 = vector.broadcast %747 : f32 to vector<2x34xf32>
    %798 = arith.mulf %797, %742 : vector<2x34xf32>
    %799 = vector.broadcast %748 : f32 to vector<2x34xf32>
    %800 = arith.mulf %799, %743 : vector<2x34xf32>
    %801 = arith.addf %798, %800 : vector<2x34xf32>
    %802 = vector.broadcast %749 : f32 to vector<2x34xf32>
    %803 = arith.mulf %802, %745 : vector<2x34xf32>
    %804 = arith.addf %801, %803 : vector<2x34xf32>
    %805 = vector.broadcast %750 : f32 to vector<2x34xf32>
    %806 = arith.mulf %805, %746 : vector<2x34xf32>
    %807 = arith.addf %804, %806 : vector<2x34xf32>
    %808 = vector.broadcast %751 : f32 to vector<2x34xf32>
    %809 = arith.addf %807, %808 : vector<2x34xf32>
    %cst_229 = arith.constant 0.000000e+00 : f32
    %810 = vector.broadcast %cst_229 : f32 to vector<2x34xf32>
    %811 = arith.maximumf %809, %810 : vector<2x34xf32>
    %812 = arith.maximumf %766, %781 : vector<2x34xf32>
    %813 = arith.maximumf %796, %811 : vector<2x34xf32>
    %814 = arith.maximumf %812, %813 : vector<2x34xf32>
    %c2_230 = arith.constant 2 : index
    %c0_231 = arith.constant 0 : index
    %c0_232 = arith.constant 0 : index
    %815 = vector.load %arg12[%c2_230, %c0_231, %c0_232] : memref<12x34x16xf32, #tpu.memory_space<vmem>>, vector<1x34x16xf32>
    %816 = vector.shape_cast %815 : vector<1x34x16xf32> to vector<34x16xf32>
    %cst_233 = arith.constant dense<0.000000e+00> : vector<2x16xf32>
    %817 = tpu.matmul %814, %816, %cst_233 {dimension_numbers = #tpu.dot_dimension_numbers<[1], [0], [0], [1], [0, 0, 1, 1], [], []>} : vector<2x34xf32>, vector<34x16xf32>, vector<2x16xf32> -> vector<2x16xf32>
    %818 = arith.addf %731, %817 : vector<2x16xf32>
    %c1_234 = arith.constant 1 : index
    %c0_235 = arith.constant 0 : index
    %819 = memref.load %arg10[%c1_234, %c0_235] : memref<4x4xf32, #tpu.memory_space<smem>>
    %c1_236 = arith.constant 1 : index
    %c1_237 = arith.constant 1 : index
    %820 = memref.load %arg10[%c1_236, %c1_237] : memref<4x4xf32, #tpu.memory_space<smem>>
    %c1_238 = arith.constant 1 : index
    %c2_239 = arith.constant 2 : index
    %821 = memref.load %arg10[%c1_238, %c2_239] : memref<4x4xf32, #tpu.memory_space<smem>>
    %c1_240 = arith.constant 1 : index
    %c3_241 = arith.constant 3 : index
    %822 = memref.load %arg10[%c1_240, %c3_241] : memref<4x4xf32, #tpu.memory_space<smem>>
    %c1_242 = arith.constant 1 : index
    %823 = memref.load %arg11[%c1_242] : memref<4xf32, #tpu.memory_space<smem>>
    %824 = vector.broadcast %819 : f32 to vector<2x34xf32>
    %825 = arith.mulf %824, %738 : vector<2x34xf32>
    %826 = vector.broadcast %820 : f32 to vector<2x34xf32>
    %827 = arith.mulf %826, %739 : vector<2x34xf32>
    %828 = arith.addf %825, %827 : vector<2x34xf32>
    %829 = vector.broadcast %821 : f32 to vector<2x34xf32>
    %830 = arith.mulf %829, %741 : vector<2x34xf32>
    %831 = arith.addf %828, %830 : vector<2x34xf32>
    %832 = vector.broadcast %822 : f32 to vector<2x34xf32>
    %833 = arith.mulf %832, %742 : vector<2x34xf32>
    %834 = arith.addf %831, %833 : vector<2x34xf32>
    %835 = vector.broadcast %823 : f32 to vector<2x34xf32>
    %836 = arith.addf %834, %835 : vector<2x34xf32>
    %cst_243 = arith.constant 0.000000e+00 : f32
    %837 = vector.broadcast %cst_243 : f32 to vector<2x34xf32>
    %838 = arith.maximumf %836, %837 : vector<2x34xf32>
    %839 = vector.broadcast %819 : f32 to vector<2x34xf32>
    %840 = arith.mulf %839, %739 : vector<2x34xf32>
    %841 = vector.broadcast %820 : f32 to vector<2x34xf32>
    %842 = arith.mulf %841, %740 : vector<2x34xf32>
    %843 = arith.addf %840, %842 : vector<2x34xf32>
    %844 = vector.broadcast %821 : f32 to vector<2x34xf32>
    %845 = arith.mulf %844, %742 : vector<2x34xf32>
    %846 = arith.addf %843, %845 : vector<2x34xf32>
    %847 = vector.broadcast %822 : f32 to vector<2x34xf32>
    %848 = arith.mulf %847, %743 : vector<2x34xf32>
    %849 = arith.addf %846, %848 : vector<2x34xf32>
    %850 = vector.broadcast %823 : f32 to vector<2x34xf32>
    %851 = arith.addf %849, %850 : vector<2x34xf32>
    %cst_244 = arith.constant 0.000000e+00 : f32
    %852 = vector.broadcast %cst_244 : f32 to vector<2x34xf32>
    %853 = arith.maximumf %851, %852 : vector<2x34xf32>
    %854 = vector.broadcast %819 : f32 to vector<2x34xf32>
    %855 = arith.mulf %854, %741 : vector<2x34xf32>
    %856 = vector.broadcast %820 : f32 to vector<2x34xf32>
    %857 = arith.mulf %856, %742 : vector<2x34xf32>
    %858 = arith.addf %855, %857 : vector<2x34xf32>
    %859 = vector.broadcast %821 : f32 to vector<2x34xf32>
    %860 = arith.mulf %859, %744 : vector<2x34xf32>
    %861 = arith.addf %858, %860 : vector<2x34xf32>
    %862 = vector.broadcast %822 : f32 to vector<2x34xf32>
    %863 = arith.mulf %862, %745 : vector<2x34xf32>
    %864 = arith.addf %861, %863 : vector<2x34xf32>
    %865 = vector.broadcast %823 : f32 to vector<2x34xf32>
    %866 = arith.addf %864, %865 : vector<2x34xf32>
    %cst_245 = arith.constant 0.000000e+00 : f32
    %867 = vector.broadcast %cst_245 : f32 to vector<2x34xf32>
    %868 = arith.maximumf %866, %867 : vector<2x34xf32>
    %869 = vector.broadcast %819 : f32 to vector<2x34xf32>
    %870 = arith.mulf %869, %742 : vector<2x34xf32>
    %871 = vector.broadcast %820 : f32 to vector<2x34xf32>
    %872 = arith.mulf %871, %743 : vector<2x34xf32>
    %873 = arith.addf %870, %872 : vector<2x34xf32>
    %874 = vector.broadcast %821 : f32 to vector<2x34xf32>
    %875 = arith.mulf %874, %745 : vector<2x34xf32>
    %876 = arith.addf %873, %875 : vector<2x34xf32>
    %877 = vector.broadcast %822 : f32 to vector<2x34xf32>
    %878 = arith.mulf %877, %746 : vector<2x34xf32>
    %879 = arith.addf %876, %878 : vector<2x34xf32>
    %880 = vector.broadcast %823 : f32 to vector<2x34xf32>
    %881 = arith.addf %879, %880 : vector<2x34xf32>
    %cst_246 = arith.constant 0.000000e+00 : f32
    %882 = vector.broadcast %cst_246 : f32 to vector<2x34xf32>
    %883 = arith.maximumf %881, %882 : vector<2x34xf32>
    %884 = arith.maximumf %838, %853 : vector<2x34xf32>
    %885 = arith.maximumf %868, %883 : vector<2x34xf32>
    %886 = arith.maximumf %884, %885 : vector<2x34xf32>
    %c5_247 = arith.constant 5 : index
    %c0_248 = arith.constant 0 : index
    %c0_249 = arith.constant 0 : index
    %887 = vector.load %arg12[%c5_247, %c0_248, %c0_249] : memref<12x34x16xf32, #tpu.memory_space<vmem>>, vector<1x34x16xf32>
    %888 = vector.shape_cast %887 : vector<1x34x16xf32> to vector<34x16xf32>
    %cst_250 = arith.constant dense<0.000000e+00> : vector<2x16xf32>
    %889 = tpu.matmul %886, %888, %cst_250 {dimension_numbers = #tpu.dot_dimension_numbers<[1], [0], [0], [1], [0, 0, 1, 1], [], []>} : vector<2x34xf32>, vector<34x16xf32>, vector<2x16xf32> -> vector<2x16xf32>
    %890 = arith.addf %818, %889 : vector<2x16xf32>
    %c2_251 = arith.constant 2 : index
    %c0_252 = arith.constant 0 : index
    %891 = memref.load %arg10[%c2_251, %c0_252] : memref<4x4xf32, #tpu.memory_space<smem>>
    %c2_253 = arith.constant 2 : index
    %c1_254 = arith.constant 1 : index
    %892 = memref.load %arg10[%c2_253, %c1_254] : memref<4x4xf32, #tpu.memory_space<smem>>
    %c2_255 = arith.constant 2 : index
    %c2_256 = arith.constant 2 : index
    %893 = memref.load %arg10[%c2_255, %c2_256] : memref<4x4xf32, #tpu.memory_space<smem>>
    %c2_257 = arith.constant 2 : index
    %c3_258 = arith.constant 3 : index
    %894 = memref.load %arg10[%c2_257, %c3_258] : memref<4x4xf32, #tpu.memory_space<smem>>
    %c2_259 = arith.constant 2 : index
    %895 = memref.load %arg11[%c2_259] : memref<4xf32, #tpu.memory_space<smem>>
    %896 = vector.broadcast %891 : f32 to vector<2x34xf32>
    %897 = arith.mulf %896, %738 : vector<2x34xf32>
    %898 = vector.broadcast %892 : f32 to vector<2x34xf32>
    %899 = arith.mulf %898, %739 : vector<2x34xf32>
    %900 = arith.addf %897, %899 : vector<2x34xf32>
    %901 = vector.broadcast %893 : f32 to vector<2x34xf32>
    %902 = arith.mulf %901, %741 : vector<2x34xf32>
    %903 = arith.addf %900, %902 : vector<2x34xf32>
    %904 = vector.broadcast %894 : f32 to vector<2x34xf32>
    %905 = arith.mulf %904, %742 : vector<2x34xf32>
    %906 = arith.addf %903, %905 : vector<2x34xf32>
    %907 = vector.broadcast %895 : f32 to vector<2x34xf32>
    %908 = arith.addf %906, %907 : vector<2x34xf32>
    %cst_260 = arith.constant 0.000000e+00 : f32
    %909 = vector.broadcast %cst_260 : f32 to vector<2x34xf32>
    %910 = arith.maximumf %908, %909 : vector<2x34xf32>
    %911 = vector.broadcast %891 : f32 to vector<2x34xf32>
    %912 = arith.mulf %911, %739 : vector<2x34xf32>
    %913 = vector.broadcast %892 : f32 to vector<2x34xf32>
    %914 = arith.mulf %913, %740 : vector<2x34xf32>
    %915 = arith.addf %912, %914 : vector<2x34xf32>
    %916 = vector.broadcast %893 : f32 to vector<2x34xf32>
    %917 = arith.mulf %916, %742 : vector<2x34xf32>
    %918 = arith.addf %915, %917 : vector<2x34xf32>
    %919 = vector.broadcast %894 : f32 to vector<2x34xf32>
    %920 = arith.mulf %919, %743 : vector<2x34xf32>
    %921 = arith.addf %918, %920 : vector<2x34xf32>
    %922 = vector.broadcast %895 : f32 to vector<2x34xf32>
    %923 = arith.addf %921, %922 : vector<2x34xf32>
    %cst_261 = arith.constant 0.000000e+00 : f32
    %924 = vector.broadcast %cst_261 : f32 to vector<2x34xf32>
    %925 = arith.maximumf %923, %924 : vector<2x34xf32>
    %926 = vector.broadcast %891 : f32 to vector<2x34xf32>
    %927 = arith.mulf %926, %741 : vector<2x34xf32>
    %928 = vector.broadcast %892 : f32 to vector<2x34xf32>
    %929 = arith.mulf %928, %742 : vector<2x34xf32>
    %930 = arith.addf %927, %929 : vector<2x34xf32>
    %931 = vector.broadcast %893 : f32 to vector<2x34xf32>
    %932 = arith.mulf %931, %744 : vector<2x34xf32>
    %933 = arith.addf %930, %932 : vector<2x34xf32>
    %934 = vector.broadcast %894 : f32 to vector<2x34xf32>
    %935 = arith.mulf %934, %745 : vector<2x34xf32>
    %936 = arith.addf %933, %935 : vector<2x34xf32>
    %937 = vector.broadcast %895 : f32 to vector<2x34xf32>
    %938 = arith.addf %936, %937 : vector<2x34xf32>
    %cst_262 = arith.constant 0.000000e+00 : f32
    %939 = vector.broadcast %cst_262 : f32 to vector<2x34xf32>
    %940 = arith.maximumf %938, %939 : vector<2x34xf32>
    %941 = vector.broadcast %891 : f32 to vector<2x34xf32>
    %942 = arith.mulf %941, %742 : vector<2x34xf32>
    %943 = vector.broadcast %892 : f32 to vector<2x34xf32>
    %944 = arith.mulf %943, %743 : vector<2x34xf32>
    %945 = arith.addf %942, %944 : vector<2x34xf32>
    %946 = vector.broadcast %893 : f32 to vector<2x34xf32>
    %947 = arith.mulf %946, %745 : vector<2x34xf32>
    %948 = arith.addf %945, %947 : vector<2x34xf32>
    %949 = vector.broadcast %894 : f32 to vector<2x34xf32>
    %950 = arith.mulf %949, %746 : vector<2x34xf32>
    %951 = arith.addf %948, %950 : vector<2x34xf32>
    %952 = vector.broadcast %895 : f32 to vector<2x34xf32>
    %953 = arith.addf %951, %952 : vector<2x34xf32>
    %cst_263 = arith.constant 0.000000e+00 : f32
    %954 = vector.broadcast %cst_263 : f32 to vector<2x34xf32>
    %955 = arith.maximumf %953, %954 : vector<2x34xf32>
    %956 = arith.maximumf %910, %925 : vector<2x34xf32>
    %957 = arith.maximumf %940, %955 : vector<2x34xf32>
    %958 = arith.maximumf %956, %957 : vector<2x34xf32>
    %c8 = arith.constant 8 : index
    %c0_264 = arith.constant 0 : index
    %c0_265 = arith.constant 0 : index
    %959 = vector.load %arg12[%c8, %c0_264, %c0_265] : memref<12x34x16xf32, #tpu.memory_space<vmem>>, vector<1x34x16xf32>
    %960 = vector.shape_cast %959 : vector<1x34x16xf32> to vector<34x16xf32>
    %cst_266 = arith.constant dense<0.000000e+00> : vector<2x16xf32>
    %961 = tpu.matmul %958, %960, %cst_266 {dimension_numbers = #tpu.dot_dimension_numbers<[1], [0], [0], [1], [0, 0, 1, 1], [], []>} : vector<2x34xf32>, vector<34x16xf32>, vector<2x16xf32> -> vector<2x16xf32>
    %962 = arith.addf %890, %961 : vector<2x16xf32>
    %c3_267 = arith.constant 3 : index
    %c0_268 = arith.constant 0 : index
    %963 = memref.load %arg10[%c3_267, %c0_268] : memref<4x4xf32, #tpu.memory_space<smem>>
    %c3_269 = arith.constant 3 : index
    %c1_270 = arith.constant 1 : index
    %964 = memref.load %arg10[%c3_269, %c1_270] : memref<4x4xf32, #tpu.memory_space<smem>>
    %c3_271 = arith.constant 3 : index
    %c2_272 = arith.constant 2 : index
    %965 = memref.load %arg10[%c3_271, %c2_272] : memref<4x4xf32, #tpu.memory_space<smem>>
    %c3_273 = arith.constant 3 : index
    %c3_274 = arith.constant 3 : index
    %966 = memref.load %arg10[%c3_273, %c3_274] : memref<4x4xf32, #tpu.memory_space<smem>>
    %c3_275 = arith.constant 3 : index
    %967 = memref.load %arg11[%c3_275] : memref<4xf32, #tpu.memory_space<smem>>
    %968 = vector.broadcast %963 : f32 to vector<2x34xf32>
    %969 = arith.mulf %968, %738 : vector<2x34xf32>
    %970 = vector.broadcast %964 : f32 to vector<2x34xf32>
    %971 = arith.mulf %970, %739 : vector<2x34xf32>
    %972 = arith.addf %969, %971 : vector<2x34xf32>
    %973 = vector.broadcast %965 : f32 to vector<2x34xf32>
    %974 = arith.mulf %973, %741 : vector<2x34xf32>
    %975 = arith.addf %972, %974 : vector<2x34xf32>
    %976 = vector.broadcast %966 : f32 to vector<2x34xf32>
    %977 = arith.mulf %976, %742 : vector<2x34xf32>
    %978 = arith.addf %975, %977 : vector<2x34xf32>
    %979 = vector.broadcast %967 : f32 to vector<2x34xf32>
    %980 = arith.addf %978, %979 : vector<2x34xf32>
    %cst_276 = arith.constant 0.000000e+00 : f32
    %981 = vector.broadcast %cst_276 : f32 to vector<2x34xf32>
    %982 = arith.maximumf %980, %981 : vector<2x34xf32>
    %983 = vector.broadcast %963 : f32 to vector<2x34xf32>
    %984 = arith.mulf %983, %739 : vector<2x34xf32>
    %985 = vector.broadcast %964 : f32 to vector<2x34xf32>
    %986 = arith.mulf %985, %740 : vector<2x34xf32>
    %987 = arith.addf %984, %986 : vector<2x34xf32>
    %988 = vector.broadcast %965 : f32 to vector<2x34xf32>
    %989 = arith.mulf %988, %742 : vector<2x34xf32>
    %990 = arith.addf %987, %989 : vector<2x34xf32>
    %991 = vector.broadcast %966 : f32 to vector<2x34xf32>
    %992 = arith.mulf %991, %743 : vector<2x34xf32>
    %993 = arith.addf %990, %992 : vector<2x34xf32>
    %994 = vector.broadcast %967 : f32 to vector<2x34xf32>
    %995 = arith.addf %993, %994 : vector<2x34xf32>
    %cst_277 = arith.constant 0.000000e+00 : f32
    %996 = vector.broadcast %cst_277 : f32 to vector<2x34xf32>
    %997 = arith.maximumf %995, %996 : vector<2x34xf32>
    %998 = vector.broadcast %963 : f32 to vector<2x34xf32>
    %999 = arith.mulf %998, %741 : vector<2x34xf32>
    %1000 = vector.broadcast %964 : f32 to vector<2x34xf32>
    %1001 = arith.mulf %1000, %742 : vector<2x34xf32>
    %1002 = arith.addf %999, %1001 : vector<2x34xf32>
    %1003 = vector.broadcast %965 : f32 to vector<2x34xf32>
    %1004 = arith.mulf %1003, %744 : vector<2x34xf32>
    %1005 = arith.addf %1002, %1004 : vector<2x34xf32>
    %1006 = vector.broadcast %966 : f32 to vector<2x34xf32>
    %1007 = arith.mulf %1006, %745 : vector<2x34xf32>
    %1008 = arith.addf %1005, %1007 : vector<2x34xf32>
    %1009 = vector.broadcast %967 : f32 to vector<2x34xf32>
    %1010 = arith.addf %1008, %1009 : vector<2x34xf32>
    %cst_278 = arith.constant 0.000000e+00 : f32
    %1011 = vector.broadcast %cst_278 : f32 to vector<2x34xf32>
    %1012 = arith.maximumf %1010, %1011 : vector<2x34xf32>
    %1013 = vector.broadcast %963 : f32 to vector<2x34xf32>
    %1014 = arith.mulf %1013, %742 : vector<2x34xf32>
    %1015 = vector.broadcast %964 : f32 to vector<2x34xf32>
    %1016 = arith.mulf %1015, %743 : vector<2x34xf32>
    %1017 = arith.addf %1014, %1016 : vector<2x34xf32>
    %1018 = vector.broadcast %965 : f32 to vector<2x34xf32>
    %1019 = arith.mulf %1018, %745 : vector<2x34xf32>
    %1020 = arith.addf %1017, %1019 : vector<2x34xf32>
    %1021 = vector.broadcast %966 : f32 to vector<2x34xf32>
    %1022 = arith.mulf %1021, %746 : vector<2x34xf32>
    %1023 = arith.addf %1020, %1022 : vector<2x34xf32>
    %1024 = vector.broadcast %967 : f32 to vector<2x34xf32>
    %1025 = arith.addf %1023, %1024 : vector<2x34xf32>
    %cst_279 = arith.constant 0.000000e+00 : f32
    %1026 = vector.broadcast %cst_279 : f32 to vector<2x34xf32>
    %1027 = arith.maximumf %1025, %1026 : vector<2x34xf32>
    %1028 = arith.maximumf %982, %997 : vector<2x34xf32>
    %1029 = arith.maximumf %1012, %1027 : vector<2x34xf32>
    %1030 = arith.maximumf %1028, %1029 : vector<2x34xf32>
    %c11 = arith.constant 11 : index
    %c0_280 = arith.constant 0 : index
    %c0_281 = arith.constant 0 : index
    %1031 = vector.load %arg12[%c11, %c0_280, %c0_281] : memref<12x34x16xf32, #tpu.memory_space<vmem>>, vector<1x34x16xf32>
    %1032 = vector.shape_cast %1031 : vector<1x34x16xf32> to vector<34x16xf32>
    %cst_282 = arith.constant dense<0.000000e+00> : vector<2x16xf32>
    %1033 = tpu.matmul %1030, %1032, %cst_282 {dimension_numbers = #tpu.dot_dimension_numbers<[1], [0], [0], [1], [0, 0, 1, 1], [], []>} : vector<2x34xf32>, vector<34x16xf32>, vector<2x16xf32> -> vector<2x16xf32>
    %1034 = arith.addf %962, %1033 : vector<2x16xf32>
    %cst_283 = arith.constant 0.000000e+00 : f32
    %1035 = vector.broadcast %cst_283 : f32 to vector<2x16xf32>
    %1036 = arith.maximumf %1034, %1035 : vector<2x16xf32>
    %c0_284 = arith.constant 0 : index
    %c0_285 = arith.constant 0 : index
    %1037 = vector.load %arg14[%c0_284, %c0_285] : memref<64x8xf32, #tpu.memory_space<vmem>>, vector<64x8xf32>
    %1038 = vector.extract_strided_slice %1037 {offsets = [0, 0], sizes = [16, 8], strides = [1, 1]} : vector<64x8xf32> to vector<16x8xf32>
    %cst_286 = arith.constant dense<0.000000e+00> : vector<2x8xf32>
    %1039 = tpu.matmul %1036, %1038, %cst_286 {dimension_numbers = #tpu.dot_dimension_numbers<[1], [0], [0], [1], [0, 0, 1, 1], [], []>} : vector<2x16xf32>, vector<16x8xf32>, vector<2x8xf32> -> vector<2x8xf32>
    %1040 = vector.extract_strided_slice %1037 {offsets = [16, 0], sizes = [48, 8], strides = [1, 1]} : vector<64x8xf32> to vector<48x8xf32>
    %cst_287 = arith.constant dense<0.000000e+00> : vector<2x8xf32>
    %1041 = tpu.matmul %121, %1040, %cst_287 {dimension_numbers = #tpu.dot_dimension_numbers<[1], [0], [0], [1], [0, 0, 1, 1], [], []>} : vector<2x48xf32>, vector<48x8xf32>, vector<2x8xf32> -> vector<2x8xf32>
    %1042 = arith.addf %1039, %1041 : vector<2x8xf32>
    %c0_288 = arith.constant 0 : index
    %c0_289 = arith.constant 0 : index
    %1043 = vector.load %arg15[%c0_288, %c0_289] : memref<1x8xf32, #tpu.memory_space<vmem>>, vector<1x8xf32>
    %1044 = vector.broadcast %1043 : vector<1x8xf32> to vector<2x8xf32>
    %1045 = arith.addf %1042, %1044 : vector<2x8xf32>
    %cst_290 = arith.constant 0.000000e+00 : f32
    %1046 = vector.broadcast %cst_290 : f32 to vector<2x8xf32>
    %1047 = arith.maximumf %1045, %1046 : vector<2x8xf32>
    %c0_291 = arith.constant 0 : index
    %c0_292 = arith.constant 0 : index
    %1048 = vector.load %arg16[%c0_291, %c0_292] : memref<2x8xf32, #tpu.memory_space<vmem>>, vector<2x8xf32>
    tpu.vector_store %arg16[%c0_291, %c0_292], %1047 {strides = array<i32>} : memref<2x8xf32, #tpu.memory_space<vmem>>, vector<2x8xf32>,
    return
  }
}

</mosaic_0001>

<llo_original>
// kernel: tile.13
$region0: #{tile.13}
  #allocation0 [shape = 's32[1]{0}', space=sflag, size = 0x4, scoped, tag = 'scoped memory for tile.13']
  %s0 = inlined_call_operand.vmem [shape: f32[32], index: 0, kind: input, shape index: {}]
  %s1 = inlined_call_operand.vmem [shape: f32[3,32], index: 1, kind: output, shape index: {}]
  // Predicated region
  $region2: #{tile.13} parent=0 // pred_check
    _
  $region3: #{tile.13} parent=0 // pred_check_branch
    %3 = sbr.rel (0) target = $region5
  $region4: #{tile.13} parent=0 // pred_region
    _
  $region5: #{tile.13} parent=0 // pred_fallthru
    _
  %v4 = vld [vmem:[%s0] ss:$0 sm:$0xff]
  %5 = vst [vmem:[%s1] sm:$0xf] %v4

// kernel: tile.14
$region0: #{tile.14}
  %s0 = inlined_call_operand.vmem [shape: f32[3,32], index: 0, kind: input, shape index: {}]
  %s1 = inlined_call_operand.vmem [shape: f32[1,96], index: 1, kind: output, shape index: {}]
  $region1: #{tile.14} parent=0
    #allocation0 [shape = 'u8[4096]{0}', space=vmem, size = 0x1000, scoped, tag = 'scoped mem for output reshape']
    #allocation1 [shape = 'u8[4096]{0}', space=vmem, size = 0x1000, scoped, tag = 'scoped mem for input reshape']
    %s3 = sshllo.u32 0, 4
    %v4 = vld [vmem:[%s0] sm:%s3]
    %5 = vst [vmem:[#allocation1] sm:%s3] %v4
    %v6 = vld [vmem:[#allocation1] sm:$0x1]
    %vm7 = vcmask 261120
    %8 = vst.msk [vmem:[#allocation0] sm:$0x1] %vm7, %v6
    %s9 = scalar_lea.vmem [#allocation1], 2
    %v10 = vld [vmem:[%s9] sm:$0x1]
    %11 = vrot.lane.b32.xlu0 %v10, 64
    %v12 = vpop.permute.xlu0 %11
    %vm13 = vcmask 785920
    %14 = vst.msk [vmem:[#allocation0] sm:$0x1] %vm13, %v12
    %s15 = scalar_lea.vmem [#allocation1], 1
    %v16 = vld [vmem:[%s15] sm:$0x1]
    %17 = vrot.lane.b32.xlu0 %v16, 32
    %v18 = vpop.permute.xlu0 %17
    %vm19 = vcmask 523520
    %20 = vst.msk [vmem:[#allocation0] sm:$0x1] %vm19, %v18
    %s22 = sshllo.u32 0, 1
    %v24 = vld [vmem:[#allocation0] sm:%s22]
    %s25 = sshllo.u32 0, 1
    %26 = vst [vmem:[%s1] sm:%s25] %v24

// kernel: tile.18
$region0: #{tile.18}
  #allocation0 [shape = 's32[1]{0}', space=sflag, size = 0x4, scoped, tag = 'scoped memory for tile.18']
  %s0 = inlined_call_operand.vmem [shape: f32[16], index: 0, kind: input, shape index: {}]
  %s1 = inlined_call_operand.vmem [shape: f32[3,16], index: 1, kind: output, shape index: {}]
  // Predicated region
  $region2: #{tile.18} parent=0 // pred_check
    _
  $region3: #{tile.18} parent=0 // pred_check_branch
    %3 = sbr.rel (0) target = $region5
  $region4: #{tile.18} parent=0 // pred_region
    _
  $region5: #{tile.18} parent=0 // pred_fallthru
    _
  %v4 = vld [vmem:[%s0] ss:$0 sm:$0xff]
  %5 = vst [vmem:[%s1] sm:$0xf] %v4

// kernel: tile.19
$region0: #{tile.19}
  %s0 = inlined_call_operand.vmem [shape: f32[3,16], index: 0, kind: input, shape index: {}]
  %s1 = inlined_call_operand.vmem [shape: f32[1,48], index: 1, kind: output, shape index: {}]
  $region1: #{tile.19} parent=0
    #allocation0 [shape = 'u8[4096]{0}', space=vmem, size = 0x1000, scoped, tag = 'scoped mem for output reshape']
    #allocation1 [shape = 'u8[4096]{0}', space=vmem, size = 0x1000, scoped, tag = 'scoped mem for input reshape']
    %s3 = sshllo.u32 0, 4
    %v4 = vld [vmem:[%s0] sm:%s3]
    %5 = vst [vmem:[#allocation1] sm:%s3] %v4
    %v6 = vld [vmem:[#allocation1] sm:$0x1]
    %vm7 = vcmask 130048
    %8 = vst.msk [vmem:[#allocation0] sm:$0x1] %vm7, %v6
    %s9 = scalar_lea.vmem [#allocation1], 2
    %v10 = vld [vmem:[%s9] sm:$0x1]
    %11 = vrot.lane.b32.xlu0 %v10, 32
    %v12 = vpop.permute.xlu0 %11
    %vm13 = vcmask 392448
    %14 = vst.msk [vmem:[#allocation0] sm:$0x1] %vm13, %v12
    %s15 = scalar_lea.vmem [#allocation1], 1
    %v16 = vld [vmem:[%s15] sm:$0x1]
    %17 = vrot.lane.b32.xlu0 %v16, 16
    %v18 = vpop.permute.xlu0 %17
    %vm19 = vcmask 261248
    %20 = vst.msk [vmem:[#allocation0] sm:$0x1] %vm19, %v18
    %s22 = sshllo.u32 0, 1
    %v24 = vld [vmem:[#allocation0] sm:%s22]
    %s25 = sshllo.u32 0, 1
    %26 = vst [vmem:[%s1] sm:%s25] %v24

// kernel: model_forward.1
$region0: #{model_forward.1}
  #allocation0 [shape = 'u32[]', space=smem, size = 0x4, offset = 0x4, fixed_abs, tag = 'smem constant byte address 0x4 - core index']
  #allocation1 [shape = 'u32[144,128]{1,0:T(1,128)}', space=vmem, size = 0x12000, scoped, tag = 'internal scratch']
  %s0 = inlined_call_operand.vmem [shape: f32[2,96], index: 0, kind: input, shape index: {}]
  %s1 = inlined_call_operand.vmem [shape: f32[7,2,36], index: 1, kind: input, shape index: {}]
  %s2 = inlined_call_operand.vmem [shape: f32[96,96], index: 2, kind: input, shape index: {}]
  %s3 = inlined_call_operand.vmem [shape: f32[1,96], index: 3, kind: input, shape index: {}]
  %s4 = inlined_call_operand.vmem [shape: f32[96,96], index: 4, kind: input, shape index: {}]
  %s5 = inlined_call_operand.vmem [shape: f32[96,96], index: 5, kind: input, shape index: {}]
  %s6 = inlined_call_operand.vmem [shape: f32[4,2], index: 6, kind: input, shape index: {}]
  %s7 = inlined_call_operand.vmem [shape: f32[4], index: 7, kind: input, shape index: {}]
  %s8 = inlined_call_operand.vmem [shape: f32[4,96,48], index: 8, kind: input, shape index: {}]
  %s9 = inlined_call_operand.vmem [shape: f32[1,48], index: 9, kind: input, shape index: {}]
  %s10 = inlined_call_operand.vmem [shape: f32[4,4], index: 10, kind: input, shape index: {}]
  %s11 = inlined_call_operand.vmem [shape: f32[4], index: 11, kind: input, shape index: {}]
  %s12 = inlined_call_operand.vmem [shape: f32[12,34,16], index: 12, kind: input, shape index: {}]
  %s13 = inlined_call_operand.vmem [shape: f32[1,16], index: 13, kind: input, shape index: {}]
  %s14 = inlined_call_operand.vmem [shape: f32[64,8], index: 14, kind: input, shape index: {}]
  %s15 = inlined_call_operand.vmem [shape: f32[1,8], index: 15, kind: input, shape index: {}]
  %s16 = inlined_call_operand.hbm [shape: f32[2,8], index: 16, kind: output, shape index: {}]
  %s17 = sld [smem:[#allocation0]]
  $region90: #{model_forward.1} parent=0
    _
  %s19 = ssub.s32 1, %s17
  %s20 = scalar_select 0, %s19, %s17
  $region1: #{model_forward.1} parent=0
    #allocation2 [shape = 'u8[2048]{0}', space=smem, size = 0x800, scoped, tag = 'input window, operand 6, single buffered']
    #allocation3 [shape = 's32[1]{0}', space=sflag, size = 0x4, scoped, tag = 'scoped memory for model_forward.1']
    #allocation4 [shape = 's32[1]{0}', space=sflag, size = 0x4, scoped, tag = 'scoped memory for model_forward.1']
    #allocation5 [shape = 'u8[512]{0}', space=smem, size = 0x200, scoped, tag = 'input window, operand 7, single buffered']
    #allocation6 [shape = 's32[1]{0}', space=sflag, size = 0x4, scoped, tag = 'scoped memory for model_forward.1']
    #allocation7 [shape = 'u8[2048]{0}', space=smem, size = 0x800, scoped, tag = 'input window, operand 10, single buffered']
    #allocation8 [shape = 'u8[512]{0}', space=smem, size = 0x200, scoped, tag = 'input window, operand 11, single buffered']
    #allocation9 [shape = 's32[1]{0}', space=sflag, size = 0x4, scoped, tag = 'scoped memory for model_forward.1']
    #allocation10 [shape = 'u8[1024]{0}', space=vmem, size = 0x400, scoped, tag = 'output window, operand 0, single buffered']
    %21 = vsyncpa [#allocation4], 0
    %22 = vsyncpa [#allocation6], 0
    %23 = vsyncpa [#allocation9], 0
    %24 = vsyncpa [#allocation3], 0
    // Predicated region
    $region2: #{model_forward.1} parent=1 // pred_check
      _
    $region3: #{model_forward.1} parent=1 // pred_check_branch
      %26 = sbr.rel (0) target = $region5
    $region4: #{model_forward.1} parent=1 // pred_region
      _
    $region5: #{model_forward.1} parent=1 // pred_fallthru
      _
    // Predicated region
    $region6: #{model_forward.1} parent=1 // pred_check
      _
    $region7: #{model_forward.1} parent=1 // pred_check_branch
      %28 = sbr.rel (0) target = $region9
    $region8: #{model_forward.1} parent=1 // pred_region
      _
    $region9: #{model_forward.1} parent=1 // pred_fallthru
      _
    // Predicated region
    $region10: #{model_forward.1} parent=1 // pred_check
      _
    $region11: #{model_forward.1} parent=1 // pred_check_branch
      %30 = sbr.rel (0) target = $region13
    $region12: #{model_forward.1} parent=1 // pred_region
      _
    $region13: #{model_forward.1} parent=1 // pred_fallthru
      _
    // Predicated region
    $region14: #{model_forward.1} parent=1 // pred_check
      _
    $region15: #{model_forward.1} parent=1 // pred_check_branch
      %32 = sbr.rel (0) target = $region17
    $region16: #{model_forward.1} parent=1 // pred_region
      _
    $region17: #{model_forward.1} parent=1 // pred_fallthru
      _
    // Predicated region
    $region18: #{model_forward.1} parent=1 // pred_check
      _
    $region19: #{model_forward.1} parent=1 // pred_check_branch
      %34 = sbr.rel (0) target = $region21
    $region20: #{model_forward.1} parent=1 // pred_region
      _
    $region21: #{model_forward.1} parent=1 // pred_fallthru
      _
    // Predicated region
    $region22: #{model_forward.1} parent=1 // pred_check
      _
    $region23: #{model_forward.1} parent=1 // pred_check_branch
      %36 = sbr.rel (0) target = $region25
    $region24: #{model_forward.1} parent=1 // pred_region
      _
    $region25: #{model_forward.1} parent=1 // pred_fallthru
      _
    // Predicated region
    $region26: #{model_forward.1} parent=1 // pred_check
      _
    $region27: #{model_forward.1} parent=1 // pred_check_branch
      %38 = sbr.rel (0) target = $region29
    $region28: #{model_forward.1} parent=1 // pred_region
      %s40 = ssub.s32 64, 64
      %41 = vsyncadd [#allocation4], %s40
      %s43 = sshll.u32 %s6, 4
      %s44 = int_to_ptr.vmem [resolvable:$true] %s43
      %46 = dma.vmem_to_smem %s44, 64, [#allocation2], [#allocation4]
    $region29: #{model_forward.1} parent=1 // pred_fallthru
      _
    // Predicated region
    $region30: #{model_forward.1} parent=1 // pred_check
      _
    $region31: #{model_forward.1} parent=1 // pred_check_branch
      %48 = sbr.rel (0) target = $region33
    $region32: #{model_forward.1} parent=1 // pred_region
      %s50 = ssub.s32 16, 16
      %51 = vsyncadd [#allocation6], %s50
      %s53 = sshll.u32 %s7, 4
      %s54 = int_to_ptr.vmem [resolvable:$true] %s53
      %56 = dma.vmem_to_smem %s54, 16, [#allocation5], [#allocation6]
    $region33: #{model_forward.1} parent=1 // pred_fallthru
      _
    // Predicated region
    $region34: #{model_forward.1} parent=1 // pred_check
      _
    $region35: #{model_forward.1} parent=1 // pred_check_branch
      %58 = sbr.rel (0) target = $region37
    $region36: #{model_forward.1} parent=1 // pred_region
      _
    $region37: #{model_forward.1} parent=1 // pred_fallthru
      _
    // Predicated region
    $region38: #{model_forward.1} parent=1 // pred_check
      _
    $region39: #{model_forward.1} parent=1 // pred_check_branch
      %60 = sbr.rel (0) target = $region41
    $region40: #{model_forward.1} parent=1 // pred_region
      _
    $region41: #{model_forward.1} parent=1 // pred_fallthru
      _
    // Predicated region
    $region42: #{model_forward.1} parent=1 // pred_check
      _
    $region43: #{model_forward.1} parent=1 // pred_check_branch
      %62 = sbr.rel (0) target = $region45
    $region44: #{model_forward.1} parent=1 // pred_region
      %s64 = ssub.s32 64, 64
      %65 = vsyncadd [#allocation6], %s64
      %s67 = sshll.u32 %s10, 4
      %s68 = int_to_ptr.vmem [resolvable:$true] %s67
      %70 = dma.vmem_to_smem %s68, 64, [#allocation7], [#allocation6]
    $region45: #{model_forward.1} parent=1 // pred_fallthru
      _
    // Predicated region
    $region46: #{model_forward.1} parent=1 // pred_check
      _
    $region47: #{model_forward.1} parent=1 // pred_check_branch
      %72 = sbr.rel (0) target = $region49
    $region48: #{model_forward.1} parent=1 // pred_region
      %s74 = ssub.s32 16, 16
      %75 = vsyncadd [#allocation9], %s74
      %s77 = sshll.u32 %s11, 4
      %s78 = int_to_ptr.vmem [resolvable:$true] %s77
      %80 = dma.vmem_to_smem %s78, 16, [#allocation8], [#allocation9]
    $region49: #{model_forward.1} parent=1 // pred_fallthru
      _
    // Predicated region
    $region50: #{model_forward.1} parent=1 // pred_check
      _
    $region51: #{model_forward.1} parent=1 // pred_check_branch
      %82 = sbr.rel (0) target = $region53
    $region52: #{model_forward.1} parent=1 // pred_region
      _
    $region53: #{model_forward.1} parent=1 // pred_fallthru
      _
    // Predicated region
    $region54: #{model_forward.1} parent=1 // pred_check
      _
    $region55: #{model_forward.1} parent=1 // pred_check_branch
      %84 = sbr.rel (0) target = $region57
    $region56: #{model_forward.1} parent=1 // pred_region
      _
    $region57: #{model_forward.1} parent=1 // pred_fallthru
      _
    // Predicated region
    $region58: #{model_forward.1} parent=1 // pred_check
      _
    $region59: #{model_forward.1} parent=1 // pred_check_branch
      %86 = sbr.rel (0) target = $region61
    $region60: #{model_forward.1} parent=1 // pred_region
      _
    $region61: #{model_forward.1} parent=1 // pred_fallthru
      _
    // Predicated region
    $region62: #{model_forward.1} parent=1 // pred_check
      _
    $region63: #{model_forward.1} parent=1 // pred_check_branch
      %88 = sbr.rel (0) target = $region65
    $region64: #{model_forward.1} parent=1 // pred_region
      _
    $region65: #{model_forward.1} parent=1 // pred_fallthru
      _
    // Predicated region
    $region66: #{model_forward.1} parent=1 // pred_check
      _
    $region67: #{model_forward.1} parent=1 // pred_check_branch
      %90 = sbr.rel (0) target = $region69
    $region68: #{model_forward.1} parent=1 // pred_region
      %91 = dma.done [#allocation4], 64
    $region69: #{model_forward.1} parent=1 // pred_fallthru
      _
    // Predicated region
    $region70: #{model_forward.1} parent=1 // pred_check
      _
    $region71: #{model_forward.1} parent=1 // pred_check_branch
      %93 = sbr.rel (0) target = $region73
    $region72: #{model_forward.1} parent=1 // pred_region
      %94 = dma.done [#allocation6], 16
    $region73: #{model_forward.1} parent=1 // pred_fallthru
      _
    // Predicated region
    $region74: #{model_forward.1} parent=1 // pred_check
      _
    $region75: #{model_forward.1} parent=1 // pred_check_branch
      %96 = sbr.rel (0) target = $region77
    $region76: #{model_forward.1} parent=1 // pred_region
      %97 = dma.done [#allocation6], 64
    $region77: #{model_forward.1} parent=1 // pred_fallthru
      _
    // Predicated region
    $region78: #{model_forward.1} parent=1 // pred_check
      _
    $region79: #{model_forward.1} parent=1 // pred_check_branch
      %99 = sbr.rel (0) target = $region81
    $region80: #{model_forward.1} parent=1 // pred_region
      %100 = dma.done [#allocation9], 16
    $region81: #{model_forward.1} parent=1 // pred_fallthru
      _
    %101 = sfence
    %v102 = vld [vmem:[%s0] sm:$0x3]
    %v103 = vld [vmem:[%s2] sm:$0xff]
    %v104 = vld [vmem:[%s2 + $0x8] sm:$0xff]
    %v105 = vld [vmem:[%s2 + $0x10] sm:$0xff]
    %v106 = vld [vmem:[%s2 + $0x18] sm:$0xff]
    %v107 = vld [vmem:[%s2 + $0x20] sm:$0xff]
    %v108 = vld [vmem:[%s2 + $0x28] sm:$0xff]
    %v109 = vld [vmem:[%s2 + $0x30] sm:$0xff]
    %v110 = vld [vmem:[%s2 + $0x38] sm:$0xff]
    %v111 = vld [vmem:[%s2 + $0x40] sm:$0xff]
    %v112 = vld [vmem:[%s2 + $0x48] sm:$0xff]
    %v113 = vld [vmem:[%s2 + $0x50] sm:$0xff]
    %v114 = vld [vmem:[%s2 + $0x58] sm:$0xff]
    %v115 = vld [vmem:[%s3] sm:$0x1]
    %v117 = vlaneseq
    %v118 = vshrl.u32 %v117, 7
    %v119 = vsub.s32 0, %v118
    %v120 = vrot.slane %v115, %v119
    %vm122 = vcmask 785408
    %v124 = vsel %vm122, %v102, 0
    %126 = vmatprep.subr.mxu0 0.0
    %127 = vmatpush1.msra.mxu0 %v103
    %128 = vmatprep.subr.mxu0 0.0
    %129 = vmatpush1.msra.mxu0 %v104
    %130 = vmatprep.subr.mxu0 0.0
    %131 = vmatpush1.msra.mxu0 %v105
    %132 = vmatprep.subr.mxu0 0.0
    %133 = vmatpush1.msra.mxu0 %v106
    %134 = vmatprep.subr.mxu0 0.0
    %135 = vmatpush1.msra.mxu0 %v107
    %136 = vmatprep.subr.mxu0 0.0
    %137 = vmatpush1.msra.mxu0 %v108
    %138 = vmatprep.subr.mxu0 0.0
    %139 = vmatpush1.msra.mxu0 %v109
    %140 = vmatprep.subr.mxu0 0.0
    %141 = vmatpush1.msra.mxu0 %v110
    %142 = vmatprep.subr.mxu0 0.0
    %143 = vmatpush1.msra.mxu0 %v111
    %144 = vmatprep.subr.mxu0 0.0
    %145 = vmatpush1.msra.mxu0 %v112
    %146 = vmatprep.subr.mxu0 0.0
    %147 = vmatpush1.msra.mxu0 %v113
    %148 = vmatprep.subr.mxu0 0.0
    %149 = vmatpush1.msra.mxu0 %v114
    %150 = vmatprep.subr.mxu0 0.0
    %151 = vmatpush1.msra.mxu0 0.0
    %152 = vmatprep.subr.mxu0 0.0
    %153 = vmatpush1.msra.mxu0 0.0
    %154 = vmatprep.subr.mxu0 0.0
    %155 = vmatpush1.msra.mxu0 0.0
    %156 = vmatprep.subr.mxu0 0.0
    %157 = vmatpush1.msra.mxu0 0.0
    %158 = vmatprep.subr.mxu0 0.0
    %159 = vmatpush1.msra.mxu0 0.0
    %160 = vmatprep.subr.mxu0 0.0
    %161 = vmatpush1.msra.mxu0 0.0
    %162 = vmatprep.subr.mxu0 0.0
    %163 = vmatpush1.msra.mxu0 0.0
    %164 = vmatprep.subr.mxu0 0.0
    %165 = vmatpush1.msra.mxu0 0.0
    %166 = vmatprep.subr.mxu0 0.0
    %167 = vmatpush1.msra.mxu0 0.0
    %168 = vmatprep.subr.mxu0 0.0
    %169 = vmatpush1.msra.mxu0 0.0
    %170 = vmatprep.subr.mxu0 0.0
    %171 = vmatpush1.msra.mxu0 0.0
    %172 = vmatprep.subr.mxu0 0.0
    %173 = vmatpush1.msra.mxu0 0.0
    %174 = vmatprep.subr.mxu0 0.0
    %175 = vmatpush1.msra.mxu0 0.0
    %176 = vmatprep.subr.mxu0 0.0
    %177 = vmatpush1.msra.mxu0 0.0
    %178 = vmatprep.subr.mxu0 0.0
    %179 = vmatpush1.msra.mxu0 0.0
    %180 = vmatprep.subr.mxu0 0.0
    %181 = vmatpush1.msra.mxu0 0.0
    %182 = vmatprep.subr.mxu0 0.0
    %183 = vmatpush1.msra.mxu0 0.0
    %184 = vmatprep.subr.mxu0 0.0
    %185 = vmatpush1.msra.mxu0 0.0
    %186 = vmatprep.subr.mxu0 0.0
    %187 = vmatpush1.msra.mxu0 0.0
    %188 = vmatprep.subr.mxu0 0.0
    %189 = vmatpush1.msra.mxu0 0.0
    %190 = vmatprep.mubr.f32.mxu0 0.0
    %191 = vmatmul.mubr.f32.gmra.mrb[0].mxu0 %v124
    %v192 = vpop.f32.mrb[0].mxu0
    %v193 = vadd.f32 %v120, %v192
    %v194 = vpop.f32.mrb[0].mxu0
    %195 = vdwg.mxu0
    %v196 = vmax.f32 %v193, 0.0
    %v197 = vld [vmem:[%s4] sm:$0xff]
    %v198 = vld [vmem:[%s4 + $0x8] sm:$0xff]
    %v199 = vld [vmem:[%s4 + $0x10] sm:$0xff]
    %v200 = vld [vmem:[%s4 + $0x18] sm:$0xff]
    %v201 = vld [vmem:[%s4 + $0x20] sm:$0xff]
    %v202 = vld [vmem:[%s4 + $0x28] sm:$0xff]
    %v203 = vld [vmem:[%s4 + $0x30] sm:$0xff]
    %v204 = vld [vmem:[%s4 + $0x38] sm:$0xff]
    %v205 = vld [vmem:[%s4 + $0x40] sm:$0xff]
    %v206 = vld [vmem:[%s4 + $0x48] sm:$0xff]
    %v207 = vld [vmem:[%s4 + $0x50] sm:$0xff]
    %v208 = vld [vmem:[%s4 + $0x58] sm:$0xff]
    %v210 = vsel %vm122, %v196, 0
    %212 = vmatprep.subr.mxu0 0.0
    %213 = vmatpush1.msra.mxu0 %v197
    %214 = vmatprep.subr.mxu0 0.0
    %215 = vmatpush1.msra.mxu0 %v198
    %216 = vmatprep.subr.mxu0 0.0
    %217 = vmatpush1.msra.mxu0 %v199
    %218 = vmatprep.subr.mxu0 0.0
    %219 = vmatpush1.msra.mxu0 %v200
    %220 = vmatprep.subr.mxu0 0.0
    %221 = vmatpush1.msra.mxu0 %v201
    %222 = vmatprep.subr.mxu0 0.0
    %223 = vmatpush1.msra.mxu0 %v202
    %224 = vmatprep.subr.mxu0 0.0
    %225 = vmatpush1.msra.mxu0 %v203
    %226 = vmatprep.subr.mxu0 0.0
    %227 = vmatpush1.msra.mxu0 %v204
    %228 = vmatprep.subr.mxu0 0.0
    %229 = vmatpush1.msra.mxu0 %v205
    %230 = vmatprep.subr.mxu0 0.0
    %231 = vmatpush1.msra.mxu0 %v206
    %232 = vmatprep.subr.mxu0 0.0
    %233 = vmatpush1.msra.mxu0 %v207
    %234 = vmatprep.subr.mxu0 0.0
    %235 = vmatpush1.msra.mxu0 %v208
    %236 = vmatprep.subr.mxu0 0.0
    %237 = vmatpush1.msra.mxu0 0.0
    %238 = vmatprep.subr.mxu0 0.0
    %239 = vmatpush1.msra.mxu0 0.0
    %240 = vmatprep.subr.mxu0 0.0
    %241 = vmatpush1.msra.mxu0 0.0
    %242 = vmatprep.subr.mxu0 0.0
    %243 = vmatpush1.msra.mxu0 0.0
    %244 = vmatprep.subr.mxu0 0.0
    %245 = vmatpush1.msra.mxu0 0.0
    %246 = vmatprep.subr.mxu0 0.0
    %247 = vmatpush1.msra.mxu0 0.0
    %248 = vmatprep.subr.mxu0 0.0
    %249 = vmatpush1.msra.mxu0 0.0
    %250 = vmatprep.subr.mxu0 0.0
    %251 = vmatpush1.msra.mxu0 0.0
    %252 = vmatprep.subr.mxu0 0.0
    %253 = vmatpush1.msra.mxu0 0.0
    %254 = vmatprep.subr.mxu0 0.0
    %255 = vmatpush1.msra.mxu0 0.0
    %256 = vmatprep.subr.mxu0 0.0
    %257 = vmatpush1.msra.mxu0 0.0
    %258 = vmatprep.subr.mxu0 0.0
    %259 = vmatpush1.msra.mxu0 0.0
    %260 = vmatprep.subr.mxu0 0.0
    %261 = vmatpush1.msra.mxu0 0.0
    %262 = vmatprep.subr.mxu0 0.0
    %263 = vmatpush1.msra.mxu0 0.0
    %264 = vmatprep.subr.mxu0 0.0
    %265 = vmatpush1.msra.mxu0 0.0
    %266 = vmatprep.subr.mxu0 0.0
    %267 = vmatpush1.msra.mxu0 0.0
    %268 = vmatprep.subr.mxu0 0.0
    %269 = vmatpush1.msra.mxu0 0.0
    %270 = vmatprep.subr.mxu0 0.0
    %271 = vmatpush1.msra.mxu0 0.0
    %272 = vmatprep.subr.mxu0 0.0
    %273 = vmatpush1.msra.mxu0 0.0
    %274 = vmatprep.subr.mxu0 0.0
    %275 = vmatpush1.msra.mxu0 0.0
    %276 = vmatprep.mubr.f32.mxu0 0.0
    %277 = vmatmul.mubr.f32.gmra.mrb[0].mxu0 %v210
    %v278 = vpop.f32.mrb[0].mxu0
    %v279 = vadd.f32 0.0, %v278
    %v280 = vpop.f32.mrb[0].mxu0
    %281 = vdwg.mxu0
    %v282 = vld [vmem:[%s5] sm:$0xff]
    %v283 = vld [vmem:[%s5 + $0x8] sm:$0xff]
    %v284 = vld [vmem:[%s5 + $0x10] sm:$0xff]
    %v285 = vld [vmem:[%s5 + $0x18] sm:$0xff]
    %v286 = vld [vmem:[%s5 + $0x20] sm:$0xff]
    %v287 = vld [vmem:[%s5 + $0x28] sm:$0xff]
    %v288 = vld [vmem:[%s5 + $0x30] sm:$0xff]
    %v289 = vld [vmem:[%s5 + $0x38] sm:$0xff]
    %v290 = vld [vmem:[%s5 + $0x40] sm:$0xff]
    %v291 = vld [vmem:[%s5 + $0x48] sm:$0xff]
    %v292 = vld [vmem:[%s5 + $0x50] sm:$0xff]
    %v293 = vld [vmem:[%s5 + $0x58] sm:$0xff]
    %294 = vmatprep.subr.mxu0 0.0
    %295 = vmatpush1.msra.mxu0 %v282
    %296 = vmatprep.subr.mxu0 0.0
    %297 = vmatpush1.msra.mxu0 %v283
    %298 = vmatprep.subr.mxu0 0.0
    %299 = vmatpush1.msra.mxu0 %v284
    %300 = vmatprep.subr.mxu0 0.0
    %301 = vmatpush1.msra.mxu0 %v285
    %302 = vmatprep.subr.mxu0 0.0
    %303 = vmatpush1.msra.mxu0 %v286
    %304 = vmatprep.subr.mxu0 0.0
    %305 = vmatpush1.msra.mxu0 %v287
    %306 = vmatprep.subr.mxu0 0.0
    %307 = vmatpush1.msra.mxu0 %v288
    %308 = vmatprep.subr.mxu0 0.0
    %309 = vmatpush1.msra.mxu0 %v289
    %310 = vmatprep.subr.mxu0 0.0
    %311 = vmatpush1.msra.mxu0 %v290
    %312 = vmatprep.subr.mxu0 0.0
    %313 = vmatpush1.msra.mxu0 %v291
    %314 = vmatprep.subr.mxu0 0.0
    %315 = vmatpush1.msra.mxu0 %v292
    %316 = vmatprep.subr.mxu0 0.0
    %317 = vmatpush1.msra.mxu0 %v293
    %318 = vmatprep.subr.mxu0 0.0
    %319 = vmatpush1.msra.mxu0 0.0
    %320 = vmatprep.subr.mxu0 0.0
    %321 = vmatpush1.msra.mxu0 0.0
    %322 = vmatprep.subr.mxu0 0.0
    %323 = vmatpush1.msra.mxu0 0.0
    %324 = vmatprep.subr.mxu0 0.0
    %325 = vmatpush1.msra.mxu0 0.0
    %326 = vmatprep.subr.mxu0 0.0
    %327 = vmatpush1.msra.mxu0 0.0
    %328 = vmatprep.subr.mxu0 0.0
    %329 = vmatpush1.msra.mxu0 0.0
    %330 = vmatprep.subr.mxu0 0.0
    %331 = vmatpush1.msra.mxu0 0.0
    %332 = vmatprep.subr.mxu0 0.0
    %333 = vmatpush1.msra.mxu0 0.0
    %334 = vmatprep.subr.mxu0 0.0
    %335 = vmatpush1.msra.mxu0 0.0
    %336 = vmatprep.subr.mxu0 0.0
    %337 = vmatpush1.msra.mxu0 0.0
    %338 = vmatprep.subr.mxu0 0.0
    %339 = vmatpush1.msra.mxu0 0.0
    %340 = vmatprep.subr.mxu0 0.0
    %341 = vmatpush1.msra.mxu0 0.0
    %342 = vmatprep.subr.mxu0 0.0
    %343 = vmatpush1.msra.mxu0 0.0
    %344 = vmatprep.subr.mxu0 0.0
    %345 = vmatpush1.msra.mxu0 0.0
    %346 = vmatprep.subr.mxu0 0.0
    %347 = vmatpush1.msra.mxu0 0.0
    %348 = vmatprep.subr.mxu0 0.0
    %349 = vmatpush1.msra.mxu0 0.0
    %350 = vmatprep.subr.mxu0 0.0
    %351 = vmatpush1.msra.mxu0 0.0
    %352 = vmatprep.subr.mxu0 0.0
    %353 = vmatpush1.msra.mxu0 0.0
    %354 = vmatprep.subr.mxu0 0.0
    %355 = vmatpush1.msra.mxu0 0.0
    %356 = vmatprep.subr.mxu0 0.0
    %357 = vmatpush1.msra.mxu0 0.0
    %358 = vmatprep.mubr.f32.mxu0 0.0
    %359 = vmatmul.mubr.f32.gmra.mrb[0].mxu0 %v210
    %v360 = vpop.f32.mrb[0].mxu0
    %v361 = vadd.f32 0.0, %v360
    %v362 = vpop.f32.mrb[0].mxu0
    %363 = vdwg.mxu0
    %v364 = vld [vmem:[%s9] sm:$0x1]
    %v366 = vlaneseq
    %v367 = vshrl.u32 %v366, 7
    %v368 = vsub.s32 0, %v367
    %v369 = vrot.slane %v364, %v368
    %v371 = vadd.f32 %v369, 0.0
    %s372 = sld [smem:[#allocation2]]
    %s373 = sld [smem:[#allocation2 + $0x1]]
    %s374 = sld [smem:[#allocation5]]
    %v375 = vstv %s372
    %v376 = vmul.f32 %v375, %v279
    %v377 = vstv %s373
    %v378 = vmul.f32 %v377, %v196
    %v379 = vadd.f32 %v376, %v378
    %v380 = vstv %s374
    %v381 = vadd.f32 %v379, %v380
    %v382 = vmax.f32 %v381, 0.0
    %v383 = vmul.f32 %v375, %v196
    %v384 = vmul.f32 %v377, %v361
    %v385 = vadd.f32 %v383, %v384
    %v386 = vadd.f32 %v385, %v380
    %v387 = vmax.f32 %v386, 0.0
    %v388 = vmax.f32 %v382, %v387
    %v389 = vld [vmem:[%s8] sm:$0xff]
    %v390 = vld [vmem:[%s8 + $0x8] sm:$0xff]
    %v391 = vld [vmem:[%s8 + $0x10] sm:$0xff]
    %v392 = vld [vmem:[%s8 + $0x18] sm:$0xff]
    %v393 = vld [vmem:[%s8 + $0x20] sm:$0xff]
    %v394 = vld [vmem:[%s8 + $0x28] sm:$0xff]
    %v395 = vld [vmem:[%s8 + $0x30] sm:$0xff]
    %v396 = vld [vmem:[%s8 + $0x38] sm:$0xff]
    %v397 = vld [vmem:[%s8 + $0x40] sm:$0xff]
    %v398 = vld [vmem:[%s8 + $0x48] sm:$0xff]
    %v399 = vld [vmem:[%s8 + $0x50] sm:$0xff]
    %v400 = vld [vmem:[%s8 + $0x58] sm:$0xff]
    %v402 = vsel %vm122, %v388, 0
    %404 = vmatprep.subr.mxu0 0.0
    %405 = vmatpush1.msra.mxu0 %v389
    %406 = vmatprep.subr.mxu0 0.0
    %407 = vmatpush1.msra.mxu0 %v390
    %408 = vmatprep.subr.mxu0 0.0
    %409 = vmatpush1.msra.mxu0 %v391
    %410 = vmatprep.subr.mxu0 0.0
    %411 = vmatpush1.msra.mxu0 %v392
    %412 = vmatprep.subr.mxu0 0.0
    %413 = vmatpush1.msra.mxu0 %v393
    %414 = vmatprep.subr.mxu0 0.0
    %415 = vmatpush1.msra.mxu0 %v394
    %416 = vmatprep.subr.mxu0 0.0
    %417 = vmatpush1.msra.mxu0 %v395
    %418 = vmatprep.subr.mxu0 0.0
    %419 = vmatpush1.msra.mxu0 %v396
    %420 = vmatprep.subr.mxu0 0.0
    %421 = vmatpush1.msra.mxu0 %v397
    %422 = vmatprep.subr.mxu0 0.0
    %423 = vmatpush1.msra.mxu0 %v398
    %424 = vmatprep.subr.mxu0 0.0
    %425 = vmatpush1.msra.mxu0 %v399
    %426 = vmatprep.subr.mxu0 0.0
    %427 = vmatpush1.msra.mxu0 %v400
    %428 = vmatprep.subr.mxu0 0.0
    %429 = vmatpush1.msra.mxu0 0.0
    %430 = vmatprep.subr.mxu0 0.0
    %431 = vmatpush1.msra.mxu0 0.0
    %432 = vmatprep.subr.mxu0 0.0
    %433 = vmatpush1.msra.mxu0 0.0
    %434 = vmatprep.subr.mxu0 0.0
    %435 = vmatpush1.msra.mxu0 0.0
    %436 = vmatprep.subr.mxu0 0.0
    %437 = vmatpush1.msra.mxu0 0.0
    %438 = vmatprep.subr.mxu0 0.0
    %439 = vmatpush1.msra.mxu0 0.0
    %440 = vmatprep.subr.mxu0 0.0
    %441 = vmatpush1.msra.mxu0 0.0
    %442 = vmatprep.subr.mxu0 0.0
    %443 = vmatpush1.msra.mxu0 0.0
    %444 = vmatprep.subr.mxu0 0.0
    %445 = vmatpush1.msra.mxu0 0.0
    %446 = vmatprep.subr.mxu0 0.0
    %447 = vmatpush1.msra.mxu0 0.0
    %448 = vmatprep.subr.mxu0 0.0
    %449 = vmatpush1.msra.mxu0 0.0
    %450 = vmatprep.subr.mxu0 0.0
    %451 = vmatpush1.msra.mxu0 0.0
    %452 = vmatprep.subr.mxu0 0.0
    %453 = vmatpush1.msra.mxu0 0.0
    %454 = vmatprep.subr.mxu0 0.0
    %455 = vmatpush1.msra.mxu0 0.0
    %456 = vmatprep.subr.mxu0 0.0
    %457 = vmatpush1.msra.mxu0 0.0
    %458 = vmatprep.subr.mxu0 0.0
    %459 = vmatpush1.msra.mxu0 0.0
    %460 = vmatprep.subr.mxu0 0.0
    %461 = vmatpush1.msra.mxu0 0.0
    %462 = vmatprep.subr.mxu0 0.0
    %463 = vmatpush1.msra.mxu0 0.0
    %464 = vmatprep.subr.mxu0 0.0
    %465 = vmatpush1.msra.mxu0 0.0
    %466 = vmatprep.subr.mxu0 0.0
    %467 = vmatpush1.msra.mxu0 0.0
    %468 = vmatprep.mubr.f32.mxu0 0.0
    %469 = vmatmul.mubr.f32.gmra.mrb[0].mxu0 %v402
    %v470 = vpop.f32.mrb[0].mxu0
    %v471 = vadd.f32 0.0, %v470
    %v472 = vpop.f32.mrb[0].mxu0
    %473 = vdwg.mxu0
    %v474 = vadd.f32 %v371, %v471
    %s475 = sld [smem:[#allocation2 + $0x80]]
    %s476 = sld [smem:[#allocation2 + $0x81]]
    %s477 = sld [smem:[#allocation5 + $0x1]]
    %v478 = vstv %s475
    %v479 = vmul.f32 %v478, %v279
    %v480 = vstv %s476
    %v481 = vmul.f32 %v480, %v196
    %v482 = vadd.f32 %v479, %v481
    %v483 = vstv %s477
    %v484 = vadd.f32 %v482, %v483
    %v485 = vmax.f32 %v484, 0.0
    %v486 = vmul.f32 %v478, %v196
    %v487 = vmul.f32 %v480, %v361
    %v488 = vadd.f32 %v486, %v487
    %v489 = vadd.f32 %v488, %v483
    %v490 = vmax.f32 %v489, 0.0
    %v491 = vmax.f32 %v485, %v490
    %s492 = scalar_lea.vmem %s8, 96
    %v493 = vld [vmem:[%s492] sm:$0xff]
    %v494 = vld [vmem:[%s492 + $0x8] sm:$0xff]
    %v495 = vld [vmem:[%s492 + $0x10] sm:$0xff]
    %v496 = vld [vmem:[%s492 + $0x18] sm:$0xff]
    %v497 = vld [vmem:[%s492 + $0x20] sm:$0xff]
    %v498 = vld [vmem:[%s492 + $0x28] sm:$0xff]
    %v499 = vld [vmem:[%s492 + $0x30] sm:$0xff]
    %v500 = vld [vmem:[%s492 + $0x38] sm:$0xff]
    %v501 = vld [vmem:[%s492 + $0x40] sm:$0xff]
    %v502 = vld [vmem:[%s492 + $0x48] sm:$0xff]
    %v503 = vld [vmem:[%s492 + $0x50] sm:$0xff]
    %v504 = vld [vmem:[%s492 + $0x58] sm:$0xff]
    %v506 = vsel %vm122, %v491, 0
    %508 = vmatprep.subr.mxu0 0.0
    %509 = vmatpush1.msra.mxu0 %v493
    %510 = vmatprep.subr.mxu0 0.0
    %511 = vmatpush1.msra.mxu0 %v494
    %512 = vmatprep.subr.mxu0 0.0
    %513 = vmatpush1.msra.mxu0 %v495
    %514 = vmatprep.subr.mxu0 0.0
    %515 = vmatpush1.msra.mxu0 %v496
    %516 = vmatprep.subr.mxu0 0.0
    %517 = vmatpush1.msra.mxu0 %v497
    %518 = vmatprep.subr.mxu0 0.0
    %519 = vmatpush1.msra.mxu0 %v498
    %520 = vmatprep.subr.mxu0 0.0
    %521 = vmatpush1.msra.mxu0 %v499
    %522 = vmatprep.subr.mxu0 0.0
    %523 = vmatpush1.msra.mxu0 %v500
    %524 = vmatprep.subr.mxu0 0.0
    %525 = vmatpush1.msra.mxu0 %v501
    %526 = vmatprep.subr.mxu0 0.0
    %527 = vmatpush1.msra.mxu0 %v502
    %528 = vmatprep.subr.mxu0 0.0
    %529 = vmatpush1.msra.mxu0 %v503
    %530 = vmatprep.subr.mxu0 0.0
    %531 = vmatpush1.msra.mxu0 %v504
    %532 = vmatprep.subr.mxu0 0.0
    %533 = vmatpush1.msra.mxu0 0.0
    %534 = vmatprep.subr.mxu0 0.0
    %535 = vmatpush1.msra.mxu0 0.0
    %536 = vmatprep.subr.mxu0 0.0
    %537 = vmatpush1.msra.mxu0 0.0
    %538 = vmatprep.subr.mxu0 0.0
    %539 = vmatpush1.msra.mxu0 0.0
    %540 = vmatprep.subr.mxu0 0.0
    %541 = vmatpush1.msra.mxu0 0.0
    %542 = vmatprep.subr.mxu0 0.0
    %543 = vmatpush1.msra.mxu0 0.0
    %544 = vmatprep.subr.mxu0 0.0
    %545 = vmatpush1.msra.mxu0 0.0
    %546 = vmatprep.subr.mxu0 0.0
    %547 = vmatpush1.msra.mxu0 0.0
    %548 = vmatprep.subr.mxu0 0.0
    %549 = vmatpush1.msra.mxu0 0.0
    %550 = vmatprep.subr.mxu0 0.0
    %551 = vmatpush1.msra.mxu0 0.0
    %552 = vmatprep.subr.mxu0 0.0
    %553 = vmatpush1.msra.mxu0 0.0
    %554 = vmatprep.subr.mxu0 0.0
    %555 = vmatpush1.msra.mxu0 0.0
    %556 = vmatprep.subr.mxu0 0.0
    %557 = vmatpush1.msra.mxu0 0.0
    %558 = vmatprep.subr.mxu0 0.0
    %559 = vmatpush1.msra.mxu0 0.0
    %560 = vmatprep.subr.mxu0 0.0
    %561 = vmatpush1.msra.mxu0 0.0
    %562 = vmatprep.subr.mxu0 0.0
    %563 = vmatpush1.msra.mxu0 0.0
    %564 = vmatprep.subr.mxu0 0.0
    %565 = vmatpush1.msra.mxu0 0.0
    %566 = vmatprep.subr.mxu0 0.0
    %567 = vmatpush1.msra.mxu0 0.0
    %568 = vmatprep.subr.mxu0 0.0
    %569 = vmatpush1.msra.mxu0 0.0
    %570 = vmatprep.subr.mxu0 0.0
    %571 = vmatpush1.msra.mxu0 0.0
    %572 = vmatprep.mubr.f32.mxu0 0.0
    %573 = vmatmul.mubr.f32.gmra.mrb[0].mxu0 %v506
    %v574 = vpop.f32.mrb[0].mxu0
    %v575 = vadd.f32 0.0, %v574
    %v576 = vpop.f32.mrb[0].mxu0
    %577 = vdwg.mxu0
    %v578 = vadd.f32 %v474, %v575
    %s579 = sld [smem:[#allocation2 + $0x100]]
    %s580 = sld [smem:[#allocation2 + $0x101]]
    %s581 = sld [smem:[#allocation5 + $0x2]]
    %v582 = vstv %s579
    %v583 = vmul.f32 %v582, %v279
    %v584 = vstv %s580
    %v585 = vmul.f32 %v584, %v196
    %v586 = vadd.f32 %v583, %v585
    %v587 = vstv %s581
    %v588 = vadd.f32 %v586, %v587
    %v589 = vmax.f32 %v588, 0.0
    %v590 = vmul.f32 %v582, %v196
    %v591 = vmul.f32 %v584, %v361
    %v592 = vadd.f32 %v590, %v591
    %v593 = vadd.f32 %v592, %v587
    %v594 = vmax.f32 %v593, 0.0
    %v595 = vmax.f32 %v589, %v594
    %s596 = scalar_lea.vmem %s8, 192
    %v597 = vld [vmem:[%s596] sm:$0xff]
    %v598 = vld [vmem:[%s596 + $0x8] sm:$0xff]
    %v599 = vld [vmem:[%s596 + $0x10] sm:$0xff]
    %v600 = vld [vmem:[%s596 + $0x18] sm:$0xff]
    %v601 = vld [vmem:[%s596 + $0x20] sm:$0xff]
    %v602 = vld [vmem:[%s596 + $0x28] sm:$0xff]
    %v603 = vld [vmem:[%s596 + $0x30] sm:$0xff]
    %v604 = vld [vmem:[%s596 + $0x38] sm:$0xff]
    %v605 = vld [vmem:[%s596 + $0x40] sm:$0xff]
    %v606 = vld [vmem:[%s596 + $0x48] sm:$0xff]
    %v607 = vld [vmem:[%s596 + $0x50] sm:$0xff]
    %v608 = vld [vmem:[%s596 + $0x58] sm:$0xff]
    %v610 = vsel %vm122, %v595, 0
    %612 = vmatprep.subr.mxu0 0.0
    %613 = vmatpush1.msra.mxu0 %v597
    %614 = vmatprep.subr.mxu0 0.0
    %615 = vmatpush1.msra.mxu0 %v598
    %616 = vmatprep.subr.mxu0 0.0
    %617 = vmatpush1.msra.mxu0 %v599
    %618 = vmatprep.subr.mxu0 0.0
    %619 = vmatpush1.msra.mxu0 %v600
    %620 = vmatprep.subr.mxu0 0.0
    %621 = vmatpush1.msra.mxu0 %v601
    %622 = vmatprep.subr.mxu0 0.0
    %623 = vmatpush1.msra.mxu0 %v602
    %624 = vmatprep.subr.mxu0 0.0
    %625 = vmatpush1.msra.mxu0 %v603
    %626 = vmatprep.subr.mxu0 0.0
    %627 = vmatpush1.msra.mxu0 %v604
    %628 = vmatprep.subr.mxu0 0.0
    %629 = vmatpush1.msra.mxu0 %v605
    %630 = vmatprep.subr.mxu0 0.0
    %631 = vmatpush1.msra.mxu0 %v606
    %632 = vmatprep.subr.mxu0 0.0
    %633 = vmatpush1.msra.mxu0 %v607
    %634 = vmatprep.subr.mxu0 0.0
    %635 = vmatpush1.msra.mxu0 %v608
    %636 = vmatprep.subr.mxu0 0.0
    %637 = vmatpush1.msra.mxu0 0.0
    %638 = vmatprep.subr.mxu0 0.0
    %639 = vmatpush1.msra.mxu0 0.0
    %640 = vmatprep.subr.mxu0 0.0
    %641 = vmatpush1.msra.mxu0 0.0
    %642 = vmatprep.subr.mxu0 0.0
    %643 = vmatpush1.msra.mxu0 0.0
    %644 = vmatprep.subr.mxu0 0.0
    %645 = vmatpush1.msra.mxu0 0.0
    %646 = vmatprep.subr.mxu0 0.0
    %647 = vmatpush1.msra.mxu0 0.0
    %648 = vmatprep.subr.mxu0 0.0
    %649 = vmatpush1.msra.mxu0 0.0
    %650 = vmatprep.subr.mxu0 0.0
    %651 = vmatpush1.msra.mxu0 0.0
    %652 = vmatprep.subr.mxu0 0.0
    %653 = vmatpush1.msra.mxu0 0.0
    %654 = vmatprep.subr.mxu0 0.0
    %655 = vmatpush1.msra.mxu0 0.0
    %656 = vmatprep.subr.mxu0 0.0
    %657 = vmatpush1.msra.mxu0 0.0
    %658 = vmatprep.subr.mxu0 0.0
    %659 = vmatpush1.msra.mxu0 0.0
    %660 = vmatprep.subr.mxu0 0.0
    %661 = vmatpush1.msra.mxu0 0.0
    %662 = vmatprep.subr.mxu0 0.0
    %663 = vmatpush1.msra.mxu0 0.0
    %664 = vmatprep.subr.mxu0 0.0
    %665 = vmatpush1.msra.mxu0 0.0
    %666 = vmatprep.subr.mxu0 0.0
    %667 = vmatpush1.msra.mxu0 0.0
    %668 = vmatprep.subr.mxu0 0.0
    %669 = vmatpush1.msra.mxu0 0.0
    %670 = vmatprep.subr.mxu0 0.0
    %671 = vmatpush1.msra.mxu0 0.0
    %672 = vmatprep.subr.mxu0 0.0
    %673 = vmatpush1.msra.mxu0 0.0
    %674 = vmatprep.subr.mxu0 0.0
    %675 = vmatpush1.msra.mxu0 0.0
    %676 = vmatprep.mubr.f32.mxu0 0.0
    %677 = vmatmul.mubr.f32.gmra.mrb[0].mxu0 %v610
    %v678 = vpop.f32.mrb[0].mxu0
    %v679 = vadd.f32 0.0, %v678
    %v680 = vpop.f32.mrb[0].mxu0
    %681 = vdwg.mxu0
    %v682 = vadd.f32 %v578, %v679
    %s683 = sld [smem:[#allocation2 + $0x180]]
    %s684 = sld [smem:[#allocation2 + $0x181]]
    %s685 = sld [smem:[#allocation5 + $0x3]]
    %v686 = vstv %s683
    %v687 = vmul.f32 %v686, %v279
    %v688 = vstv %s684
    %v689 = vmul.f32 %v688, %v196
    %v690 = vadd.f32 %v687, %v689
    %v691 = vstv %s685
    %v692 = vadd.f32 %v690, %v691
    %v693 = vmax.f32 %v692, 0.0
    %v694 = vmul.f32 %v686, %v196
    %v695 = vmul.f32 %v688, %v361
    %v696 = vadd.f32 %v694, %v695
    %v697 = vadd.f32 %v696, %v691
    %v698 = vmax.f32 %v697, 0.0
    %v699 = vmax.f32 %v693, %v698
    %s700 = scalar_lea.vmem %s8, 288
    %v701 = vld [vmem:[%s700] sm:$0xff]
    %v702 = vld [vmem:[%s700 + $0x8] sm:$0xff]
    %v703 = vld [vmem:[%s700 + $0x10] sm:$0xff]
    %v704 = vld [vmem:[%s700 + $0x18] sm:$0xff]
    %v705 = vld [vmem:[%s700 + $0x20] sm:$0xff]
    %v706 = vld [vmem:[%s700 + $0x28] sm:$0xff]
    %v707 = vld [vmem:[%s700 + $0x30] sm:$0xff]
    %v708 = vld [vmem:[%s700 + $0x38] sm:$0xff]
    %v709 = vld [vmem:[%s700 + $0x40] sm:$0xff]
    %v710 = vld [vmem:[%s700 + $0x48] sm:$0xff]
    %v711 = vld [vmem:[%s700 + $0x50] sm:$0xff]
    %v712 = vld [vmem:[%s700 + $0x58] sm:$0xff]
    %v714 = vsel %vm122, %v699, 0
    %716 = vmatprep.subr.mxu0 0.0
    %717 = vmatpush1.msra.mxu0 %v701
    %718 = vmatprep.subr.mxu0 0.0
    %719 = vmatpush1.msra.mxu0 %v702
    %720 = vmatprep.subr.mxu0 0.0
    %721 = vmatpush1.msra.mxu0 %v703
    %722 = vmatprep.subr.mxu0 0.0
    %723 = vmatpush1.msra.mxu0 %v704
    %724 = vmatprep.subr.mxu0 0.0
    %725 = vmatpush1.msra.mxu0 %v705
    %726 = vmatprep.subr.mxu0 0.0
    %727 = vmatpush1.msra.mxu0 %v706
    %728 = vmatprep.subr.mxu0 0.0
    %729 = vmatpush1.msra.mxu0 %v707
    %730 = vmatprep.subr.mxu0 0.0
    %731 = vmatpush1.msra.mxu0 %v708
    %732 = vmatprep.subr.mxu0 0.0
    %733 = vmatpush1.msra.mxu0 %v709
    %734 = vmatprep.subr.mxu0 0.0
    %735 = vmatpush1.msra.mxu0 %v710
    %736 = vmatprep.subr.mxu0 0.0
    %737 = vmatpush1.msra.mxu0 %v711
    %738 = vmatprep.subr.mxu0 0.0
    %739 = vmatpush1.msra.mxu0 %v712
    %740 = vmatprep.subr.mxu0 0.0
    %741 = vmatpush1.msra.mxu0 0.0
    %742 = vmatprep.subr.mxu0 0.0
    %743 = vmatpush1.msra.mxu0 0.0
    %744 = vmatprep.subr.mxu0 0.0
    %745 = vmatpush1.msra.mxu0 0.0
    %746 = vmatprep.subr.mxu0 0.0
    %747 = vmatpush1.msra.mxu0 0.0
    %748 = vmatprep.subr.mxu0 0.0
    %749 = vmatpush1.msra.mxu0 0.0
    %750 = vmatprep.subr.mxu0 0.0
    %751 = vmatpush1.msra.mxu0 0.0
    %752 = vmatprep.subr.mxu0 0.0
    %753 = vmatpush1.msra.mxu0 0.0
    %754 = vmatprep.subr.mxu0 0.0
    %755 = vmatpush1.msra.mxu0 0.0
    %756 = vmatprep.subr.mxu0 0.0
    %757 = vmatpush1.msra.mxu0 0.0
    %758 = vmatprep.subr.mxu0 0.0
    %759 = vmatpush1.msra.mxu0 0.0
    %760 = vmatprep.subr.mxu0 0.0
    %761 = vmatpush1.msra.mxu0 0.0
    %762 = vmatprep.subr.mxu0 0.0
    %763 = vmatpush1.msra.mxu0 0.0
    %764 = vmatprep.subr.mxu0 0.0
    %765 = vmatpush1.msra.mxu0 0.0
    %766 = vmatprep.subr.mxu0 0.0
    %767 = vmatpush1.msra.mxu0 0.0
    %768 = vmatprep.subr.mxu0 0.0
    %769 = vmatpush1.msra.mxu0 0.0
    %770 = vmatprep.subr.mxu0 0.0
    %771 = vmatpush1.msra.mxu0 0.0
    %772 = vmatprep.subr.mxu0 0.0
    %773 = vmatpush1.msra.mxu0 0.0
    %774 = vmatprep.subr.mxu0 0.0
    %775 = vmatpush1.msra.mxu0 0.0
    %776 = vmatprep.subr.mxu0 0.0
    %777 = vmatpush1.msra.mxu0 0.0
    %778 = vmatprep.subr.mxu0 0.0
    %779 = vmatpush1.msra.mxu0 0.0
    %780 = vmatprep.mubr.f32.mxu0 0.0
    %781 = vmatmul.mubr.f32.gmra.mrb[0].mxu0 %v714
    %v782 = vpop.f32.mrb[0].mxu0
    %v783 = vadd.f32 0.0, %v782
    %v784 = vpop.f32.mrb[0].mxu0
    %785 = vdwg.mxu0
    %v786 = vadd.f32 %v682, %v783
    %v787 = vmax.f32 %v786, 0.0
    %v788 = vld [vmem:[%s13] sm:$0x1]
    %v790 = vlaneseq
    %v791 = vshrl.u32 %v790, 7
    %v792 = vsub.s32 0, %v791
    %v793 = vrot.slane %v788, %v792
    %v795 = vadd.f32 %v793, 0.0
    %v796 = vld [vmem:[%s1] sm:$0x3]
    %s797 = scalar_lea.vmem %s1, 2
    %v798 = vld [vmem:[%s797] sm:$0x3]
    %s799 = scalar_lea.vmem %s1, 4
    %v800 = vld [vmem:[%s799] sm:$0x3]
    %s801 = sld [smem:[#allocation7]]
    %s802 = sld [smem:[#allocation7 + $0x1]]
    %s803 = sld [smem:[#allocation7 + $0x2]]
    %s804 = sld [smem:[#allocation7 + $0x3]]
    %s805 = sld [smem:[#allocation8]]
    %v806 = vstv %s801
    %v807 = vmul.f32 %v806, %v796
    %v808 = vstv %s802
    %v809 = vmul.f32 %v808, %v796
    %811 = vrot.lane.b32.xlu0 %v809, 127
    %v812 = vpop.permute.xlu0 %811
    %v814 = vadd.f32 %v807, %v812
    %v815 = vstv %s803
    %v816 = vmul.f32 %v815, %v798
    %v817 = vadd.f32 %v814, %v816
    %v818 = vstv %s804
    %v819 = vmul.f32 %v818, %v798
    %821 = vrot.lane.b32.xlu0 %v819, 127
    %v822 = vpop.permute.xlu0 %821
    %v824 = vadd.f32 %v817, %v822
    %v825 = vstv %s805
    %v826 = vadd.f32 %v824, %v825
    %v827 = vmax.f32 %v826, 0.0
    %v828 = vmul.f32 %v806, %v798
    %v829 = vmul.f32 %v808, %v798
    %831 = vrot.lane.b32.xlu0 %v829, 127
    %v832 = vpop.permute.xlu0 %831
    %v834 = vadd.f32 %v828, %v832
    %v835 = vmul.f32 %v815, %v800
    %v836 = vadd.f32 %v834, %v835
    %v837 = vmul.f32 %v818, %v800
    %839 = vrot.lane.b32.xlu0 %v837, 127
    %v840 = vpop.permute.xlu0 %839
    %v842 = vadd.f32 %v836, %v840
    %v843 = vadd.f32 %v842, %v825
    %v844 = vmax.f32 %v843, 0.0
    %846 = vrot.lane.b32.xlu0 %v827, 127
    %v847 = vpop.permute.xlu0 %846
    %v849 = vmax.f32 %v827, %v847
    %851 = vrot.lane.b32.xlu0 %v844, 127
    %v852 = vpop.permute.xlu0 %851
    %v854 = vmax.f32 %v844, %v852
    %v855 = vmax.f32 %v849, %v854
    %v856 = vld [vmem:[%s12] sm:$0xff]
    %v857 = vld [vmem:[%s12 + $0x8] sm:$0xff]
    %v858 = vld [vmem:[%s12 + $0x10] sm:$0xff]
    %v859 = vld [vmem:[%s12 + $0x18] sm:$0xff]
    %v860 = vld [vmem:[%s12 + $0x20] sm:$0x3]
    %vm861 = vcmask 277504
    %v863 = vsel %vm861, %v855, 0
    %vm865 = vcmask 1041408
    %v867 = vsel %vm865, %v860, 0
    %869 = vmatprep.subr.mxu0 0.0
    %870 = vmatpush1.msra.mxu0 %v856
    %871 = vmatprep.subr.mxu0 0.0
    %872 = vmatpush1.msra.mxu0 %v857
    %873 = vmatprep.subr.mxu0 0.0
    %874 = vmatpush1.msra.mxu0 %v858
    %875 = vmatprep.subr.mxu0 0.0
    %876 = vmatpush1.msra.mxu0 %v859
    %877 = vmatprep.subr.mxu0 0.0
    %878 = vmatpush1.msra.mxu0 %v867
    %879 = vmatprep.subr.mxu0 0.0
    %880 = vmatpush1.msra.mxu0 0.0
    %881 = vmatprep.subr.mxu0 0.0
    %882 = vmatpush1.msra.mxu0 0.0
    %883 = vmatprep.subr.mxu0 0.0
    %884 = vmatpush1.msra.mxu0 0.0
    %885 = vmatprep.subr.mxu0 0.0
    %886 = vmatpush1.msra.mxu0 0.0
    %887 = vmatprep.subr.mxu0 0.0
    %888 = vmatpush1.msra.mxu0 0.0
    %889 = vmatprep.subr.mxu0 0.0
    %890 = vmatpush1.msra.mxu0 0.0
    %891 = vmatprep.subr.mxu0 0.0
    %892 = vmatpush1.msra.mxu0 0.0
    %893 = vmatprep.subr.mxu0 0.0
    %894 = vmatpush1.msra.mxu0 0.0
    %895 = vmatprep.subr.mxu0 0.0
    %896 = vmatpush1.msra.mxu0 0.0
    %897 = vmatprep.subr.mxu0 0.0
    %898 = vmatpush1.msra.mxu0 0.0
    %899 = vmatprep.subr.mxu0 0.0
    %900 = vmatpush1.msra.mxu0 0.0
    %901 = vmatprep.subr.mxu0 0.0
    %902 = vmatpush1.msra.mxu0 0.0
    %903 = vmatprep.subr.mxu0 0.0
    %904 = vmatpush1.msra.mxu0 0.0
    %905 = vmatprep.subr.mxu0 0.0
    %906 = vmatpush1.msra.mxu0 0.0
    %907 = vmatprep.subr.mxu0 0.0
    %908 = vmatpush1.msra.mxu0 0.0
    %909 = vmatprep.subr.mxu0 0.0
    %910 = vmatpush1.msra.mxu0 0.0
    %911 = vmatprep.subr.mxu0 0.0
    %912 = vmatpush1.msra.mxu0 0.0
    %913 = vmatprep.subr.mxu0 0.0
    %914 = vmatpush1.msra.mxu0 0.0
    %915 = vmatprep.subr.mxu0 0.0
    %916 = vmatpush1.msra.mxu0 0.0
    %917 = vmatprep.subr.mxu0 0.0
    %918 = vmatpush1.msra.mxu0 0.0
    %919 = vmatprep.subr.mxu0 0.0
    %920 = vmatpush1.msra.mxu0 0.0
    %921 = vmatprep.subr.mxu0 0.0
    %922 = vmatpush1.msra.mxu0 0.0
    %923 = vmatprep.subr.mxu0 0.0
    %924 = vmatpush1.msra.mxu0 0.0
    %925 = vmatprep.subr.mxu0 0.0
    %926 = vmatpush1.msra.mxu0 0.0
    %927 = vmatprep.subr.mxu0 0.0
    %928 = vmatpush1.msra.mxu0 0.0
    %929 = vmatprep.subr.mxu0 0.0
    %930 = vmatpush1.msra.mxu0 0.0
    %931 = vmatprep.subr.mxu0 0.0
    %932 = vmatpush1.msra.mxu0 0.0
    %933 = vmatprep.mubr.f32.mxu0 0.0
    %934 = vmatmul.mubr.f32.gmra.mrb[0].mxu0 %v863
    %v935 = vpop.f32.mrb[0].mxu0
    %v936 = vadd.f32 0.0, %v935
    %v937 = vpop.f32.mrb[0].mxu0
    %938 = vdwg.mxu0
    %v939 = vadd.f32 %v795, %v936
    %s940 = sld [smem:[#allocation7 + $0x80]]
    %s941 = sld [smem:[#allocation7 + $0x81]]
    %s942 = sld [smem:[#allocation7 + $0x82]]
    %s943 = sld [smem:[#allocation7 + $0x83]]
    %s944 = sld [smem:[#allocation8 + $0x1]]
    %v945 = vstv %s940
    %v946 = vmul.f32 %v945, %v796
    %v947 = vstv %s941
    %v948 = vmul.f32 %v947, %v796
    %950 = vrot.lane.b32.xlu0 %v948, 127
    %v951 = vpop.permute.xlu0 %950
    %v953 = vadd.f32 %v946, %v951
    %v954 = vstv %s942
    %v955 = vmul.f32 %v954, %v798
    %v956 = vadd.f32 %v953, %v955
    %v957 = vstv %s943
    %v958 = vmul.f32 %v957, %v798
    %960 = vrot.lane.b32.xlu0 %v958, 127
    %v961 = vpop.permute.xlu0 %960
    %v963 = vadd.f32 %v956, %v961
    %v964 = vstv %s944
    %v965 = vadd.f32 %v963, %v964
    %v966 = vmax.f32 %v965, 0.0
    %v967 = vmul.f32 %v945, %v798
    %v968 = vmul.f32 %v947, %v798
    %970 = vrot.lane.b32.xlu0 %v968, 127
    %v971 = vpop.permute.xlu0 %970
    %v973 = vadd.f32 %v967, %v971
    %v974 = vmul.f32 %v954, %v800
    %v975 = vadd.f32 %v973, %v974
    %v976 = vmul.f32 %v957, %v800
    %978 = vrot.lane.b32.xlu0 %v976, 127
    %v979 = vpop.permute.xlu0 %978
    %v981 = vadd.f32 %v975, %v979
    %v982 = vadd.f32 %v981, %v964
    %v983 = vmax.f32 %v982, 0.0
    %985 = vrot.lane.b32.xlu0 %v966, 127
    %v986 = vpop.permute.xlu0 %985
    %v988 = vmax.f32 %v966, %v986
    %990 = vrot.lane.b32.xlu0 %v983, 127
    %v991 = vpop.permute.xlu0 %990
    %v993 = vmax.f32 %v983, %v991
    %v994 = vmax.f32 %v988, %v993
    %s995 = scalar_lea.vmem %s12, 120
    %v996 = vld [vmem:[%s995] sm:$0xff]
    %v997 = vld [vmem:[%s995 + $0x8] sm:$0xff]
    %v998 = vld [vmem:[%s995 + $0x10] sm:$0xff]
    %v999 = vld [vmem:[%s995 + $0x18] sm:$0xff]
    %v1000 = vld [vmem:[%s995 + $0x20] sm:$0x3]
    %v1002 = vsel %vm861, %v994, 0
    %v1005 = vsel %vm865, %v1000, 0
    %1007 = vmatprep.subr.mxu0 0.0
    %1008 = vmatpush1.msra.mxu0 %v996
    %1009 = vmatprep.subr.mxu0 0.0
    %1010 = vmatpush1.msra.mxu0 %v997
    %1011 = vmatprep.subr.mxu0 0.0
    %1012 = vmatpush1.msra.mxu0 %v998
    %1013 = vmatprep.subr.mxu0 0.0
    %1014 = vmatpush1.msra.mxu0 %v999
    %1015 = vmatprep.subr.mxu0 0.0
    %1016 = vmatpush1.msra.mxu0 %v1005
    %1017 = vmatprep.subr.mxu0 0.0
    %1018 = vmatpush1.msra.mxu0 0.0
    %1019 = vmatprep.subr.mxu0 0.0
    %1020 = vmatpush1.msra.mxu0 0.0
    %1021 = vmatprep.subr.mxu0 0.0
    %1022 = vmatpush1.msra.mxu0 0.0
    %1023 = vmatprep.subr.mxu0 0.0
    %1024 = vmatpush1.msra.mxu0 0.0
    %1025 = vmatprep.subr.mxu0 0.0
    %1026 = vmatpush1.msra.mxu0 0.0
    %1027 = vmatprep.subr.mxu0 0.0
    %1028 = vmatpush1.msra.mxu0 0.0
    %1029 = vmatprep.subr.mxu0 0.0
    %1030 = vmatpush1.msra.mxu0 0.0
    %1031 = vmatprep.subr.mxu0 0.0
    %1032 = vmatpush1.msra.mxu0 0.0
    %1033 = vmatprep.subr.mxu0 0.0
    %1034 = vmatpush1.msra.mxu0 0.0
    %1035 = vmatprep.subr.mxu0 0.0
    %1036 = vmatpush1.msra.mxu0 0.0
    %1037 = vmatprep.subr.mxu0 0.0
    %1038 = vmatpush1.msra.mxu0 0.0
    %1039 = vmatprep.subr.mxu0 0.0
    %1040 = vmatpush1.msra.mxu0 0.0
    %1041 = vmatprep.subr.mxu0 0.0
    %1042 = vmatpush1.msra.mxu0 0.0
    %1043 = vmatprep.subr.mxu0 0.0
    %1044 = vmatpush1.msra.mxu0 0.0
    %1045 = vmatprep.subr.mxu0 0.0
    %1046 = vmatpush1.msra.mxu0 0.0
    %1047 = vmatprep.subr.mxu0 0.0
    %1048 = vmatpush1.msra.mxu0 0.0
    %1049 = vmatprep.subr.mxu0 0.0
    %1050 = vmatpush1.msra.mxu0 0.0
    %1051 = vmatprep.subr.mxu0 0.0
    %1052 = vmatpush1.msra.mxu0 0.0
    %1053 = vmatprep.subr.mxu0 0.0
    %1054 = vmatpush1.msra.mxu0 0.0
    %1055 = vmatprep.subr.mxu0 0.0
    %1056 = vmatpush1.msra.mxu0 0.0
    %1057 = vmatprep.subr.mxu0 0.0
    %1058 = vmatpush1.msra.mxu0 0.0
    %1059 = vmatprep.subr.mxu0 0.0
    %1060 = vmatpush1.msra.mxu0 0.0
    %1061 = vmatprep.subr.mxu0 0.0
    %1062 = vmatpush1.msra.mxu0 0.0
    %1063 = vmatprep.subr.mxu0 0.0
    %1064 = vmatpush1.msra.mxu0 0.0
    %1065 = vmatprep.subr.mxu0 0.0
    %1066 = vmatpush1.msra.mxu0 0.0
    %1067 = vmatprep.subr.mxu0 0.0
    %1068 = vmatpush1.msra.mxu0 0.0
    %1069 = vmatprep.subr.mxu0 0.0
    %1070 = vmatpush1.msra.mxu0 0.0
    %1071 = vmatprep.mubr.f32.mxu0 0.0
    %1072 = vmatmul.mubr.f32.gmra.mrb[0].mxu0 %v1002
    %v1073 = vpop.f32.mrb[0].mxu0
    %v1074 = vadd.f32 0.0, %v1073
    %v1075 = vpop.f32.mrb[0].mxu0
    %1076 = vdwg.mxu0
    %v1077 = vadd.f32 %v939, %v1074
    %s1078 = sld [smem:[#allocation7 + $0x100]]
    %s1079 = sld [smem:[#allocation7 + $0x101]]
    %s1080 = sld [smem:[#allocation7 + $0x102]]
    %s1081 = sld [smem:[#allocation7 + $0x103]]
    %s1082 = sld [smem:[#allocation8 + $0x2]]
    %v1083 = vstv %s1078
    %v1084 = vmul.f32 %v1083, %v796
    %v1085 = vstv %s1079
    %v1086 = vmul.f32 %v1085, %v796
    %1088 = vrot.lane.b32.xlu0 %v1086, 127
    %v1089 = vpop.permute.xlu0 %1088
    %v1091 = vadd.f32 %v1084, %v1089
    %v1092 = vstv %s1080
    %v1093 = vmul.f32 %v1092, %v798
    %v1094 = vadd.f32 %v1091, %v1093
    %v1095 = vstv %s1081
    %v1096 = vmul.f32 %v1095, %v798
    %1098 = vrot.lane.b32.xlu0 %v1096, 127
    %v1099 = vpop.permute.xlu0 %1098
    %v1101 = vadd.f32 %v1094, %v1099
    %v1102 = vstv %s1082
    %v1103 = vadd.f32 %v1101, %v1102
    %v1104 = vmax.f32 %v1103, 0.0
    %v1105 = vmul.f32 %v1083, %v798
    %v1106 = vmul.f32 %v1085, %v798
    %1108 = vrot.lane.b32.xlu0 %v1106, 127
    %v1109 = vpop.permute.xlu0 %1108
    %v1111 = vadd.f32 %v1105, %v1109
    %v1112 = vmul.f32 %v1092, %v800
    %v1113 = vadd.f32 %v1111, %v1112
    %v1114 = vmul.f32 %v1095, %v800
    %1116 = vrot.lane.b32.xlu0 %v1114, 127
    %v1117 = vpop.permute.xlu0 %1116
    %v1119 = vadd.f32 %v1113, %v1117
    %v1120 = vadd.f32 %v1119, %v1102
    %v1121 = vmax.f32 %v1120, 0.0
    %1123 = vrot.lane.b32.xlu0 %v1104, 127
    %v1124 = vpop.permute.xlu0 %1123
    %v1126 = vmax.f32 %v1104, %v1124
    %1128 = vrot.lane.b32.xlu0 %v1121, 127
    %v1129 = vpop.permute.xlu0 %1128
    %v1131 = vmax.f32 %v1121, %v1129
    %v1132 = vmax.f32 %v1126, %v1131
    %s1133 = scalar_lea.vmem %s12, 240
    %v1134 = vld [vmem:[%s1133] sm:$0xff]
    %v1135 = vld [vmem:[%s1133 + $0x8] sm:$0xff]
    %v1136 = vld [vmem:[%s1133 + $0x10] sm:$0xff]
    %v1137 = vld [vmem:[%s1133 + $0x18] sm:$0xff]
    %v1138 = vld [vmem:[%s1133 + $0x20] sm:$0x3]
    %v1140 = vsel %vm861, %v1132, 0
    %v1143 = vsel %vm865, %v1138, 0
    %1145 = vmatprep.subr.mxu0 0.0
    %1146 = vmatpush1.msra.mxu0 %v1134
    %1147 = vmatprep.subr.mxu0 0.0
    %1148 = vmatpush1.msra.mxu0 %v1135
    %1149 = vmatprep.subr.mxu0 0.0
    %1150 = vmatpush1.msra.mxu0 %v1136
    %1151 = vmatprep.subr.mxu0 0.0
    %1152 = vmatpush1.msra.mxu0 %v1137
    %1153 = vmatprep.subr.mxu0 0.0
    %1154 = vmatpush1.msra.mxu0 %v1143
    %1155 = vmatprep.subr.mxu0 0.0
    %1156 = vmatpush1.msra.mxu0 0.0
    %1157 = vmatprep.subr.mxu0 0.0
    %1158 = vmatpush1.msra.mxu0 0.0
    %1159 = vmatprep.subr.mxu0 0.0
    %1160 = vmatpush1.msra.mxu0 0.0
    %1161 = vmatprep.subr.mxu0 0.0
    %1162 = vmatpush1.msra.mxu0 0.0
    %1163 = vmatprep.subr.mxu0 0.0
    %1164 = vmatpush1.msra.mxu0 0.0
    %1165 = vmatprep.subr.mxu0 0.0
    %1166 = vmatpush1.msra.mxu0 0.0
    %1167 = vmatprep.subr.mxu0 0.0
    %1168 = vmatpush1.msra.mxu0 0.0
    %1169 = vmatprep.subr.mxu0 0.0
    %1170 = vmatpush1.msra.mxu0 0.0
    %1171 = vmatprep.subr.mxu0 0.0
    %1172 = vmatpush1.msra.mxu0 0.0
    %1173 = vmatprep.subr.mxu0 0.0
    %1174 = vmatpush1.msra.mxu0 0.0
    %1175 = vmatprep.subr.mxu0 0.0
    %1176 = vmatpush1.msra.mxu0 0.0
    %1177 = vmatprep.subr.mxu0 0.0
    %1178 = vmatpush1.msra.mxu0 0.0
    %1179 = vmatprep.subr.mxu0 0.0
    %1180 = vmatpush1.msra.mxu0 0.0
    %1181 = vmatprep.subr.mxu0 0.0
    %1182 = vmatpush1.msra.mxu0 0.0
    %1183 = vmatprep.subr.mxu0 0.0
    %1184 = vmatpush1.msra.mxu0 0.0
    %1185 = vmatprep.subr.mxu0 0.0
    %1186 = vmatpush1.msra.mxu0 0.0
    %1187 = vmatprep.subr.mxu0 0.0
    %1188 = vmatpush1.msra.mxu0 0.0
    %1189 = vmatprep.subr.mxu0 0.0
    %1190 = vmatpush1.msra.mxu0 0.0
    %1191 = vmatprep.subr.mxu0 0.0
    %1192 = vmatpush1.msra.mxu0 0.0
    %1193 = vmatprep.subr.mxu0 0.0
    %1194 = vmatpush1.msra.mxu0 0.0
    %1195 = vmatprep.subr.mxu0 0.0
    %1196 = vmatpush1.msra.mxu0 0.0
    %1197 = vmatprep.subr.mxu0 0.0
    %1198 = vmatpush1.msra.mxu0 0.0
    %1199 = vmatprep.subr.mxu0 0.0
    %1200 = vmatpush1.msra.mxu0 0.0
    %1201 = vmatprep.subr.mxu0 0.0
    %1202 = vmatpush1.msra.mxu0 0.0
    %1203 = vmatprep.subr.mxu0 0.0
    %1204 = vmatpush1.msra.mxu0 0.0
    %1205 = vmatprep.subr.mxu0 0.0
    %1206 = vmatpush1.msra.mxu0 0.0
    %1207 = vmatprep.subr.mxu0 0.0
    %1208 = vmatpush1.msra.mxu0 0.0
    %1209 = vmatprep.mubr.f32.mxu0 0.0
    %1210 = vmatmul.mubr.f32.gmra.mrb[0].mxu0 %v1140
    %v1211 = vpop.f32.mrb[0].mxu0
    %v1212 = vadd.f32 0.0, %v1211
    %v1213 = vpop.f32.mrb[0].mxu0
    %1214 = vdwg.mxu0
    %v1215 = vadd.f32 %v1077, %v1212
    %s1216 = sld [smem:[#allocation7 + $0x180]]
    %s1217 = sld [smem:[#allocation7 + $0x181]]
    %s1218 = sld [smem:[#allocation7 + $0x182]]
    %s1219 = sld [smem:[#allocation7 + $0x183]]
    %s1220 = sld [smem:[#allocation8 + $0x3]]
    %v1221 = vstv %s1216
    %v1222 = vmul.f32 %v1221, %v796
    %v1223 = vstv %s1217
    %v1224 = vmul.f32 %v1223, %v796
    %1226 = vrot.lane.b32.xlu0 %v1224, 127
    %v1227 = vpop.permute.xlu0 %1226
    %v1229 = vadd.f32 %v1222, %v1227
    %v1230 = vstv %s1218
    %v1231 = vmul.f32 %v1230, %v798
    %v1232 = vadd.f32 %v1229, %v1231
    %v1233 = vstv %s1219
    %v1234 = vmul.f32 %v1233, %v798
    %1236 = vrot.lane.b32.xlu0 %v1234, 127
    %v1237 = vpop.permute.xlu0 %1236
    %v1239 = vadd.f32 %v1232, %v1237
    %v1240 = vstv %s1220
    %v1241 = vadd.f32 %v1239, %v1240
    %v1242 = vmax.f32 %v1241, 0.0
    %v1243 = vmul.f32 %v1221, %v798
    %v1244 = vmul.f32 %v1223, %v798
    %1246 = vrot.lane.b32.xlu0 %v1244, 127
    %v1247 = vpop.permute.xlu0 %1246
    %v1249 = vadd.f32 %v1243, %v1247
    %v1250 = vmul.f32 %v1230, %v800
    %v1251 = vadd.f32 %v1249, %v1250
    %v1252 = vmul.f32 %v1233, %v800
    %1254 = vrot.lane.b32.xlu0 %v1252, 127
    %v1255 = vpop.permute.xlu0 %1254
    %v1257 = vadd.f32 %v1251, %v1255
    %v1258 = vadd.f32 %v1257, %v1240
    %v1259 = vmax.f32 %v1258, 0.0
    %1261 = vrot.lane.b32.xlu0 %v1242, 127
    %v1262 = vpop.permute.xlu0 %1261
    %v1264 = vmax.f32 %v1242, %v1262
    %1266 = vrot.lane.b32.xlu0 %v1259, 127
    %v1267 = vpop.permute.xlu0 %1266
    %v1269 = vmax.f32 %v1259, %v1267
    %v1270 = vmax.f32 %v1264, %v1269
    %s1271 = scalar_lea.vmem %s12, 360
    %v1272 = vld [vmem:[%s1271] sm:$0xff]
    %v1273 = vld [vmem:[%s1271 + $0x8] sm:$0xff]
    %v1274 = vld [vmem:[%s1271 + $0x10] sm:$0xff]
    %v1275 = vld [vmem:[%s1271 + $0x18] sm:$0xff]
    %v1276 = vld [vmem:[%s1271 + $0x20] sm:$0x3]
    %v1278 = vsel %vm861, %v1270, 0
    %v1281 = vsel %vm865, %v1276, 0
    %1283 = vmatprep.subr.mxu0 0.0
    %1284 = vmatpush1.msra.mxu0 %v1272
    %1285 = vmatprep.subr.mxu0 0.0
    %1286 = vmatpush1.msra.mxu0 %v1273
    %1287 = vmatprep.subr.mxu0 0.0
    %1288 = vmatpush1.msra.mxu0 %v1274
    %1289 = vmatprep.subr.mxu0 0.0
    %1290 = vmatpush1.msra.mxu0 %v1275
    %1291 = vmatprep.subr.mxu0 0.0
    %1292 = vmatpush1.msra.mxu0 %v1281
    %1293 = vmatprep.subr.mxu0 0.0
    %1294 = vmatpush1.msra.mxu0 0.0
    %1295 = vmatprep.subr.mxu0 0.0
    %1296 = vmatpush1.msra.mxu0 0.0
    %1297 = vmatprep.subr.mxu0 0.0
    %1298 = vmatpush1.msra.mxu0 0.0
    %1299 = vmatprep.subr.mxu0 0.0
    %1300 = vmatpush1.msra.mxu0 0.0
    %1301 = vmatprep.subr.mxu0 0.0
    %1302 = vmatpush1.msra.mxu0 0.0
    %1303 = vmatprep.subr.mxu0 0.0
    %1304 = vmatpush1.msra.mxu0 0.0
    %1305 = vmatprep.subr.mxu0 0.0
    %1306 = vmatpush1.msra.mxu0 0.0
    %1307 = vmatprep.subr.mxu0 0.0
    %1308 = vmatpush1.msra.mxu0 0.0
    %1309 = vmatprep.subr.mxu0 0.0
    %1310 = vmatpush1.msra.mxu0 0.0
    %1311 = vmatprep.subr.mxu0 0.0
    %1312 = vmatpush1.msra.mxu0 0.0
    %1313 = vmatprep.subr.mxu0 0.0
    %1314 = vmatpush1.msra.mxu0 0.0
    %1315 = vmatprep.subr.mxu0 0.0
    %1316 = vmatpush1.msra.mxu0 0.0
    %1317 = vmatprep.subr.mxu0 0.0
    %1318 = vmatpush1.msra.mxu0 0.0
    %1319 = vmatprep.subr.mxu0 0.0
    %1320 = vmatpush1.msra.mxu0 0.0
    %1321 = vmatprep.subr.mxu0 0.0
    %1322 = vmatpush1.msra.mxu0 0.0
    %1323 = vmatprep.subr.mxu0 0.0
    %1324 = vmatpush1.msra.mxu0 0.0
    %1325 = vmatprep.subr.mxu0 0.0
    %1326 = vmatpush1.msra.mxu0 0.0
    %1327 = vmatprep.subr.mxu0 0.0
    %1328 = vmatpush1.msra.mxu0 0.0
    %1329 = vmatprep.subr.mxu0 0.0
    %1330 = vmatpush1.msra.mxu0 0.0
    %1331 = vmatprep.subr.mxu0 0.0
    %1332 = vmatpush1.msra.mxu0 0.0
    %1333 = vmatprep.subr.mxu0 0.0
    %1334 = vmatpush1.msra.mxu0 0.0
    %1335 = vmatprep.subr.mxu0 0.0
    %1336 = vmatpush1.msra.mxu0 0.0
    %1337 = vmatprep.subr.mxu0 0.0
    %1338 = vmatpush1.msra.mxu0 0.0
    %1339 = vmatprep.subr.mxu0 0.0
    %1340 = vmatpush1.msra.mxu0 0.0
    %1341 = vmatprep.subr.mxu0 0.0
    %1342 = vmatpush1.msra.mxu0 0.0
    %1343 = vmatprep.subr.mxu0 0.0
    %1344 = vmatpush1.msra.mxu0 0.0
    %1345 = vmatprep.subr.mxu0 0.0
    %1346 = vmatpush1.msra.mxu0 0.0
    %1347 = vmatprep.mubr.f32.mxu0 0.0
    %1348 = vmatmul.mubr.f32.gmra.mrb[0].mxu0 %v1278
    %v1349 = vpop.f32.mrb[0].mxu0
    %v1350 = vadd.f32 0.0, %v1349
    %v1351 = vpop.f32.mrb[0].mxu0
    %1352 = vdwg.mxu0
    %v1353 = vadd.f32 %v1215, %v1350
    %s1354 = scalar_lea.vmem %s1, 6
    %v1355 = vld [vmem:[%s1354] sm:$0x3]
    %s1356 = scalar_lea.vmem %s1, 8
    %v1357 = vld [vmem:[%s1356] sm:$0x3]
    %v1358 = vmul.f32 %v806, %v800
    %v1359 = vmul.f32 %v808, %v800
    %1361 = vrot.lane.b32.xlu0 %v1359, 127
    %v1362 = vpop.permute.xlu0 %1361
    %v1364 = vadd.f32 %v1358, %v1362
    %v1365 = vmul.f32 %v815, %v1355
    %v1366 = vadd.f32 %v1364, %v1365
    %v1367 = vmul.f32 %v818, %v1355
    %1369 = vrot.lane.b32.xlu0 %v1367, 127
    %v1370 = vpop.permute.xlu0 %1369
    %v1372 = vadd.f32 %v1366, %v1370
    %v1373 = vadd.f32 %v1372, %v825
    %v1374 = vmax.f32 %v1373, 0.0
    %v1375 = vmul.f32 %v806, %v1355
    %v1376 = vmul.f32 %v808, %v1355
    %1378 = vrot.lane.b32.xlu0 %v1376, 127
    %v1379 = vpop.permute.xlu0 %1378
    %v1381 = vadd.f32 %v1375, %v1379
    %v1382 = vmul.f32 %v815, %v1357
    %v1383 = vadd.f32 %v1381, %v1382
    %v1384 = vmul.f32 %v818, %v1357
    %1386 = vrot.lane.b32.xlu0 %v1384, 127
    %v1387 = vpop.permute.xlu0 %1386
    %v1389 = vadd.f32 %v1383, %v1387
    %v1390 = vadd.f32 %v1389, %v825
    %v1391 = vmax.f32 %v1390, 0.0
    %1393 = vrot.lane.b32.xlu0 %v1374, 127
    %v1394 = vpop.permute.xlu0 %1393
    %v1396 = vmax.f32 %v1374, %v1394
    %1398 = vrot.lane.b32.xlu0 %v1391, 127
    %v1399 = vpop.permute.xlu0 %1398
    %v1401 = vmax.f32 %v1391, %v1399
    %v1402 = vmax.f32 %v1396, %v1401
    %s1403 = scalar_lea.vmem %s12, 40
    %v1404 = vld [vmem:[%s1403] sm:$0xff]
    %v1405 = vld [vmem:[%s1403 + $0x8] sm:$0xff]
    %v1406 = vld [vmem:[%s1403 + $0x10] sm:$0xff]
    %v1407 = vld [vmem:[%s1403 + $0x18] sm:$0xff]
    %v1408 = vld [vmem:[%s1403 + $0x20] sm:$0x3]
    %v1410 = vsel %vm861, %v1402, 0
    %v1413 = vsel %vm865, %v1408, 0
    %1415 = vmatprep.subr.mxu0 0.0
    %1416 = vmatpush1.msra.mxu0 %v1404
    %1417 = vmatprep.subr.mxu0 0.0
    %1418 = vmatpush1.msra.mxu0 %v1405
    %1419 = vmatprep.subr.mxu0 0.0
    %1420 = vmatpush1.msra.mxu0 %v1406
    %1421 = vmatprep.subr.mxu0 0.0
    %1422 = vmatpush1.msra.mxu0 %v1407
    %1423 = vmatprep.subr.mxu0 0.0
    %1424 = vmatpush1.msra.mxu0 %v1413
    %1425 = vmatprep.subr.mxu0 0.0
    %1426 = vmatpush1.msra.mxu0 0.0
    %1427 = vmatprep.subr.mxu0 0.0
    %1428 = vmatpush1.msra.mxu0 0.0
    %1429 = vmatprep.subr.mxu0 0.0
    %1430 = vmatpush1.msra.mxu0 0.0
    %1431 = vmatprep.subr.mxu0 0.0
    %1432 = vmatpush1.msra.mxu0 0.0
    %1433 = vmatprep.subr.mxu0 0.0
    %1434 = vmatpush1.msra.mxu0 0.0
    %1435 = vmatprep.subr.mxu0 0.0
    %1436 = vmatpush1.msra.mxu0 0.0
    %1437 = vmatprep.subr.mxu0 0.0
    %1438 = vmatpush1.msra.mxu0 0.0
    %1439 = vmatprep.subr.mxu0 0.0
    %1440 = vmatpush1.msra.mxu0 0.0
    %1441 = vmatprep.subr.mxu0 0.0
    %1442 = vmatpush1.msra.mxu0 0.0
    %1443 = vmatprep.subr.mxu0 0.0
    %1444 = vmatpush1.msra.mxu0 0.0
    %1445 = vmatprep.subr.mxu0 0.0
    %1446 = vmatpush1.msra.mxu0 0.0
    %1447 = vmatprep.subr.mxu0 0.0
    %1448 = vmatpush1.msra.mxu0 0.0
    %1449 = vmatprep.subr.mxu0 0.0
    %1450 = vmatpush1.msra.mxu0 0.0
    %1451 = vmatprep.subr.mxu0 0.0
    %1452 = vmatpush1.msra.mxu0 0.0
    %1453 = vmatprep.subr.mxu0 0.0
    %1454 = vmatpush1.msra.mxu0 0.0
    %1455 = vmatprep.subr.mxu0 0.0
    %1456 = vmatpush1.msra.mxu0 0.0
    %1457 = vmatprep.subr.mxu0 0.0
    %1458 = vmatpush1.msra.mxu0 0.0
    %1459 = vmatprep.subr.mxu0 0.0
    %1460 = vmatpush1.msra.mxu0 0.0
    %1461 = vmatprep.subr.mxu0 0.0
    %1462 = vmatpush1.msra.mxu0 0.0
    %1463 = vmatprep.subr.mxu0 0.0
    %1464 = vmatpush1.msra.mxu0 0.0
    %1465 = vmatprep.subr.mxu0 0.0
    %1466 = vmatpush1.msra.mxu0 0.0
    %1467 = vmatprep.subr.mxu0 0.0
    %1468 = vmatpush1.msra.mxu0 0.0
    %1469 = vmatprep.subr.mxu0 0.0
    %1470 = vmatpush1.msra.mxu0 0.0
    %1471 = vmatprep.subr.mxu0 0.0
    %1472 = vmatpush1.msra.mxu0 0.0
    %1473 = vmatprep.subr.mxu0 0.0
    %1474 = vmatpush1.msra.mxu0 0.0
    %1475 = vmatprep.subr.mxu0 0.0
    %1476 = vmatpush1.msra.mxu0 0.0
    %1477 = vmatprep.subr.mxu0 0.0
    %1478 = vmatpush1.msra.mxu0 0.0
    %1479 = vmatprep.mubr.f32.mxu0 0.0
    %1480 = vmatmul.mubr.f32.gmra.mrb[0].mxu0 %v1410
    %v1481 = vpop.f32.mrb[0].mxu0
    %v1482 = vadd.f32 0.0, %v1481
    %v1483 = vpop.f32.mrb[0].mxu0
    %1484 = vdwg.mxu0
    %v1485 = vadd.f32 %v1353, %v1482
    %v1486 = vmul.f32 %v945, %v800
    %v1487 = vmul.f32 %v947, %v800
    %1489 = vrot.lane.b32.xlu0 %v1487, 127
    %v1490 = vpop.permute.xlu0 %1489
    %v1492 = vadd.f32 %v1486, %v1490
    %v1493 = vmul.f32 %v954, %v1355
    %v1494 = vadd.f32 %v1492, %v1493
    %v1495 = vmul.f32 %v957, %v1355
    %1497 = vrot.lane.b32.xlu0 %v1495, 127
    %v1498 = vpop.permute.xlu0 %1497
    %v1500 = vadd.f32 %v1494, %v1498
    %v1501 = vadd.f32 %v1500, %v964
    %v1502 = vmax.f32 %v1501, 0.0
    %v1503 = vmul.f32 %v945, %v1355
    %v1504 = vmul.f32 %v947, %v1355
    %1506 = vrot.lane.b32.xlu0 %v1504, 127
    %v1507 = vpop.permute.xlu0 %1506
    %v1509 = vadd.f32 %v1503, %v1507
    %v1510 = vmul.f32 %v954, %v1357
    %v1511 = vadd.f32 %v1509, %v1510
    %v1512 = vmul.f32 %v957, %v1357
    %1514 = vrot.lane.b32.xlu0 %v1512, 127
    %v1515 = vpop.permute.xlu0 %1514
    %v1517 = vadd.f32 %v1511, %v1515
    %v1518 = vadd.f32 %v1517, %v964
    %v1519 = vmax.f32 %v1518, 0.0
    %1521 = vrot.lane.b32.xlu0 %v1502, 127
    %v1522 = vpop.permute.xlu0 %1521
    %v1524 = vmax.f32 %v1502, %v1522
    %1526 = vrot.lane.b32.xlu0 %v1519, 127
    %v1527 = vpop.permute.xlu0 %1526
    %v1529 = vmax.f32 %v1519, %v1527
    %v1530 = vmax.f32 %v1524, %v1529
    %s1531 = scalar_lea.vmem %s12, 160
    %v1532 = vld [vmem:[%s1531] sm:$0xff]
    %v1533 = vld [vmem:[%s1531 + $0x8] sm:$0xff]
    %v1534 = vld [vmem:[%s1531 + $0x10] sm:$0xff]
    %v1535 = vld [vmem:[%s1531 + $0x18] sm:$0xff]
    %v1536 = vld [vmem:[%s1531 + $0x20] sm:$0x3]
    %v1538 = vsel %vm861, %v1530, 0
    %v1541 = vsel %vm865, %v1536, 0
    %1543 = vmatprep.subr.mxu0 0.0
    %1544 = vmatpush1.msra.mxu0 %v1532
    %1545 = vmatprep.subr.mxu0 0.0
    %1546 = vmatpush1.msra.mxu0 %v1533
    %1547 = vmatprep.subr.mxu0 0.0
    %1548 = vmatpush1.msra.mxu0 %v1534
    %1549 = vmatprep.subr.mxu0 0.0
    %1550 = vmatpush1.msra.mxu0 %v1535
    %1551 = vmatprep.subr.mxu0 0.0
    %1552 = vmatpush1.msra.mxu0 %v1541
    %1553 = vmatprep.subr.mxu0 0.0
    %1554 = vmatpush1.msra.mxu0 0.0
    %1555 = vmatprep.subr.mxu0 0.0
    %1556 = vmatpush1.msra.mxu0 0.0
    %1557 = vmatprep.subr.mxu0 0.0
    %1558 = vmatpush1.msra.mxu0 0.0
    %1559 = vmatprep.subr.mxu0 0.0
    %1560 = vmatpush1.msra.mxu0 0.0
    %1561 = vmatprep.subr.mxu0 0.0
    %1562 = vmatpush1.msra.mxu0 0.0
    %1563 = vmatprep.subr.mxu0 0.0
    %1564 = vmatpush1.msra.mxu0 0.0
    %1565 = vmatprep.subr.mxu0 0.0
    %1566 = vmatpush1.msra.mxu0 0.0
    %1567 = vmatprep.subr.mxu0 0.0
    %1568 = vmatpush1.msra.mxu0 0.0
    %1569 = vmatprep.subr.mxu0 0.0
    %1570 = vmatpush1.msra.mxu0 0.0
    %1571 = vmatprep.subr.mxu0 0.0
    %1572 = vmatpush1.msra.mxu0 0.0
    %1573 = vmatprep.subr.mxu0 0.0
    %1574 = vmatpush1.msra.mxu0 0.0
    %1575 = vmatprep.subr.mxu0 0.0
    %1576 = vmatpush1.msra.mxu0 0.0
    %1577 = vmatprep.subr.mxu0 0.0
    %1578 = vmatpush1.msra.mxu0 0.0
    %1579 = vmatprep.subr.mxu0 0.0
    %1580 = vmatpush1.msra.mxu0 0.0
    %1581 = vmatprep.subr.mxu0 0.0
    %1582 = vmatpush1.msra.mxu0 0.0
    %1583 = vmatprep.subr.mxu0 0.0
    %1584 = vmatpush1.msra.mxu0 0.0
    %1585 = vmatprep.subr.mxu0 0.0
    %1586 = vmatpush1.msra.mxu0 0.0
    %1587 = vmatprep.subr.mxu0 0.0
    %1588 = vmatpush1.msra.mxu0 0.0
    %1589 = vmatprep.subr.mxu0 0.0
    %1590 = vmatpush1.msra.mxu0 0.0
    %1591 = vmatprep.subr.mxu0 0.0
    %1592 = vmatpush1.msra.mxu0 0.0
    %1593 = vmatprep.subr.mxu0 0.0
    %1594 = vmatpush1.msra.mxu0 0.0
    %1595 = vmatprep.subr.mxu0 0.0
    %1596 = vmatpush1.msra.mxu0 0.0
    %1597 = vmatprep.subr.mxu0 0.0
    %1598 = vmatpush1.msra.mxu0 0.0
    %1599 = vmatprep.subr.mxu0 0.0
    %1600 = vmatpush1.msra.mxu0 0.0
    %1601 = vmatprep.subr.mxu0 0.0
    %1602 = vmatpush1.msra.mxu0 0.0
    %1603 = vmatprep.subr.mxu0 0.0
    %1604 = vmatpush1.msra.mxu0 0.0
    %1605 = vmatprep.subr.mxu0 0.0
    %1606 = vmatpush1.msra.mxu0 0.0
    %1607 = vmatprep.mubr.f32.mxu0 0.0
    %1608 = vmatmul.mubr.f32.gmra.mrb[0].mxu0 %v1538
    %v1609 = vpop.f32.mrb[0].mxu0
    %v1610 = vadd.f32 0.0, %v1609
    %v1611 = vpop.f32.mrb[0].mxu0
    %1612 = vdwg.mxu0
    %v1613 = vadd.f32 %v1485, %v1610
    %v1614 = vmul.f32 %v1083, %v800
    %v1615 = vmul.f32 %v1085, %v800
    %1617 = vrot.lane.b32.xlu0 %v1615, 127
    %v1618 = vpop.permute.xlu0 %1617
    %v1620 = vadd.f32 %v1614, %v1618
    %v1621 = vmul.f32 %v1092, %v1355
    %v1622 = vadd.f32 %v1620, %v1621
    %v1623 = vmul.f32 %v1095, %v1355
    %1625 = vrot.lane.b32.xlu0 %v1623, 127
    %v1626 = vpop.permute.xlu0 %1625
    %v1628 = vadd.f32 %v1622, %v1626
    %v1629 = vadd.f32 %v1628, %v1102
    %v1630 = vmax.f32 %v1629, 0.0
    %v1631 = vmul.f32 %v1083, %v1355
    %v1632 = vmul.f32 %v1085, %v1355
    %1634 = vrot.lane.b32.xlu0 %v1632, 127
    %v1635 = vpop.permute.xlu0 %1634
    %v1637 = vadd.f32 %v1631, %v1635
    %v1638 = vmul.f32 %v1092, %v1357
    %v1639 = vadd.f32 %v1637, %v1638
    %v1640 = vmul.f32 %v1095, %v1357
    %1642 = vrot.lane.b32.xlu0 %v1640, 127
    %v1643 = vpop.permute.xlu0 %1642
    %v1645 = vadd.f32 %v1639, %v1643
    %v1646 = vadd.f32 %v1645, %v1102
    %v1647 = vmax.f32 %v1646, 0.0
    %1649 = vrot.lane.b32.xlu0 %v1630, 127
    %v1650 = vpop.permute.xlu0 %1649
    %v1652 = vmax.f32 %v1630, %v1650
    %1654 = vrot.lane.b32.xlu0 %v1647, 127
    %v1655 = vpop.permute.xlu0 %1654
    %v1657 = vmax.f32 %v1647, %v1655
    %v1658 = vmax.f32 %v1652, %v1657
    %s1659 = scalar_lea.vmem %s12, 280
    %v1660 = vld [vmem:[%s1659] sm:$0xff]
    %v1661 = vld [vmem:[%s1659 + $0x8] sm:$0xff]
    %v1662 = vld [vmem:[%s1659 + $0x10] sm:$0xff]
    %v1663 = vld [vmem:[%s1659 + $0x18] sm:$0xff]
    %v1664 = vld [vmem:[%s1659 + $0x20] sm:$0x3]
    %v1666 = vsel %vm861, %v1658, 0
    %v1669 = vsel %vm865, %v1664, 0
    %1671 = vmatprep.subr.mxu0 0.0
    %1672 = vmatpush1.msra.mxu0 %v1660
    %1673 = vmatprep.subr.mxu0 0.0
    %1674 = vmatpush1.msra.mxu0 %v1661
    %1675 = vmatprep.subr.mxu0 0.0
    %1676 = vmatpush1.msra.mxu0 %v1662
    %1677 = vmatprep.subr.mxu0 0.0
    %1678 = vmatpush1.msra.mxu0 %v1663
    %1679 = vmatprep.subr.mxu0 0.0
    %1680 = vmatpush1.msra.mxu0 %v1669
    %1681 = vmatprep.subr.mxu0 0.0
    %1682 = vmatpush1.msra.mxu0 0.0
    %1683 = vmatprep.subr.mxu0 0.0
    %1684 = vmatpush1.msra.mxu0 0.0
    %1685 = vmatprep.subr.mxu0 0.0
    %1686 = vmatpush1.msra.mxu0 0.0
    %1687 = vmatprep.subr.mxu0 0.0
    %1688 = vmatpush1.msra.mxu0 0.0
    %1689 = vmatprep.subr.mxu0 0.0
    %1690 = vmatpush1.msra.mxu0 0.0
    %1691 = vmatprep.subr.mxu0 0.0
    %1692 = vmatpush1.msra.mxu0 0.0
    %1693 = vmatprep.subr.mxu0 0.0
    %1694 = vmatpush1.msra.mxu0 0.0
    %1695 = vmatprep.subr.mxu0 0.0
    %1696 = vmatpush1.msra.mxu0 0.0
    %1697 = vmatprep.subr.mxu0 0.0
    %1698 = vmatpush1.msra.mxu0 0.0
    %1699 = vmatprep.subr.mxu0 0.0
    %1700 = vmatpush1.msra.mxu0 0.0
    %1701 = vmatprep.subr.mxu0 0.0
    %1702 = vmatpush1.msra.mxu0 0.0
    %1703 = vmatprep.subr.mxu0 0.0
    %1704 = vmatpush1.msra.mxu0 0.0
    %1705 = vmatprep.subr.mxu0 0.0
    %1706 = vmatpush1.msra.mxu0 0.0
    %1707 = vmatprep.subr.mxu0 0.0
    %1708 = vmatpush1.msra.mxu0 0.0
    %1709 = vmatprep.subr.mxu0 0.0
    %1710 = vmatpush1.msra.mxu0 0.0
    %1711 = vmatprep.subr.mxu0 0.0
    %1712 = vmatpush1.msra.mxu0 0.0
    %1713 = vmatprep.subr.mxu0 0.0
    %1714 = vmatpush1.msra.mxu0 0.0
    %1715 = vmatprep.subr.mxu0 0.0
    %1716 = vmatpush1.msra.mxu0 0.0
    %1717 = vmatprep.subr.mxu0 0.0
    %1718 = vmatpush1.msra.mxu0 0.0
    %1719 = vmatprep.subr.mxu0 0.0
    %1720 = vmatpush1.msra.mxu0 0.0
    %1721 = vmatprep.subr.mxu0 0.0
    %1722 = vmatpush1.msra.mxu0 0.0
    %1723 = vmatprep.subr.mxu0 0.0
    %1724 = vmatpush1.msra.mxu0 0.0
    %1725 = vmatprep.subr.mxu0 0.0
    %1726 = vmatpush1.msra.mxu0 0.0
    %1727 = vmatprep.subr.mxu0 0.0
    %1728 = vmatpush1.msra.mxu0 0.0
    %1729 = vmatprep.subr.mxu0 0.0
    %1730 = vmatpush1.msra.mxu0 0.0
    %1731 = vmatprep.subr.mxu0 0.0
    %1732 = vmatpush1.msra.mxu0 0.0
    %1733 = vmatprep.subr.mxu0 0.0
    %1734 = vmatpush1.msra.mxu0 0.0
    %1735 = vmatprep.mubr.f32.mxu0 0.0
    %1736 = vmatmul.mubr.f32.gmra.mrb[0].mxu0 %v1666
    %v1737 = vpop.f32.mrb[0].mxu0
    %v1738 = vadd.f32 0.0, %v1737
    %v1739 = vpop.f32.mrb[0].mxu0
    %1740 = vdwg.mxu0
    %v1741 = vadd.f32 %v1613, %v1738
    %v1742 = vmul.f32 %v1221, %v800
    %v1743 = vmul.f32 %v1223, %v800
    %1745 = vrot.lane.b32.xlu0 %v1743, 127
    %v1746 = vpop.permute.xlu0 %1745
    %v1748 = vadd.f32 %v1742, %v1746
    %v1749 = vmul.f32 %v1230, %v1355
    %v1750 = vadd.f32 %v1748, %v1749
    %v1751 = vmul.f32 %v1233, %v1355
    %1753 = vrot.lane.b32.xlu0 %v1751, 127
    %v1754 = vpop.permute.xlu0 %1753
    %v1756 = vadd.f32 %v1750, %v1754
    %v1757 = vadd.f32 %v1756, %v1240
    %v1758 = vmax.f32 %v1757, 0.0
    %v1759 = vmul.f32 %v1221, %v1355
    %v1760 = vmul.f32 %v1223, %v1355
    %1762 = vrot.lane.b32.xlu0 %v1760, 127
    %v1763 = vpop.permute.xlu0 %1762
    %v1765 = vadd.f32 %v1759, %v1763
    %v1766 = vmul.f32 %v1230, %v1357
    %v1767 = vadd.f32 %v1765, %v1766
    %v1768 = vmul.f32 %v1233, %v1357
    %1770 = vrot.lane.b32.xlu0 %v1768, 127
    %v1771 = vpop.permute.xlu0 %1770
    %v1773 = vadd.f32 %v1767, %v1771
    %v1774 = vadd.f32 %v1773, %v1240
    %v1775 = vmax.f32 %v1774, 0.0
    %1777 = vrot.lane.b32.xlu0 %v1758, 127
    %v1778 = vpop.permute.xlu0 %1777
    %v1780 = vmax.f32 %v1758, %v1778
    %1782 = vrot.lane.b32.xlu0 %v1775, 127
    %v1783 = vpop.permute.xlu0 %1782
    %v1785 = vmax.f32 %v1775, %v1783
    %v1786 = vmax.f32 %v1780, %v1785
    %s1787 = scalar_lea.vmem %s12, 400
    %v1788 = vld [vmem:[%s1787] sm:$0xff]
    %v1789 = vld [vmem:[%s1787 + $0x8] sm:$0xff]
    %v1790 = vld [vmem:[%s1787 + $0x10] sm:$0xff]
    %v1791 = vld [vmem:[%s1787 + $0x18] sm:$0xff]
    %v1792 = vld [vmem:[%s1787 + $0x20] sm:$0x3]
    %v1794 = vsel %vm861, %v1786, 0
    %v1797 = vsel %vm865, %v1792, 0
    %1799 = vmatprep.subr.mxu0 0.0
    %1800 = vmatpush1.msra.mxu0 %v1788
    %1801 = vmatprep.subr.mxu0 0.0
    %1802 = vmatpush1.msra.mxu0 %v1789
    %1803 = vmatprep.subr.mxu0 0.0
    %1804 = vmatpush1.msra.mxu0 %v1790
    %1805 = vmatprep.subr.mxu0 0.0
    %1806 = vmatpush1.msra.mxu0 %v1791
    %1807 = vmatprep.subr.mxu0 0.0
    %1808 = vmatpush1.msra.mxu0 %v1797
    %1809 = vmatprep.subr.mxu0 0.0
    %1810 = vmatpush1.msra.mxu0 0.0
    %1811 = vmatprep.subr.mxu0 0.0
    %1812 = vmatpush1.msra.mxu0 0.0
    %1813 = vmatprep.subr.mxu0 0.0
    %1814 = vmatpush1.msra.mxu0 0.0
    %1815 = vmatprep.subr.mxu0 0.0
    %1816 = vmatpush1.msra.mxu0 0.0
    %1817 = vmatprep.subr.mxu0 0.0
    %1818 = vmatpush1.msra.mxu0 0.0
    %1819 = vmatprep.subr.mxu0 0.0
    %1820 = vmatpush1.msra.mxu0 0.0
    %1821 = vmatprep.subr.mxu0 0.0
    %1822 = vmatpush1.msra.mxu0 0.0
    %1823 = vmatprep.subr.mxu0 0.0
    %1824 = vmatpush1.msra.mxu0 0.0
    %1825 = vmatprep.subr.mxu0 0.0
    %1826 = vmatpush1.msra.mxu0 0.0
    %1827 = vmatprep.subr.mxu0 0.0
    %1828 = vmatpush1.msra.mxu0 0.0
    %1829 = vmatprep.subr.mxu0 0.0
    %1830 = vmatpush1.msra.mxu0 0.0
    %1831 = vmatprep.subr.mxu0 0.0
    %1832 = vmatpush1.msra.mxu0 0.0
    %1833 = vmatprep.subr.mxu0 0.0
    %1834 = vmatpush1.msra.mxu0 0.0
    %1835 = vmatprep.subr.mxu0 0.0
    %1836 = vmatpush1.msra.mxu0 0.0
    %1837 = vmatprep.subr.mxu0 0.0
    %1838 = vmatpush1.msra.mxu0 0.0
    %1839 = vmatprep.subr.mxu0 0.0
    %1840 = vmatpush1.msra.mxu0 0.0
    %1841 = vmatprep.subr.mxu0 0.0
    %1842 = vmatpush1.msra.mxu0 0.0
    %1843 = vmatprep.subr.mxu0 0.0
    %1844 = vmatpush1.msra.mxu0 0.0
    %1845 = vmatprep.subr.mxu0 0.0
    %1846 = vmatpush1.msra.mxu0 0.0
    %1847 = vmatprep.subr.mxu0 0.0
    %1848 = vmatpush1.msra.mxu0 0.0
    %1849 = vmatprep.subr.mxu0 0.0
    %1850 = vmatpush1.msra.mxu0 0.0
    %1851 = vmatprep.subr.mxu0 0.0
    %1852 = vmatpush1.msra.mxu0 0.0
    %1853 = vmatprep.subr.mxu0 0.0
    %1854 = vmatpush1.msra.mxu0 0.0
    %1855 = vmatprep.subr.mxu0 0.0
    %1856 = vmatpush1.msra.mxu0 0.0
    %1857 = vmatprep.subr.mxu0 0.0
    %1858 = vmatpush1.msra.mxu0 0.0
    %1859 = vmatprep.subr.mxu0 0.0
    %1860 = vmatpush1.msra.mxu0 0.0
    %1861 = vmatprep.subr.mxu0 0.0
    %1862 = vmatpush1.msra.mxu0 0.0
    %1863 = vmatprep.mubr.f32.mxu0 0.0
    %1864 = vmatmul.mubr.f32.gmra.mrb[0].mxu0 %v1794
    %v1865 = vpop.f32.mrb[0].mxu0
    %v1866 = vadd.f32 0.0, %v1865
    %v1867 = vpop.f32.mrb[0].mxu0
    %1868 = vdwg.mxu0
    %v1869 = vadd.f32 %v1741, %v1866
    %s1870 = scalar_lea.vmem %s1, 10
    %v1871 = vld [vmem:[%s1870] sm:$0x3]
    %s1872 = scalar_lea.vmem %s1, 12
    %v1873 = vld [vmem:[%s1872] sm:$0x3]
    %v1874 = vmul.f32 %v806, %v1357
    %v1875 = vmul.f32 %v808, %v1357
    %1877 = vrot.lane.b32.xlu0 %v1875, 127
    %v1878 = vpop.permute.xlu0 %1877
    %v1880 = vadd.f32 %v1874, %v1878
    %v1881 = vmul.f32 %v815, %v1871
    %v1882 = vadd.f32 %v1880, %v1881
    %v1883 = vmul.f32 %v818, %v1871
    %1885 = vrot.lane.b32.xlu0 %v1883, 127
    %v1886 = vpop.permute.xlu0 %1885
    %v1888 = vadd.f32 %v1882, %v1886
    %v1889 = vadd.f32 %v1888, %v825
    %v1890 = vmax.f32 %v1889, 0.0
    %v1891 = vmul.f32 %v806, %v1871
    %v1892 = vmul.f32 %v808, %v1871
    %1894 = vrot.lane.b32.xlu0 %v1892, 127
    %v1895 = vpop.permute.xlu0 %1894
    %v1897 = vadd.f32 %v1891, %v1895
    %v1898 = vmul.f32 %v815, %v1873
    %v1899 = vadd.f32 %v1897, %v1898
    %v1900 = vmul.f32 %v818, %v1873
    %1902 = vrot.lane.b32.xlu0 %v1900, 127
    %v1903 = vpop.permute.xlu0 %1902
    %v1905 = vadd.f32 %v1899, %v1903
    %v1906 = vadd.f32 %v1905, %v825
    %v1907 = vmax.f32 %v1906, 0.0
    %1909 = vrot.lane.b32.xlu0 %v1890, 127
    %v1910 = vpop.permute.xlu0 %1909
    %v1912 = vmax.f32 %v1890, %v1910
    %1914 = vrot.lane.b32.xlu0 %v1907, 127
    %v1915 = vpop.permute.xlu0 %1914
    %v1917 = vmax.f32 %v1907, %v1915
    %v1918 = vmax.f32 %v1912, %v1917
    %s1919 = scalar_lea.vmem %s12, 80
    %v1920 = vld [vmem:[%s1919] sm:$0xff]
    %v1921 = vld [vmem:[%s1919 + $0x8] sm:$0xff]
    %v1922 = vld [vmem:[%s1919 + $0x10] sm:$0xff]
    %v1923 = vld [vmem:[%s1919 + $0x18] sm:$0xff]
    %v1924 = vld [vmem:[%s1919 + $0x20] sm:$0x3]
    %v1926 = vsel %vm861, %v1918, 0
    %v1929 = vsel %vm865, %v1924, 0
    %1931 = vmatprep.subr.mxu0 0.0
    %1932 = vmatpush1.msra.mxu0 %v1920
    %1933 = vmatprep.subr.mxu0 0.0
    %1934 = vmatpush1.msra.mxu0 %v1921
    %1935 = vmatprep.subr.mxu0 0.0
    %1936 = vmatpush1.msra.mxu0 %v1922
    %1937 = vmatprep.subr.mxu0 0.0
    %1938 = vmatpush1.msra.mxu0 %v1923
    %1939 = vmatprep.subr.mxu0 0.0
    %1940 = vmatpush1.msra.mxu0 %v1929
    %1941 = vmatprep.subr.mxu0 0.0
    %1942 = vmatpush1.msra.mxu0 0.0
    %1943 = vmatprep.subr.mxu0 0.0
    %1944 = vmatpush1.msra.mxu0 0.0
    %1945 = vmatprep.subr.mxu0 0.0
    %1946 = vmatpush1.msra.mxu0 0.0
    %1947 = vmatprep.subr.mxu0 0.0
    %1948 = vmatpush1.msra.mxu0 0.0
    %1949 = vmatprep.subr.mxu0 0.0
    %1950 = vmatpush1.msra.mxu0 0.0
    %1951 = vmatprep.subr.mxu0 0.0
    %1952 = vmatpush1.msra.mxu0 0.0
    %1953 = vmatprep.subr.mxu0 0.0
    %1954 = vmatpush1.msra.mxu0 0.0
    %1955 = vmatprep.subr.mxu0 0.0
    %1956 = vmatpush1.msra.mxu0 0.0
    %1957 = vmatprep.subr.mxu0 0.0
    %1958 = vmatpush1.msra.mxu0 0.0
    %1959 = vmatprep.subr.mxu0 0.0
    %1960 = vmatpush1.msra.mxu0 0.0
    %1961 = vmatprep.subr.mxu0 0.0
    %1962 = vmatpush1.msra.mxu0 0.0
    %1963 = vmatprep.subr.mxu0 0.0
    %1964 = vmatpush1.msra.mxu0 0.0
    %1965 = vmatprep.subr.mxu0 0.0
    %1966 = vmatpush1.msra.mxu0 0.0
    %1967 = vmatprep.subr.mxu0 0.0
    %1968 = vmatpush1.msra.mxu0 0.0
    %1969 = vmatprep.subr.mxu0 0.0
    %1970 = vmatpush1.msra.mxu0 0.0
    %1971 = vmatprep.subr.mxu0 0.0
    %1972 = vmatpush1.msra.mxu0 0.0
    %1973 = vmatprep.subr.mxu0 0.0
    %1974 = vmatpush1.msra.mxu0 0.0
    %1975 = vmatprep.subr.mxu0 0.0
    %1976 = vmatpush1.msra.mxu0 0.0
    %1977 = vmatprep.subr.mxu0 0.0
    %1978 = vmatpush1.msra.mxu0 0.0
    %1979 = vmatprep.subr.mxu0 0.0
    %1980 = vmatpush1.msra.mxu0 0.0
    %1981 = vmatprep.subr.mxu0 0.0
    %1982 = vmatpush1.msra.mxu0 0.0
    %1983 = vmatprep.subr.mxu0 0.0
    %1984 = vmatpush1.msra.mxu0 0.0
    %1985 = vmatprep.subr.mxu0 0.0
    %1986 = vmatpush1.msra.mxu0 0.0
    %1987 = vmatprep.subr.mxu0 0.0
    %1988 = vmatpush1.msra.mxu0 0.0
    %1989 = vmatprep.subr.mxu0 0.0
    %1990 = vmatpush1.msra.mxu0 0.0
    %1991 = vmatprep.subr.mxu0 0.0
    %1992 = vmatpush1.msra.mxu0 0.0
    %1993 = vmatprep.subr.mxu0 0.0
    %1994 = vmatpush1.msra.mxu0 0.0
    %1995 = vmatprep.mubr.f32.mxu0 0.0
    %1996 = vmatmul.mubr.f32.gmra.mrb[0].mxu0 %v1926
    %v1997 = vpop.f32.mrb[0].mxu0
    %v1998 = vadd.f32 0.0, %v1997
    %v1999 = vpop.f32.mrb[0].mxu0
    %2000 = vdwg.mxu0
    %v2001 = vadd.f32 %v1869, %v1998
    %v2002 = vmul.f32 %v945, %v1357
    %v2003 = vmul.f32 %v947, %v1357
    %2005 = vrot.lane.b32.xlu0 %v2003, 127
    %v2006 = vpop.permute.xlu0 %2005
    %v2008 = vadd.f32 %v2002, %v2006
    %v2009 = vmul.f32 %v954, %v1871
    %v2010 = vadd.f32 %v2008, %v2009
    %v2011 = vmul.f32 %v957, %v1871
    %2013 = vrot.lane.b32.xlu0 %v2011, 127
    %v2014 = vpop.permute.xlu0 %2013
    %v2016 = vadd.f32 %v2010, %v2014
    %v2017 = vadd.f32 %v2016, %v964
    %v2018 = vmax.f32 %v2017, 0.0
    %v2019 = vmul.f32 %v945, %v1871
    %v2020 = vmul.f32 %v947, %v1871
    %2022 = vrot.lane.b32.xlu0 %v2020, 127
    %v2023 = vpop.permute.xlu0 %2022
    %v2025 = vadd.f32 %v2019, %v2023
    %v2026 = vmul.f32 %v954, %v1873
    %v2027 = vadd.f32 %v2025, %v2026
    %v2028 = vmul.f32 %v957, %v1873
    %2030 = vrot.lane.b32.xlu0 %v2028, 127
    %v2031 = vpop.permute.xlu0 %2030
    %v2033 = vadd.f32 %v2027, %v2031
    %v2034 = vadd.f32 %v2033, %v964
    %v2035 = vmax.f32 %v2034, 0.0
    %2037 = vrot.lane.b32.xlu0 %v2018, 127
    %v2038 = vpop.permute.xlu0 %2037
    %v2040 = vmax.f32 %v2018, %v2038
    %2042 = vrot.lane.b32.xlu0 %v2035, 127
    %v2043 = vpop.permute.xlu0 %2042
    %v2045 = vmax.f32 %v2035, %v2043
    %v2046 = vmax.f32 %v2040, %v2045
    %s2047 = scalar_lea.vmem %s12, 200
    %v2048 = vld [vmem:[%s2047] sm:$0xff]
    %v2049 = vld [vmem:[%s2047 + $0x8] sm:$0xff]
    %v2050 = vld [vmem:[%s2047 + $0x10] sm:$0xff]
    %v2051 = vld [vmem:[%s2047 + $0x18] sm:$0xff]
    %v2052 = vld [vmem:[%s2047 + $0x20] sm:$0x3]
    %v2054 = vsel %vm861, %v2046, 0
    %v2057 = vsel %vm865, %v2052, 0
    %2059 = vmatprep.subr.mxu0 0.0
    %2060 = vmatpush1.msra.mxu0 %v2048
    %2061 = vmatprep.subr.mxu0 0.0
    %2062 = vmatpush1.msra.mxu0 %v2049
    %2063 = vmatprep.subr.mxu0 0.0
    %2064 = vmatpush1.msra.mxu0 %v2050
    %2065 = vmatprep.subr.mxu0 0.0
    %2066 = vmatpush1.msra.mxu0 %v2051
    %2067 = vmatprep.subr.mxu0 0.0
    %2068 = vmatpush1.msra.mxu0 %v2057
    %2069 = vmatprep.subr.mxu0 0.0
    %2070 = vmatpush1.msra.mxu0 0.0
    %2071 = vmatprep.subr.mxu0 0.0
    %2072 = vmatpush1.msra.mxu0 0.0
    %2073 = vmatprep.subr.mxu0 0.0
    %2074 = vmatpush1.msra.mxu0 0.0
    %2075 = vmatprep.subr.mxu0 0.0
    %2076 = vmatpush1.msra.mxu0 0.0
    %2077 = vmatprep.subr.mxu0 0.0
    %2078 = vmatpush1.msra.mxu0 0.0
    %2079 = vmatprep.subr.mxu0 0.0
    %2080 = vmatpush1.msra.mxu0 0.0
    %2081 = vmatprep.subr.mxu0 0.0
    %2082 = vmatpush1.msra.mxu0 0.0
    %2083 = vmatprep.subr.mxu0 0.0
    %2084 = vmatpush1.msra.mxu0 0.0
    %2085 = vmatprep.subr.mxu0 0.0
    %2086 = vmatpush1.msra.mxu0 0.0
    %2087 = vmatprep.subr.mxu0 0.0
    %2088 = vmatpush1.msra.mxu0 0.0
    %2089 = vmatprep.subr.mxu0 0.0
    %2090 = vmatpush1.msra.mxu0 0.0
    %2091 = vmatprep.subr.mxu0 0.0
    %2092 = vmatpush1.msra.mxu0 0.0
    %2093 = vmatprep.subr.mxu0 0.0
    %2094 = vmatpush1.msra.mxu0 0.0
    %2095 = vmatprep.subr.mxu0 0.0
    %2096 = vmatpush1.msra.mxu0 0.0
    %2097 = vmatprep.subr.mxu0 0.0
    %2098 = vmatpush1.msra.mxu0 0.0
    %2099 = vmatprep.subr.mxu0 0.0
    %2100 = vmatpush1.msra.mxu0 0.0
    %2101 = vmatprep.subr.mxu0 0.0
    %2102 = vmatpush1.msra.mxu0 0.0
    %2103 = vmatprep.subr.mxu0 0.0
    %2104 = vmatpush1.msra.mxu0 0.0
    %2105 = vmatprep.subr.mxu0 0.0
    %2106 = vmatpush1.msra.mxu0 0.0
    %2107 = vmatprep.subr.mxu0 0.0
    %2108 = vmatpush1.msra.mxu0 0.0
    %2109 = vmatprep.subr.mxu0 0.0
    %2110 = vmatpush1.msra.mxu0 0.0
    %2111 = vmatprep.subr.mxu0 0.0
    %2112 = vmatpush1.msra.mxu0 0.0
    %2113 = vmatprep.subr.mxu0 0.0
    %2114 = vmatpush1.msra.mxu0 0.0
    %2115 = vmatprep.subr.mxu0 0.0
    %2116 = vmatpush1.msra.mxu0 0.0
    %2117 = vmatprep.subr.mxu0 0.0
    %2118 = vmatpush1.msra.mxu0 0.0
    %2119 = vmatprep.subr.mxu0 0.0
    %2120 = vmatpush1.msra.mxu0 0.0
    %2121 = vmatprep.subr.mxu0 0.0
    %2122 = vmatpush1.msra.mxu0 0.0
    %2123 = vmatprep.mubr.f32.mxu0 0.0
    %2124 = vmatmul.mubr.f32.gmra.mrb[0].mxu0 %v2054
    %v2125 = vpop.f32.mrb[0].mxu0
    %v2126 = vadd.f32 0.0, %v2125
    %v2127 = vpop.f32.mrb[0].mxu0
    %2128 = vdwg.mxu0
    %v2129 = vadd.f32 %v2001, %v2126
    %v2130 = vmul.f32 %v1083, %v1357
    %v2131 = vmul.f32 %v1085, %v1357
    %2133 = vrot.lane.b32.xlu0 %v2131, 127
    %v2134 = vpop.permute.xlu0 %2133
    %v2136 = vadd.f32 %v2130, %v2134
    %v2137 = vmul.f32 %v1092, %v1871
    %v2138 = vadd.f32 %v2136, %v2137
    %v2139 = vmul.f32 %v1095, %v1871
    %2141 = vrot.lane.b32.xlu0 %v2139, 127
    %v2142 = vpop.permute.xlu0 %2141
    %v2144 = vadd.f32 %v2138, %v2142
    %v2145 = vadd.f32 %v2144, %v1102
    %v2146 = vmax.f32 %v2145, 0.0
    %v2147 = vmul.f32 %v1083, %v1871
    %v2148 = vmul.f32 %v1085, %v1871
    %2150 = vrot.lane.b32.xlu0 %v2148, 127
    %v2151 = vpop.permute.xlu0 %2150
    %v2153 = vadd.f32 %v2147, %v2151
    %v2154 = vmul.f32 %v1092, %v1873
    %v2155 = vadd.f32 %v2153, %v2154
    %v2156 = vmul.f32 %v1095, %v1873
    %2158 = vrot.lane.b32.xlu0 %v2156, 127
    %v2159 = vpop.permute.xlu0 %2158
    %v2161 = vadd.f32 %v2155, %v2159
    %v2162 = vadd.f32 %v2161, %v1102
    %v2163 = vmax.f32 %v2162, 0.0
    %2165 = vrot.lane.b32.xlu0 %v2146, 127
    %v2166 = vpop.permute.xlu0 %2165
    %v2168 = vmax.f32 %v2146, %v2166
    %2170 = vrot.lane.b32.xlu0 %v2163, 127
    %v2171 = vpop.permute.xlu0 %2170
    %v2173 = vmax.f32 %v2163, %v2171
    %v2174 = vmax.f32 %v2168, %v2173
    %s2175 = scalar_lea.vmem %s12, 320
    %v2176 = vld [vmem:[%s2175] sm:$0xff]
    %v2177 = vld [vmem:[%s2175 + $0x8] sm:$0xff]
    %v2178 = vld [vmem:[%s2175 + $0x10] sm:$0xff]
    %v2179 = vld [vmem:[%s2175 + $0x18] sm:$0xff]
    %v2180 = vld [vmem:[%s2175 + $0x20] sm:$0x3]
    %v2182 = vsel %vm861, %v2174, 0
    %v2185 = vsel %vm865, %v2180, 0
    %2187 = vmatprep.subr.mxu0 0.0
    %2188 = vmatpush1.msra.mxu0 %v2176
    %2189 = vmatprep.subr.mxu0 0.0
    %2190 = vmatpush1.msra.mxu0 %v2177
    %2191 = vmatprep.subr.mxu0 0.0
    %2192 = vmatpush1.msra.mxu0 %v2178
    %2193 = vmatprep.subr.mxu0 0.0
    %2194 = vmatpush1.msra.mxu0 %v2179
    %2195 = vmatprep.subr.mxu0 0.0
    %2196 = vmatpush1.msra.mxu0 %v2185
    %2197 = vmatprep.subr.mxu0 0.0
    %2198 = vmatpush1.msra.mxu0 0.0
    %2199 = vmatprep.subr.mxu0 0.0
    %2200 = vmatpush1.msra.mxu0 0.0
    %2201 = vmatprep.subr.mxu0 0.0
    %2202 = vmatpush1.msra.mxu0 0.0
    %2203 = vmatprep.subr.mxu0 0.0
    %2204 = vmatpush1.msra.mxu0 0.0
    %2205 = vmatprep.subr.mxu0 0.0
    %2206 = vmatpush1.msra.mxu0 0.0
    %2207 = vmatprep.subr.mxu0 0.0
    %2208 = vmatpush1.msra.mxu0 0.0
    %2209 = vmatprep.subr.mxu0 0.0
    %2210 = vmatpush1.msra.mxu0 0.0
    %2211 = vmatprep.subr.mxu0 0.0
    %2212 = vmatpush1.msra.mxu0 0.0
    %2213 = vmatprep.subr.mxu0 0.0
    %2214 = vmatpush1.msra.mxu0 0.0
    %2215 = vmatprep.subr.mxu0 0.0
    %2216 = vmatpush1.msra.mxu0 0.0
    %2217 = vmatprep.subr.mxu0 0.0
    %2218 = vmatpush1.msra.mxu0 0.0
    %2219 = vmatprep.subr.mxu0 0.0
    %2220 = vmatpush1.msra.mxu0 0.0
    %2221 = vmatprep.subr.mxu0 0.0
    %2222 = vmatpush1.msra.mxu0 0.0
    %2223 = vmatprep.subr.mxu0 0.0
    %2224 = vmatpush1.msra.mxu0 0.0
    %2225 = vmatprep.subr.mxu0 0.0
    %2226 = vmatpush1.msra.mxu0 0.0
    %2227 = vmatprep.subr.mxu0 0.0
    %2228 = vmatpush1.msra.mxu0 0.0
    %2229 = vmatprep.subr.mxu0 0.0
    %2230 = vmatpush1.msra.mxu0 0.0
    %2231 = vmatprep.subr.mxu0 0.0
    %2232 = vmatpush1.msra.mxu0 0.0
    %2233 = vmatprep.subr.mxu0 0.0
    %2234 = vmatpush1.msra.mxu0 0.0
    %2235 = vmatprep.subr.mxu0 0.0
    %2236 = vmatpush1.msra.mxu0 0.0
    %2237 = vmatprep.subr.mxu0 0.0
    %2238 = vmatpush1.msra.mxu0 0.0
    %2239 = vmatprep.subr.mxu0 0.0
    %2240 = vmatpush1.msra.mxu0 0.0
    %2241 = vmatprep.subr.mxu0 0.0
    %2242 = vmatpush1.msra.mxu0 0.0
    %2243 = vmatprep.subr.mxu0 0.0
    %2244 = vmatpush1.msra.mxu0 0.0
    %2245 = vmatprep.subr.mxu0 0.0
    %2246 = vmatpush1.msra.mxu0 0.0
    %2247 = vmatprep.subr.mxu0 0.0
    %2248 = vmatpush1.msra.mxu0 0.0
    %2249 = vmatprep.subr.mxu0 0.0
    %2250 = vmatpush1.msra.mxu0 0.0
    %2251 = vmatprep.mubr.f32.mxu0 0.0
    %2252 = vmatmul.mubr.f32.gmra.mrb[0].mxu0 %v2182
    %v2253 = vpop.f32.mrb[0].mxu0
    %v2254 = vadd.f32 0.0, %v2253
    %v2255 = vpop.f32.mrb[0].mxu0
    %2256 = vdwg.mxu0
    %v2257 = vadd.f32 %v2129, %v2254
    %v2258 = vmul.f32 %v1221, %v1357
    %v2259 = vmul.f32 %v1223, %v1357
    %2261 = vrot.lane.b32.xlu0 %v2259, 127
    %v2262 = vpop.permute.xlu0 %2261
    %v2264 = vadd.f32 %v2258, %v2262
    %v2265 = vmul.f32 %v1230, %v1871
    %v2266 = vadd.f32 %v2264, %v2265
    %v2267 = vmul.f32 %v1233, %v1871
    %2269 = vrot.lane.b32.xlu0 %v2267, 127
    %v2270 = vpop.permute.xlu0 %2269
    %v2272 = vadd.f32 %v2266, %v2270
    %v2273 = vadd.f32 %v2272, %v1240
    %v2274 = vmax.f32 %v2273, 0.0
    %v2275 = vmul.f32 %v1221, %v1871
    %v2276 = vmul.f32 %v1223, %v1871
    %2278 = vrot.lane.b32.xlu0 %v2276, 127
    %v2279 = vpop.permute.xlu0 %2278
    %v2281 = vadd.f32 %v2275, %v2279
    %v2282 = vmul.f32 %v1230, %v1873
    %v2283 = vadd.f32 %v2281, %v2282
    %v2284 = vmul.f32 %v1233, %v1873
    %2286 = vrot.lane.b32.xlu0 %v2284, 127
    %v2287 = vpop.permute.xlu0 %2286
    %v2289 = vadd.f32 %v2283, %v2287
    %v2290 = vadd.f32 %v2289, %v1240
    %v2291 = vmax.f32 %v2290, 0.0
    %2293 = vrot.lane.b32.xlu0 %v2274, 127
    %v2294 = vpop.permute.xlu0 %2293
    %v2296 = vmax.f32 %v2274, %v2294
    %2298 = vrot.lane.b32.xlu0 %v2291, 127
    %v2299 = vpop.permute.xlu0 %2298
    %v2301 = vmax.f32 %v2291, %v2299
    %v2302 = vmax.f32 %v2296, %v2301
    %s2303 = scalar_lea.vmem %s12, 440
    %v2304 = vld [vmem:[%s2303] sm:$0xff]
    %v2305 = vld [vmem:[%s2303 + $0x8] sm:$0xff]
    %v2306 = vld [vmem:[%s2303 + $0x10] sm:$0xff]
    %v2307 = vld [vmem:[%s2303 + $0x18] sm:$0xff]
    %v2308 = vld [vmem:[%s2303 + $0x20] sm:$0x3]
    %v2310 = vsel %vm861, %v2302, 0
    %v2313 = vsel %vm865, %v2308, 0
    %2315 = vmatprep.subr.mxu0 0.0
    %2316 = vmatpush1.msra.mxu0 %v2304
    %2317 = vmatprep.subr.mxu0 0.0
    %2318 = vmatpush1.msra.mxu0 %v2305
    %2319 = vmatprep.subr.mxu0 0.0
    %2320 = vmatpush1.msra.mxu0 %v2306
    %2321 = vmatprep.subr.mxu0 0.0
    %2322 = vmatpush1.msra.mxu0 %v2307
    %2323 = vmatprep.subr.mxu0 0.0
    %2324 = vmatpush1.msra.mxu0 %v2313
    %2325 = vmatprep.subr.mxu0 0.0
    %2326 = vmatpush1.msra.mxu0 0.0
    %2327 = vmatprep.subr.mxu0 0.0
    %2328 = vmatpush1.msra.mxu0 0.0
    %2329 = vmatprep.subr.mxu0 0.0
    %2330 = vmatpush1.msra.mxu0 0.0
    %2331 = vmatprep.subr.mxu0 0.0
    %2332 = vmatpush1.msra.mxu0 0.0
    %2333 = vmatprep.subr.mxu0 0.0
    %2334 = vmatpush1.msra.mxu0 0.0
    %2335 = vmatprep.subr.mxu0 0.0
    %2336 = vmatpush1.msra.mxu0 0.0
    %2337 = vmatprep.subr.mxu0 0.0
    %2338 = vmatpush1.msra.mxu0 0.0
    %2339 = vmatprep.subr.mxu0 0.0
    %2340 = vmatpush1.msra.mxu0 0.0
    %2341 = vmatprep.subr.mxu0 0.0
    %2342 = vmatpush1.msra.mxu0 0.0
    %2343 = vmatprep.subr.mxu0 0.0
    %2344 = vmatpush1.msra.mxu0 0.0
    %2345 = vmatprep.subr.mxu0 0.0
    %2346 = vmatpush1.msra.mxu0 0.0
    %2347 = vmatprep.subr.mxu0 0.0
    %2348 = vmatpush1.msra.mxu0 0.0
    %2349 = vmatprep.subr.mxu0 0.0
    %2350 = vmatpush1.msra.mxu0 0.0
    %2351 = vmatprep.subr.mxu0 0.0
    %2352 = vmatpush1.msra.mxu0 0.0
    %2353 = vmatprep.subr.mxu0 0.0
    %2354 = vmatpush1.msra.mxu0 0.0
    %2355 = vmatprep.subr.mxu0 0.0
    %2356 = vmatpush1.msra.mxu0 0.0
    %2357 = vmatprep.subr.mxu0 0.0
    %2358 = vmatpush1.msra.mxu0 0.0
    %2359 = vmatprep.subr.mxu0 0.0
    %2360 = vmatpush1.msra.mxu0 0.0
    %2361 = vmatprep.subr.mxu0 0.0
    %2362 = vmatpush1.msra.mxu0 0.0
    %2363 = vmatprep.subr.mxu0 0.0
    %2364 = vmatpush1.msra.mxu0 0.0
    %2365 = vmatprep.subr.mxu0 0.0
    %2366 = vmatpush1.msra.mxu0 0.0
    %2367 = vmatprep.subr.mxu0 0.0
    %2368 = vmatpush1.msra.mxu0 0.0
    %2369 = vmatprep.subr.mxu0 0.0
    %2370 = vmatpush1.msra.mxu0 0.0
    %2371 = vmatprep.subr.mxu0 0.0
    %2372 = vmatpush1.msra.mxu0 0.0
    %2373 = vmatprep.subr.mxu0 0.0
    %2374 = vmatpush1.msra.mxu0 0.0
    %2375 = vmatprep.subr.mxu0 0.0
    %2376 = vmatpush1.msra.mxu0 0.0
    %2377 = vmatprep.subr.mxu0 0.0
    %2378 = vmatpush1.msra.mxu0 0.0
    %2379 = vmatprep.mubr.f32.mxu0 0.0
    %2380 = vmatmul.mubr.f32.gmra.mrb[0].mxu0 %v2310
    %v2381 = vpop.f32.mrb[0].mxu0
    %v2382 = vadd.f32 0.0, %v2381
    %v2383 = vpop.f32.mrb[0].mxu0
    %2384 = vdwg.mxu0
    %v2385 = vadd.f32 %v2257, %v2382
    %v2386 = vmax.f32 %v2385, 0.0
    %v2387 = vld [vmem:[%s14] sm:$0xff]
    %v2388 = vld [vmem:[%s14 + $0x8] sm:$0xff]
    %v2389 = vld [vmem:[%s14 + $0x10] sm:$0xff]
    %v2390 = vld [vmem:[%s14 + $0x18] sm:$0xff]
    %v2391 = vld [vmem:[%s14 + $0x20] sm:$0xff]
    %v2392 = vld [vmem:[%s14 + $0x28] sm:$0xff]
    %v2393 = vld [vmem:[%s14 + $0x30] sm:$0xff]
    %v2394 = vld [vmem:[%s14 + $0x38] sm:$0xff]
    %vm2395 = vcmask 392192
    %v2397 = vsel %vm2395, %v787, 0
    %2399 = vmatprep.subr.mxu0 0.0
    %2400 = vmatpush1.msra.mxu0 %v2389
    %2401 = vmatprep.subr.mxu0 0.0
    %2402 = vmatpush1.msra.mxu0 %v2390
    %2403 = vmatprep.subr.mxu0 0.0
    %2404 = vmatpush1.msra.mxu0 %v2391
    %2405 = vmatprep.subr.mxu0 0.0
    %2406 = vmatpush1.msra.mxu0 %v2392
    %2407 = vmatprep.subr.mxu0 0.0
    %2408 = vmatpush1.msra.mxu0 %v2393
    %2409 = vmatprep.subr.mxu0 0.0
    %2410 = vmatpush1.msra.mxu0 %v2394
    %2411 = vmatprep.subr.mxu0 0.0
    %2412 = vmatpush1.msra.mxu0 0.0
    %2413 = vmatprep.subr.mxu0 0.0
    %2414 = vmatpush1.msra.mxu0 0.0
    %2415 = vmatprep.subr.mxu0 0.0
    %2416 = vmatpush1.msra.mxu0 0.0
    %2417 = vmatprep.subr.mxu0 0.0
    %2418 = vmatpush1.msra.mxu0 0.0
    %2419 = vmatprep.subr.mxu0 0.0
    %2420 = vmatpush1.msra.mxu0 0.0
    %2421 = vmatprep.subr.mxu0 0.0
    %2422 = vmatpush1.msra.mxu0 0.0
    %2423 = vmatprep.subr.mxu0 0.0
    %2424 = vmatpush1.msra.mxu0 0.0
    %2425 = vmatprep.subr.mxu0 0.0
    %2426 = vmatpush1.msra.mxu0 0.0
    %2427 = vmatprep.subr.mxu0 0.0
    %2428 = vmatpush1.msra.mxu0 0.0
    %2429 = vmatprep.subr.mxu0 0.0
    %2430 = vmatpush1.msra.mxu0 0.0
    %2431 = vmatprep.subr.mxu0 0.0
    %2432 = vmatpush1.msra.mxu0 0.0
    %2433 = vmatprep.subr.mxu0 0.0
    %2434 = vmatpush1.msra.mxu0 0.0
    %2435 = vmatprep.subr.mxu0 0.0
    %2436 = vmatpush1.msra.mxu0 0.0
    %2437 = vmatprep.subr.mxu0 0.0
    %2438 = vmatpush1.msra.mxu0 0.0
    %2439 = vmatprep.subr.mxu0 0.0
    %2440 = vmatpush1.msra.mxu0 0.0
    %2441 = vmatprep.subr.mxu0 0.0
    %2442 = vmatpush1.msra.mxu0 0.0
    %2443 = vmatprep.subr.mxu0 0.0
    %2444 = vmatpush1.msra.mxu0 0.0
    %2445 = vmatprep.subr.mxu0 0.0
    %2446 = vmatpush1.msra.mxu0 0.0
    %2447 = vmatprep.subr.mxu0 0.0
    %2448 = vmatpush1.msra.mxu0 0.0
    %2449 = vmatprep.subr.mxu0 0.0
    %2450 = vmatpush1.msra.mxu0 0.0
    %2451 = vmatprep.subr.mxu0 0.0
    %2452 = vmatpush1.msra.mxu0 0.0
    %2453 = vmatprep.subr.mxu0 0.0
    %2454 = vmatpush1.msra.mxu0 0.0
    %2455 = vmatprep.subr.mxu0 0.0
    %2456 = vmatpush1.msra.mxu0 0.0
    %2457 = vmatprep.subr.mxu0 0.0
    %2458 = vmatpush1.msra.mxu0 0.0
    %2459 = vmatprep.subr.mxu0 0.0
    %2460 = vmatpush1.msra.mxu0 0.0
    %2461 = vmatprep.subr.mxu0 0.0
    %2462 = vmatpush1.msra.mxu0 0.0
    %2463 = vmatprep.mubr.f32.mxu0 0.0
    %2464 = vmatmul.mubr.f32.gmra.mrb[0].mxu0 %v2397
    %v2465 = vpop.f32.mrb[0].mxu0
    %v2466 = vadd.f32 0.0, %v2465
    %v2467 = vpop.f32.mrb[0].mxu0
    %2468 = vdwg.mxu0
    %vm2469 = vcmask 130048
    %v2471 = vsel %vm2469, %v2386, 0
    %2473 = vmatprep.subr.mxu0 0.0
    %2474 = vmatpush1.msra.mxu0 %v2387
    %2475 = vmatprep.subr.mxu0 0.0
    %2476 = vmatpush1.msra.mxu0 %v2388
    %2477 = vmatprep.subr.mxu0 0.0
    %2478 = vmatpush1.msra.mxu0 0.0
    %2479 = vmatprep.subr.mxu0 0.0
    %2480 = vmatpush1.msra.mxu0 0.0
    %2481 = vmatprep.subr.mxu0 0.0
    %2482 = vmatpush1.msra.mxu0 0.0
    %2483 = vmatprep.subr.mxu0 0.0
    %2484 = vmatpush1.msra.mxu0 0.0
    %2485 = vmatprep.subr.mxu0 0.0
    %2486 = vmatpush1.msra.mxu0 0.0
    %2487 = vmatprep.subr.mxu0 0.0
    %2488 = vmatpush1.msra.mxu0 0.0
    %2489 = vmatprep.subr.mxu0 0.0
    %2490 = vmatpush1.msra.mxu0 0.0
    %2491 = vmatprep.subr.mxu0 0.0
    %2492 = vmatpush1.msra.mxu0 0.0
    %2493 = vmatprep.subr.mxu0 0.0
    %2494 = vmatpush1.msra.mxu0 0.0
    %2495 = vmatprep.subr.mxu0 0.0
    %2496 = vmatpush1.msra.mxu0 0.0
    %2497 = vmatprep.subr.mxu0 0.0
    %2498 = vmatpush1.msra.mxu0 0.0
    %2499 = vmatprep.subr.mxu0 0.0
    %2500 = vmatpush1.msra.mxu0 0.0
    %2501 = vmatprep.subr.mxu0 0.0
    %2502 = vmatpush1.msra.mxu0 0.0
    %2503 = vmatprep.subr.mxu0 0.0
    %2504 = vmatpush1.msra.mxu0 0.0
    %2505 = vmatprep.subr.mxu0 0.0
    %2506 = vmatpush1.msra.mxu0 0.0
    %2507 = vmatprep.subr.mxu0 0.0
    %2508 = vmatpush1.msra.mxu0 0.0
    %2509 = vmatprep.subr.mxu0 0.0
    %2510 = vmatpush1.msra.mxu0 0.0
    %2511 = vmatprep.subr.mxu0 0.0
    %2512 = vmatpush1.msra.mxu0 0.0
    %2513 = vmatprep.subr.mxu0 0.0
    %2514 = vmatpush1.msra.mxu0 0.0
    %2515 = vmatprep.subr.mxu0 0.0
    %2516 = vmatpush1.msra.mxu0 0.0
    %2517 = vmatprep.subr.mxu0 0.0
    %2518 = vmatpush1.msra.mxu0 0.0
    %2519 = vmatprep.subr.mxu0 0.0
    %2520 = vmatpush1.msra.mxu0 0.0
    %2521 = vmatprep.subr.mxu0 0.0
    %2522 = vmatpush1.msra.mxu0 0.0
    %2523 = vmatprep.subr.mxu0 0.0
    %2524 = vmatpush1.msra.mxu0 0.0
    %2525 = vmatprep.subr.mxu0 0.0
    %2526 = vmatpush1.msra.mxu0 0.0
    %2527 = vmatprep.subr.mxu0 0.0
    %2528 = vmatpush1.msra.mxu0 0.0
    %2529 = vmatprep.subr.mxu0 0.0
    %2530 = vmatpush1.msra.mxu0 0.0
    %2531 = vmatprep.subr.mxu0 0.0
    %2532 = vmatpush1.msra.mxu0 0.0
    %2533 = vmatprep.subr.mxu0 0.0
    %2534 = vmatpush1.msra.mxu0 0.0
    %2535 = vmatprep.subr.mxu0 0.0
    %2536 = vmatpush1.msra.mxu0 0.0
    %2537 = vmatprep.mubr.f32.mxu0 0.0
    %2538 = vmatmul.mubr.f32.gmra.mrb[0].mxu0 %v2471
    %v2539 = vpop.f32.mrb[0].mxu0
    %v2540 = vadd.f32 %v2466, %v2539
    %v2541 = vpop.f32.mrb[0].mxu0
    %2542 = vdwg.mxu0
    %v2543 = vld [vmem:[%s15] sm:$0x1]
    %v2545 = vlaneseq
    %v2546 = vshrl.u32 %v2545, 7
    %v2547 = vsub.s32 0, %v2546
    %v2548 = vrot.slane %v2543, %v2547
    %v2550 = vadd.f32 %v2540, %v2548
    %v2551 = vmax.f32 %v2550, 0.0
    %vm2552 = vcmask 58368
    %2553 = vst.msk [vmem:[#allocation10] sm:$0x3] %vm2552, %v2551
    // Predicated region
    $region82: #{model_forward.1} parent=1 // pred_check
      _
    $region83: #{model_forward.1} parent=1 // pred_check_branch
      %2555 = sbr.rel (0) target = $region85
    $region84: #{model_forward.1} parent=1 // pred_region
      %s2557 = ssub.s32 32, 32
      %2558 = vsyncadd [#allocation3], %s2557
      %s2560 = sshll.u32 [#allocation10], 4
      %s2561 = int_to_ptr.vmem [resolvable:$true] %s2560
      %2563 = dma.vmem_to_hbm [thread:$0]  %s2561, 32, %s16, [#allocation3]
    $region85: #{model_forward.1} parent=1 // pred_fallthru
      _
    // Predicated region
    $region86: #{model_forward.1} parent=1 // pred_check
      _
    $region87: #{model_forward.1} parent=1 // pred_check_branch
      %2565 = sbr.rel (0) target = $region89
    $region88: #{model_forward.1} parent=1 // pred_region
      %2566 = dma.done [#allocation3], 32
    $region89: #{model_forward.1} parent=1 // pred_fallthru
      _
    %2567 = vsyncpa [#allocation3], 1
    %2568 = vsyncpa [#allocation4], 1
    %2569 = vsyncpa [#allocation6], 1
    %2570 = vsyncpa [#allocation9], 1

</llo_original>
